<compile_context>
chip_gen: v7x
topology: tpu7x:2x2x1
jax: 0.10.0
libtpu: 0.0.40
codegen_flags: <defaults>
</compile_context>

<pallas_src>
import functools

import jax
import jax.numpy as jnp
from jax import lax
from jax.experimental import pallas as pl
from jax.experimental.pallas import tpu as pltpu

LANE = 128
SUBLANE = 8
NEG_INF = -1e30


def _round_up(x, m):
    return ((x + m - 1) // m) * m


def _pad_axis(a, axis, target):
    pad = target - a.shape[axis]
    if pad <= 0:
        return a
    widths = [(0, 0)] * a.ndim
    widths[axis] = (0, pad)
    return jnp.pad(a, widths)


def _unroll_factor(n, cap=8):
    for u in range(min(cap, n), 0, -1):
        if n % u == 0:
            return u
    return 1


# ----------------------------------------------------------------------------
# Fused encoder + decoder + attention + CE kernel.
# Grid = (num_vocab_chunks,); phases 1-2 run once on chunk 0, phase 3 streams
# the stacked output weight chunk-by-chunk with an online log-sum-exp.
# ----------------------------------------------------------------------------
def seq2seq_kernel(x_ref, emb_ref, attn_bias_ref, tgt_ref, valid_ref,
                   enc_w_ih_ref, enc_w_hh_ref, enc_b_ref,
                   dec_w_ih_ref, dec_w_hh_ref, dec_b_ref,
                   w_out_ref, b_out_ref,
                   loss_ref,
                   pre_enc_ref, enc_ref, pre_dec_ref, s_all_ref, hid_ref,
                   m_ref, se_ref, gold_ref,
                   *, unroll_enc, unroll_dec):
    f32 = jnp.float32
    bf16 = jnp.bfloat16
    Ti, Np, Hp = pre_enc_ref.shape
    To = pre_dec_ref.shape[0]
    R = To * Np
    tile_v = b_out_ref.shape[-1]
    v_idx = pl.program_id(0)
    nv = pl.num_programs(0)

    # ---- Phases 1 + 2: run once (first vocab chunk), persist in VMEM -------
    @pl.when(v_idx == 0)
    def _():
        loss_ref[...] = jnp.zeros_like(loss_ref)

        # Phase 1: encoder.  Hoisted input projection: one big MXU matmul
        # (bias folded in here, not re-added every step).
        pre_enc = (jnp.dot(x_ref[...], enc_w_ih_ref[...],
                           preferred_element_type=f32) + enc_b_ref[...])
        pre_enc_ref[...] = pre_enc.reshape(Ti, Np, Hp)
        enc_w_hh = enc_w_hh_ref[...]

        def enc_step(t, h):
            h_new = jnp.tanh(
                pre_enc_ref[t]
                + jnp.dot(h.astype(bf16), enc_w_hh, preferred_element_type=f32))
            enc_ref[t] = h_new
            return h_new

        lax.fori_loop(0, Ti, enc_step, jnp.zeros((Np, Hp), f32),
                      unroll=unroll_enc)

        # Phase 2a: decoder recurrence only.  Context never feeds it, so the
        # serial loop is just (small matmul + tanh + store).
        pre_dec = (jnp.dot(emb_ref[...], dec_w_ih_ref[...],
                           preferred_element_type=f32) + dec_b_ref[...])
        pre_dec_ref[...] = pre_dec.reshape(To, Np, Hp)
        dec_w_hh = dec_w_hh_ref[...]

        def dec_step(t, s_prev):
            s = jnp.tanh(
                pre_dec_ref[t]
                + jnp.dot(s_prev.astype(bf16), dec_w_hh,
                          preferred_element_type=f32))
            s_all_ref[t] = s
            return s

        lax.fori_loop(0, To, dec_step, jnp.zeros((Np, Hp), f32),
                      unroll=unroll_dec)

        # Phase 2b: attention for ALL decoder steps as two MXU matmuls.
        # Cross-utterance (and padded-frame) terms are killed by the additive
        # block-diagonal bias; exp(-1e30) underflows to exactly 0.
        s2d = s_all_ref[...].reshape(R, Hp).astype(bf16)          # (R, Hp)
        enc2d = enc_ref[...].reshape(Ti * Np, Hp).astype(bf16)    # (Ti*Np, Hp)
        scores = lax.dot_general(
            s2d, enc2d, dimension_numbers=(((1,), (1,)), ((), ())),
            preferred_element_type=f32)                           # (R, Ti*Np)
        scores = scores + attn_bias_ref[...]
        m_s = jnp.max(scores, axis=-1, keepdims=True)
        p = jnp.exp(scores - m_s)
        denom = jnp.sum(p, axis=-1, keepdims=True)
        alpha = (p * pl.reciprocal(denom, approx=True)).astype(bf16)
        ctx = jnp.dot(alpha, enc2d, preferred_element_type=f32)   # (R, Hp)

        # Fused output-projection operand: [s | context] in one bf16 scratch.
        hid_ref[:, :Hp] = s2d
        hid_ref[:, Hp:] = ctx.astype(bf16)

        # Init online-LSE / gold-logit state.
        m_ref[...] = jnp.full(m_ref.shape, NEG_INF, f32)
        se_ref[...] = jnp.zeros(se_ref.shape, f32)
        gold_ref[...] = jnp.zeros(gold_ref.shape, f32)

    # ---- Phase 3: vocab-chunked fused output projection + online LSE -------
    logits = (jnp.dot(hid_ref[...], w_out_ref[...],
                      preferred_element_type=f32)
              + b_out_ref[...])                                   # (R, tile_v)
    c_max = jnp.max(logits, axis=-1, keepdims=True)
    m_old = m_ref[...]
    m_new = jnp.maximum(m_old, c_max)
    se_ref[...] = (se_ref[...] * jnp.exp(m_old - m_new)
                   + jnp.sum(jnp.exp(logits - m_new), axis=-1, keepdims=True))
    m_ref[...] = m_new

    # Gold-logit gather restricted to this chunk's columns (no (R, Vp) iota).
    col = v_idx * tile_v + lax.broadcasted_iota(jnp.int32, logits.shape, 1)
    gold_ref[...] += jnp.sum(jnp.where(col == tgt_ref[...], logits, 0.0),
                             axis=-1, keepdims=True)

    # ---- Finalize: masked mean NLL over valid target tokens ----------------
    @pl.when(v_idx == nv - 1)
    def _():
        lse = m_ref[...] + jnp.log(jnp.maximum(se_ref[...], 1e-30))
        nll = (lse - gold_ref[...]) * valid_ref[...]
        num = jnp.sum(nll, axis=0, keepdims=True)                 # (1, 1)
        den = jnp.sum(valid_ref[...], axis=0, keepdims=True)      # (1, 1)
        loss_ref[...] = num / jnp.maximum(den, 1.0)


# ----------------------------------------------------------------------------
# Seq2Seq forward: mirrors Seq2Seq.forward(padded_input, input_lengths, target)
# Loss = mean cross-entropy over non-ignored target tokens (teacher forcing).
# ----------------------------------------------------------------------------
def seq2seq_forward(params, padded_input, input_lengths, padded_target,
                    *, ignore_id=-1, tile_v=None):
    N, Ti, D = padded_input.shape
    To = padded_target.shape[1]
    V, E = params["embedding"].shape
    H = params["enc_w_hh"].shape[0]
    sos_id = V - 1

    Np = _round_up(N, SUBLANE)
    Dp = _round_up(D, LANE)
    Hp = _round_up(H, LANE)
    Ep = _round_up(E, LANE)
    if tile_v is None:
        # Bigger tiles are fine on 128-MiB chips; bounded for v7x (64 MiB).
        tile_v = min(2048, _round_up(V, LANE))
    tile_v = _round_up(tile_v, LANE)
    Vp = _round_up(V, tile_v)
    nv = Vp // tile_v
    R = To * Np

    f32 = jnp.float32
    bf16 = jnp.bfloat16

    # Encoder input: time-major, zero-padded, flattened for one big MXU matmul.
    x = jnp.transpose(padded_input.astype(f32), (1, 0, 2))        # (Ti, N, D)
    x = _pad_axis(_pad_axis(x, 1, Np), 2, Dp)                     # (Ti, Np, Dp)
    x2d = x.reshape(Ti * Np, Dp).astype(bf16)

    # Block-diagonal + length additive attention bias.  Row r = t*Np + n
    # (decoder step t of utterance n), col c = i*Np + m (encoder frame i of
    # utterance m): valid iff n == m and i < input_lengths[n].
    lens = _pad_axis(input_lengths.astype(jnp.int32), 0, Np)      # (Np,)
    n_eq = jnp.arange(Np)[:, None, None] == jnp.arange(Np)[None, None, :]
    i_ok = jnp.arange(Ti)[None, :, None] < lens[:, None, None]
    bias = jnp.where(n_eq & i_ok, 0.0, NEG_INF).astype(f32)       # (Np, Ti, Np)
    attn_bias = jnp.broadcast_to(bias[None], (To, Np, Ti, Np))
    attn_bias = attn_bias.reshape(R, Ti * Np)

    # Teacher forcing: <sos> + target[:, :-1] -> target (ignore_id sanitized).
    sos = jnp.full((N, 1), sos_id, dtype=padded_target.dtype)
    dec_in = jnp.concatenate([sos, padded_target[:, :-1]], axis=1)
    dec_in = jnp.where(dec_in == ignore_id, sos_id, dec_in)       # (N, To)
    emb = jnp.take(params["embedding"].astype(f32), dec_in, axis=0)
    emb = jnp.transpose(emb, (1, 0, 2))                           # (To, N, E)
    emb = _pad_axis(_pad_axis(emb, 1, Np), 2, Ep)
    emb2d = emb.reshape(R, Ep).astype(bf16)

    # Integer gold targets + validity (ignore_id and padded batch rows masked).
    tgt_t = jnp.transpose(padded_target.astype(jnp.int32), (1, 0))  # (To, N)
    tgt = jnp.full((To, Np), -1, jnp.int32).at[:, :N].set(tgt_t)
    tgt = tgt.reshape(R, 1)
    valid = jnp.zeros((To, Np), f32).at[:, :N].set(
        (tgt_t != ignore_id).astype(f32)).reshape(R, 1)

    # Weights: zero-padded lane-dense tiles; MXU operands bf16, biases f32.
    enc_w_ih = _pad_axis(_pad_axis(params["enc_w_ih"], 0, Dp), 1, Hp).astype(bf16)
    enc_w_hh = _pad_axis(_pad_axis(params["enc_w_hh"], 0, Hp), 1, Hp).astype(bf16)
    enc_b = _pad_axis(params["enc_b"].astype(f32), 1, Hp)
    dec_w_ih = _pad_axis(_pad_axis(params["dec_w_ih"], 0, Ep), 1, Hp).astype(bf16)
    dec_w_hh = _pad_axis(_pad_axis(params["dec_w_hh"], 0, Hp), 1, Hp).astype(bf16)
    dec_b = _pad_axis(params["dec_b"].astype(f32), 1, Hp)
    # Fused output projection: [W_s ; W_c] stacked along the contraction dim.
    w_out = jnp.concatenate(
        [_pad_axis(_pad_axis(params["dec_w_out_s"], 0, Hp), 1, Vp),
         _pad_axis(_pad_axis(params["dec_w_out_c"], 0, Hp), 1, Vp)],
        axis=0).astype(bf16)                                      # (2*Hp, Vp)
    # Padded vocab columns get -1e30 bias so they never enter the LSE.
    b_out = jnp.full((1, Vp), NEG_INF, f32).at[:, :V].set(
        params["dec_b_out"].astype(f32))

    kernel = functools.partial(seq2seq_kernel,
                               unroll_enc=_unroll_factor(Ti),
                               unroll_dec=_unroll_factor(To))

    # Per-chip VMEM budget (3/4 of physical): ~48 MiB on v7x, ~96 MiB on v5e/v6e.
    try:
        vmem_cap = int(pltpu.get_tpu_info().vmem_capacity_bytes)
    except Exception:
        vmem_cap = 64 * 1024 * 1024
    vmem_limit = min(vmem_cap * 3 // 4, 112 * 1024 * 1024)

    def _resident(shape):
        return pl.BlockSpec(shape, lambda v: (0, 0))

    grid_spec = pltpu.PrefetchScalarGridSpec(
        num_scalar_prefetch=0,
        grid=(nv,),
        in_specs=[
            _resident((Ti * Np, Dp)),       # x2d
            _resident((R, Ep)),             # emb2d
            _resident((R, Ti * Np)),        # attention bias
            _resident((R, 1)),              # gold targets (int32)
            _resident((R, 1)),              # validity mask
            _resident((Dp, Hp)),            # enc_w_ih
            _resident((Hp, Hp)),            # enc_w_hh
            _resident((1, Hp)),             # enc_b
            _resident((Ep, Hp)),            # dec_w_ih
            _resident((Hp, Hp)),            # dec_w_hh
            _resident((1, Hp)),             # dec_b
            pl.BlockSpec((2 * Hp, tile_v), lambda v: (0, v)),  # streamed W_out
            pl.BlockSpec((1, tile_v), lambda v: (0, v)),       # streamed b_out
        ],
        out_specs=pl.BlockSpec((1, 1), lambda v: (0, 0)),
        scratch_shapes=[
            pltpu.VMEM((Ti, Np, Hp), f32),   # pre_enc (hoisted x @ W_ih + b)
            pltpu.VMEM((Ti, Np, Hp), f32),   # encoder states (never hit HBM)
            pltpu.VMEM((To, Np, Hp), f32),   # pre_dec (hoisted emb @ W_ih + b)
            pltpu.VMEM((To, Np, Hp), f32),   # decoder states s_t
            pltpu.VMEM((R, 2 * Hp), bf16),   # fused [s | context] operand
            pltpu.VMEM((R, 1), f32),         # online LSE: running max
            pltpu.VMEM((R, 1), f32),         # online LSE: running sum-exp
            pltpu.VMEM((R, 1), f32),         # gold logit accumulator
        ],
    )

    loss = pl.pallas_call(
        kernel,
        out_shape=jax.ShapeDtypeStruct((1, 1), f32),
        grid_spec=grid_spec,
        compiler_params=pltpu.CompilerParams(
            dimension_semantics=("arbitrary",),
            vmem_limit_bytes=vmem_limit),
    )(x2d, emb2d, attn_bias, tgt, valid,
      enc_w_ih, enc_w_hh, enc_b,
      dec_w_ih, dec_w_hh, dec_b,
      w_out, b_out)
    return loss[0, 0]


def init_params(key, D, H, E, V):
    ks = jax.random.split(key, 8)
    s = 0.1
    return {
        "enc_w_ih":    s * jax.random.normal(ks[0], (D, H), jnp.float32),
        "enc_w_hh":    s * jax.random.normal(ks[1], (H, H), jnp.float32),
        "enc_b":       jnp.zeros((1, H), jnp.float32),
        "embedding":   s * jax.random.normal(ks[2], (V, E), jnp.float32),
        "dec_w_ih":    s * jax.random.normal(ks[3], (E, H), jnp.float32),
        "dec_w_hh":    s * jax.random.normal(ks[4], (H, H), jnp.float32),
        "dec_b":       jnp.zeros((1, H), jnp.float32),
        "dec_w_out_s": s * jax.random.normal(ks[5], (H, V), jnp.float32),
        "dec_w_out_c": s * jax.random.normal(ks[6], (H, V), jnp.float32),
        "dec_b_out":   jnp.zeros((1, V), jnp.float32),
    }


if __name__ == "__main__":
    # Small shapes consistent with Seq2Seq.forward():
    #   padded_input N x Ti x D, input_lengths N, padded_target N x To.
    # V=200 + tile_v=128 -> two vocab chunks, exercising the online-LSE path.
    N, Ti, D, H, E, To, V = 2, 8, 16, 32, 32, 6, 200
    IGNORE_ID = -1

    key = jax.random.PRNGKey(0)
    k_in, k_tgt, k_par = jax.random.split(key, 3)

    padded_input = jax.random.normal(k_in, (N, Ti, D), jnp.float32)
    input_lengths = jnp.array([Ti, Ti - 3], dtype=jnp.int32)
    padded_target = jax.random.randint(k_tgt, (N, To), 0, V - 1, dtype=jnp.int32)
    # Pad the tail of the second target sequence the way a real batch would be.
    padded_target = padded_target.at[1, To - 2:].set(IGNORE_ID)

    params = init_params(k_par, D, H, E, V)

    fwd = jax.jit(functools.partial(seq2seq_forward,
                                    ignore_id=IGNORE_ID, tile_v=128))
    loss = fwd(params, padded_input, input_lengths, padded_target)
    loss = jax.block_until_ready(loss)
    assert jnp.isfinite(loss), "loss is not finite"
    print("KERNEL_OK")
</pallas_src>

<mosaic_0001>
module attributes {stable_mosaic.version = 11 : i64} {
  func.func @seq2seq_kernel(%arg0: i32, %arg1: memref<64x128xbf16, #tpu.memory_space<vmem>>, %arg2: memref<48x128xbf16, #tpu.memory_space<vmem>>, %arg3: memref<48x64xf32, #tpu.memory_space<vmem>>, %arg4: memref<48x1xi32, #tpu.memory_space<vmem>>, %arg5: memref<48x1xf32, #tpu.memory_space<vmem>>, %arg6: memref<128x128xbf16, #tpu.memory_space<vmem>>, %arg7: memref<128x128xbf16, #tpu.memory_space<vmem>>, %arg8: memref<1x128xf32, #tpu.memory_space<vmem>>, %arg9: memref<128x128xbf16, #tpu.memory_space<vmem>>, %arg10: memref<128x128xbf16, #tpu.memory_space<vmem>>, %arg11: memref<1x128xf32, #tpu.memory_space<vmem>>, %arg12: memref<256x128xbf16, #tpu.memory_space<vmem>>, %arg13: memref<1x128xf32, #tpu.memory_space<vmem>>, %arg14: memref<1x1xf32, #tpu.memory_space<vmem>>, %arg15: memref<8x8x128xf32, #tpu.memory_space<vmem>>, %arg16: memref<8x8x128xf32, #tpu.memory_space<vmem>>, %arg17: memref<6x8x128xf32, #tpu.memory_space<vmem>>, %arg18: memref<6x8x128xf32, #tpu.memory_space<vmem>>, %arg19: memref<48x256xbf16, #tpu.memory_space<vmem>>, %arg20: memref<48x1xf32, #tpu.memory_space<vmem>>, %arg21: memref<48x1xf32, #tpu.memory_space<vmem>>, %arg22: memref<48x1xf32, #tpu.memory_space<vmem>>) attributes {dimension_semantics = [#tpu.dimension_semantics<arbitrary>], iteration_bounds = array<i64: 2>, scalar_prefetch = 0 : i64, scratch_operands = 8 : i64, tpu.core_type = #tpu.core_type<tc>, window_params = [{pipeline_mode = #tpu.pipeline_mode<synchronous>, transform_indices = @transform_0, window_bounds = array<i64: 64, 128>}, {pipeline_mode = #tpu.pipeline_mode<synchronous>, transform_indices = @transform_1, window_bounds = array<i64: 48, 128>}, {pipeline_mode = #tpu.pipeline_mode<synchronous>, transform_indices = @transform_2, window_bounds = array<i64: 48, 64>}, {pipeline_mode = #tpu.pipeline_mode<synchronous>, transform_indices = @transform_3, window_bounds = array<i64: 48, 1>}, {pipeline_mode = #tpu.pipeline_mode<synchronous>, transform_indices = @transform_4, window_bounds = array<i64: 48, 1>}, {pipeline_mode = #tpu.pipeline_mode<synchronous>, transform_indices = @transform_5, window_bounds = array<i64: 128, 128>}, {pipeline_mode = #tpu.pipeline_mode<synchronous>, transform_indices = @transform_6, window_bounds = array<i64: 128, 128>}, {pipeline_mode = #tpu.pipeline_mode<synchronous>, transform_indices = @transform_7, window_bounds = array<i64: 1, 128>}, {pipeline_mode = #tpu.pipeline_mode<synchronous>, transform_indices = @transform_8, window_bounds = array<i64: 128, 128>}, {pipeline_mode = #tpu.pipeline_mode<synchronous>, transform_indices = @transform_9, window_bounds = array<i64: 128, 128>}, {pipeline_mode = #tpu.pipeline_mode<synchronous>, transform_indices = @transform_10, window_bounds = array<i64: 1, 128>}, {transform_indices = @transform_11, window_bounds = array<i64: 256, 128>}, {transform_indices = @transform_12, window_bounds = array<i64: 1, 128>}, {pipeline_mode = #tpu.pipeline_mode<synchronous>, transform_indices = @transform_13, window_bounds = array<i64: 1, 1>}]} {
    %c0_i32 = arith.constant 0 : i32
    %0 = arith.cmpi eq, %arg0, %c0_i32 : i32
    %1 = arith.extui %0 : i1 to i32
    %c0_i32_0 = arith.constant 0 : i32
    %2 = arith.cmpi ne, %1, %c0_i32_0 : i32
    scf.if %2 {
      %cst_25 = arith.constant 0.000000e+00 : f32
      %42 = vector.broadcast %cst_25 : f32 to vector<1x1xf32>
      %c0_26 = arith.constant 0 : index
      %c0_27 = arith.constant 0 : index
      %43 = vector.load %arg14[%c0_26, %c0_27] : memref<1x1xf32, #tpu.memory_space<vmem>>, vector<1x1xf32>
      tpu.vector_store %arg14[%c0_26, %c0_27], %42 {strides = array<i32>} : memref<1x1xf32, #tpu.memory_space<vmem>>, vector<1x1xf32>,
      %c0_28 = arith.constant 0 : index
      %c0_29 = arith.constant 0 : index
      %44 = vector.load %arg1[%c0_28, %c0_29] : memref<64x128xbf16, #tpu.memory_space<vmem>>, vector<64x128xbf16>
      %c0_30 = arith.constant 0 : index
      %c0_31 = arith.constant 0 : index
      %45 = vector.load %arg6[%c0_30, %c0_31] : memref<128x128xbf16, #tpu.memory_space<vmem>>, vector<128x128xbf16>
      %cst_32 = arith.constant dense<0.000000e+00> : vector<64x128xf32>
      %46 = tpu.matmul %44, %45, %cst_32 {dimension_numbers = #tpu.dot_dimension_numbers<[1], [0], [0], [1], [0, 0, 1, 1], [], []>} : vector<64x128xbf16>, vector<128x128xbf16>, vector<64x128xf32> -> vector<64x128xf32>
      %c0_33 = arith.constant 0 : index
      %c0_34 = arith.constant 0 : index
      %47 = vector.load %arg8[%c0_33, %c0_34] : memref<1x128xf32, #tpu.memory_space<vmem>>, vector<1x128xf32>
      %48 = vector.broadcast %47 : vector<1x128xf32> to vector<64x128xf32>
      %49 = arith.addf %46, %48 : vector<64x128xf32>
      %50 = vector.shape_cast %49 : vector<64x128xf32> to vector<8x8x128xf32>
      %c0_35 = arith.constant 0 : index
      %c0_36 = arith.constant 0 : index
      %c0_37 = arith.constant 0 : index
      %51 = vector.load %arg15[%c0_35, %c0_36, %c0_37] : memref<8x8x128xf32, #tpu.memory_space<vmem>>, vector<8x8x128xf32>
      tpu.vector_store %arg15[%c0_35, %c0_36, %c0_37], %50 {strides = array<i32>} : memref<8x8x128xf32, #tpu.memory_space<vmem>>, vector<8x8x128xf32>,
      %c0_38 = arith.constant 0 : index
      %c0_39 = arith.constant 0 : index
      %52 = vector.load %arg7[%c0_38, %c0_39] : memref<128x128xbf16, #tpu.memory_space<vmem>>, vector<128x128xbf16>
      %cst_40 = arith.constant 0.000000e+00 : f32
      %53 = vector.broadcast %cst_40 : f32 to vector<8x128xf32>
      %c0_i32_41 = arith.constant 0 : i32
      %54 = arith.index_cast %c0_i32_41 : i32 to index
      %c0_42 = arith.constant 0 : index
      %c0_43 = arith.constant 0 : index
      %55 = vector.load %arg15[%54, %c0_42, %c0_43] : memref<8x8x128xf32, #tpu.memory_space<vmem>>, vector<1x8x128xf32>
      %56 = vector.shape_cast %55 : vector<1x8x128xf32> to vector<8x128xf32>
      %57 = arith.truncf %53 : vector<8x128xf32> to vector<8x128xbf16>
      %cst_44 = arith.constant dense<0.000000e+00> : vector<8x128xf32>
      %58 = tpu.matmul %57, %52, %cst_44 {dimension_numbers = #tpu.dot_dimension_numbers<[1], [0], [0], [1], [0, 0, 1, 1], [], []>} : vector<8x128xbf16>, vector<128x128xbf16>, vector<8x128xf32> -> vector<8x128xf32>
      %59 = arith.addf %56, %58 : vector<8x128xf32>
      %60 = math.tanh %59 : vector<8x128xf32>
      %61 = arith.index_cast %c0_i32_41 : i32 to index
      %c0_45 = arith.constant 0 : index
      %c0_46 = arith.constant 0 : index
      %62 = vector.load %arg16[%61, %c0_45, %c0_46] : memref<8x8x128xf32, #tpu.memory_space<vmem>>, vector<1x8x128xf32>
      %63 = vector.shape_cast %62 : vector<1x8x128xf32> to vector<8x128xf32>
      %64 = vector.shape_cast %60 : vector<8x128xf32> to vector<1x8x128xf32>
      tpu.vector_store %arg16[%61, %c0_45, %c0_46], %64 {strides = array<i32>} : memref<8x8x128xf32, #tpu.memory_space<vmem>>, vector<1x8x128xf32>,
      %c1_i32_47 = arith.constant 1 : i32
      %65 = arith.index_cast %c1_i32_47 : i32 to index
      %c0_48 = arith.constant 0 : index
      %c0_49 = arith.constant 0 : index
      %66 = vector.load %arg15[%65, %c0_48, %c0_49] : memref<8x8x128xf32, #tpu.memory_space<vmem>>, vector<1x8x128xf32>
      %67 = vector.shape_cast %66 : vector<1x8x128xf32> to vector<8x128xf32>
      %68 = arith.truncf %60 : vector<8x128xf32> to vector<8x128xbf16>
      %cst_50 = arith.constant dense<0.000000e+00> : vector<8x128xf32>
      %69 = tpu.matmul %68, %52, %cst_50 {dimension_numbers = #tpu.dot_dimension_numbers<[1], [0], [0], [1], [0, 0, 1, 1], [], []>} : vector<8x128xbf16>, vector<128x128xbf16>, vector<8x128xf32> -> vector<8x128xf32>
      %70 = arith.addf %67, %69 : vector<8x128xf32>
      %71 = math.tanh %70 : vector<8x128xf32>
      %72 = arith.index_cast %c1_i32_47 : i32 to index
      %c0_51 = arith.constant 0 : index
      %c0_52 = arith.constant 0 : index
      %73 = vector.load %arg16[%72, %c0_51, %c0_52] : memref<8x8x128xf32, #tpu.memory_space<vmem>>, vector<1x8x128xf32>
      %74 = vector.shape_cast %73 : vector<1x8x128xf32> to vector<8x128xf32>
      %75 = vector.shape_cast %71 : vector<8x128xf32> to vector<1x8x128xf32>
      tpu.vector_store %arg16[%72, %c0_51, %c0_52], %75 {strides = array<i32>} : memref<8x8x128xf32, #tpu.memory_space<vmem>>, vector<1x8x128xf32>,
      %c2_i32 = arith.constant 2 : i32
      %76 = arith.index_cast %c2_i32 : i32 to index
      %c0_53 = arith.constant 0 : index
      %c0_54 = arith.constant 0 : index
      %77 = vector.load %arg15[%76, %c0_53, %c0_54] : memref<8x8x128xf32, #tpu.memory_space<vmem>>, vector<1x8x128xf32>
      %78 = vector.shape_cast %77 : vector<1x8x128xf32> to vector<8x128xf32>
      %79 = arith.truncf %71 : vector<8x128xf32> to vector<8x128xbf16>
      %cst_55 = arith.constant dense<0.000000e+00> : vector<8x128xf32>
      %80 = tpu.matmul %79, %52, %cst_55 {dimension_numbers = #tpu.dot_dimension_numbers<[1], [0], [0], [1], [0, 0, 1, 1], [], []>} : vector<8x128xbf16>, vector<128x128xbf16>, vector<8x128xf32> -> vector<8x128xf32>
      %81 = arith.addf %78, %80 : vector<8x128xf32>
      %82 = math.tanh %81 : vector<8x128xf32>
      %83 = arith.index_cast %c2_i32 : i32 to index
      %c0_56 = arith.constant 0 : index
      %c0_57 = arith.constant 0 : index
      %84 = vector.load %arg16[%83, %c0_56, %c0_57] : memref<8x8x128xf32, #tpu.memory_space<vmem>>, vector<1x8x128xf32>
      %85 = vector.shape_cast %84 : vector<1x8x128xf32> to vector<8x128xf32>
      %86 = vector.shape_cast %82 : vector<8x128xf32> to vector<1x8x128xf32>
      tpu.vector_store %arg16[%83, %c0_56, %c0_57], %86 {strides = array<i32>} : memref<8x8x128xf32, #tpu.memory_space<vmem>>, vector<1x8x128xf32>,
      %c3_i32 = arith.constant 3 : i32
      %87 = arith.index_cast %c3_i32 : i32 to index
      %c0_58 = arith.constant 0 : index
      %c0_59 = arith.constant 0 : index
      %88 = vector.load %arg15[%87, %c0_58, %c0_59] : memref<8x8x128xf32, #tpu.memory_space<vmem>>, vector<1x8x128xf32>
      %89 = vector.shape_cast %88 : vector<1x8x128xf32> to vector<8x128xf32>
      %90 = arith.truncf %82 : vector<8x128xf32> to vector<8x128xbf16>
      %cst_60 = arith.constant dense<0.000000e+00> : vector<8x128xf32>
      %91 = tpu.matmul %90, %52, %cst_60 {dimension_numbers = #tpu.dot_dimension_numbers<[1], [0], [0], [1], [0, 0, 1, 1], [], []>} : vector<8x128xbf16>, vector<128x128xbf16>, vector<8x128xf32> -> vector<8x128xf32>
      %92 = arith.addf %89, %91 : vector<8x128xf32>
      %93 = math.tanh %92 : vector<8x128xf32>
      %94 = arith.index_cast %c3_i32 : i32 to index
      %c0_61 = arith.constant 0 : index
      %c0_62 = arith.constant 0 : index
      %95 = vector.load %arg16[%94, %c0_61, %c0_62] : memref<8x8x128xf32, #tpu.memory_space<vmem>>, vector<1x8x128xf32>
      %96 = vector.shape_cast %95 : vector<1x8x128xf32> to vector<8x128xf32>
      %97 = vector.shape_cast %93 : vector<8x128xf32> to vector<1x8x128xf32>
      tpu.vector_store %arg16[%94, %c0_61, %c0_62], %97 {strides = array<i32>} : memref<8x8x128xf32, #tpu.memory_space<vmem>>, vector<1x8x128xf32>,
      %c4_i32 = arith.constant 4 : i32
      %98 = arith.index_cast %c4_i32 : i32 to index
      %c0_63 = arith.constant 0 : index
      %c0_64 = arith.constant 0 : index
      %99 = vector.load %arg15[%98, %c0_63, %c0_64] : memref<8x8x128xf32, #tpu.memory_space<vmem>>, vector<1x8x128xf32>
      %100 = vector.shape_cast %99 : vector<1x8x128xf32> to vector<8x128xf32>
      %101 = arith.truncf %93 : vector<8x128xf32> to vector<8x128xbf16>
      %cst_65 = arith.constant dense<0.000000e+00> : vector<8x128xf32>
      %102 = tpu.matmul %101, %52, %cst_65 {dimension_numbers = #tpu.dot_dimension_numbers<[1], [0], [0], [1], [0, 0, 1, 1], [], []>} : vector<8x128xbf16>, vector<128x128xbf16>, vector<8x128xf32> -> vector<8x128xf32>
      %103 = arith.addf %100, %102 : vector<8x128xf32>
      %104 = math.tanh %103 : vector<8x128xf32>
      %105 = arith.index_cast %c4_i32 : i32 to index
      %c0_66 = arith.constant 0 : index
      %c0_67 = arith.constant 0 : index
      %106 = vector.load %arg16[%105, %c0_66, %c0_67] : memref<8x8x128xf32, #tpu.memory_space<vmem>>, vector<1x8x128xf32>
      %107 = vector.shape_cast %106 : vector<1x8x128xf32> to vector<8x128xf32>
      %108 = vector.shape_cast %104 : vector<8x128xf32> to vector<1x8x128xf32>
      tpu.vector_store %arg16[%105, %c0_66, %c0_67], %108 {strides = array<i32>} : memref<8x8x128xf32, #tpu.memory_space<vmem>>, vector<1x8x128xf32>,
      %c5_i32 = arith.constant 5 : i32
      %109 = arith.index_cast %c5_i32 : i32 to index
      %c0_68 = arith.constant 0 : index
      %c0_69 = arith.constant 0 : index
      %110 = vector.load %arg15[%109, %c0_68, %c0_69] : memref<8x8x128xf32, #tpu.memory_space<vmem>>, vector<1x8x128xf32>
      %111 = vector.shape_cast %110 : vector<1x8x128xf32> to vector<8x128xf32>
      %112 = arith.truncf %104 : vector<8x128xf32> to vector<8x128xbf16>
      %cst_70 = arith.constant dense<0.000000e+00> : vector<8x128xf32>
      %113 = tpu.matmul %112, %52, %cst_70 {dimension_numbers = #tpu.dot_dimension_numbers<[1], [0], [0], [1], [0, 0, 1, 1], [], []>} : vector<8x128xbf16>, vector<128x128xbf16>, vector<8x128xf32> -> vector<8x128xf32>
      %114 = arith.addf %111, %113 : vector<8x128xf32>
      %115 = math.tanh %114 : vector<8x128xf32>
      %116 = arith.index_cast %c5_i32 : i32 to index
      %c0_71 = arith.constant 0 : index
      %c0_72 = arith.constant 0 : index
      %117 = vector.load %arg16[%116, %c0_71, %c0_72] : memref<8x8x128xf32, #tpu.memory_space<vmem>>, vector<1x8x128xf32>
      %118 = vector.shape_cast %117 : vector<1x8x128xf32> to vector<8x128xf32>
      %119 = vector.shape_cast %115 : vector<8x128xf32> to vector<1x8x128xf32>
      tpu.vector_store %arg16[%116, %c0_71, %c0_72], %119 {strides = array<i32>} : memref<8x8x128xf32, #tpu.memory_space<vmem>>, vector<1x8x128xf32>,
      %c6_i32 = arith.constant 6 : i32
      %120 = arith.index_cast %c6_i32 : i32 to index
      %c0_73 = arith.constant 0 : index
      %c0_74 = arith.constant 0 : index
      %121 = vector.load %arg15[%120, %c0_73, %c0_74] : memref<8x8x128xf32, #tpu.memory_space<vmem>>, vector<1x8x128xf32>
      %122 = vector.shape_cast %121 : vector<1x8x128xf32> to vector<8x128xf32>
      %123 = arith.truncf %115 : vector<8x128xf32> to vector<8x128xbf16>
      %cst_75 = arith.constant dense<0.000000e+00> : vector<8x128xf32>
      %124 = tpu.matmul %123, %52, %cst_75 {dimension_numbers = #tpu.dot_dimension_numbers<[1], [0], [0], [1], [0, 0, 1, 1], [], []>} : vector<8x128xbf16>, vector<128x128xbf16>, vector<8x128xf32> -> vector<8x128xf32>
      %125 = arith.addf %122, %124 : vector<8x128xf32>
      %126 = math.tanh %125 : vector<8x128xf32>
      %127 = arith.index_cast %c6_i32 : i32 to index
      %c0_76 = arith.constant 0 : index
      %c0_77 = arith.constant 0 : index
      %128 = vector.load %arg16[%127, %c0_76, %c0_77] : memref<8x8x128xf32, #tpu.memory_space<vmem>>, vector<1x8x128xf32>
      %129 = vector.shape_cast %128 : vector<1x8x128xf32> to vector<8x128xf32>
      %130 = vector.shape_cast %126 : vector<8x128xf32> to vector<1x8x128xf32>
      tpu.vector_store %arg16[%127, %c0_76, %c0_77], %130 {strides = array<i32>} : memref<8x8x128xf32, #tpu.memory_space<vmem>>, vector<1x8x128xf32>,
      %c7_i32 = arith.constant 7 : i32
      %131 = arith.index_cast %c7_i32 : i32 to index
      %c0_78 = arith.constant 0 : index
      %c0_79 = arith.constant 0 : index
      %132 = vector.load %arg15[%131, %c0_78, %c0_79] : memref<8x8x128xf32, #tpu.memory_space<vmem>>, vector<1x8x128xf32>
      %133 = vector.shape_cast %132 : vector<1x8x128xf32> to vector<8x128xf32>
      %134 = arith.truncf %126 : vector<8x128xf32> to vector<8x128xbf16>
      %cst_80 = arith.constant dense<0.000000e+00> : vector<8x128xf32>
      %135 = tpu.matmul %134, %52, %cst_80 {dimension_numbers = #tpu.dot_dimension_numbers<[1], [0], [0], [1], [0, 0, 1, 1], [], []>} : vector<8x128xbf16>, vector<128x128xbf16>, vector<8x128xf32> -> vector<8x128xf32>
      %136 = arith.addf %133, %135 : vector<8x128xf32>
      %137 = math.tanh %136 : vector<8x128xf32>
      %138 = arith.index_cast %c7_i32 : i32 to index
      %c0_81 = arith.constant 0 : index
      %c0_82 = arith.constant 0 : index
      %139 = vector.load %arg16[%138, %c0_81, %c0_82] : memref<8x8x128xf32, #tpu.memory_space<vmem>>, vector<1x8x128xf32>
      %140 = vector.shape_cast %139 : vector<1x8x128xf32> to vector<8x128xf32>
      %141 = vector.shape_cast %137 : vector<8x128xf32> to vector<1x8x128xf32>
      tpu.vector_store %arg16[%138, %c0_81, %c0_82], %141 {strides = array<i32>} : memref<8x8x128xf32, #tpu.memory_space<vmem>>, vector<1x8x128xf32>,
      %c8_i32 = arith.constant 8 : i32
      %c0_83 = arith.constant 0 : index
      %c0_84 = arith.constant 0 : index
      %142 = vector.load %arg2[%c0_83, %c0_84] : memref<48x128xbf16, #tpu.memory_space<vmem>>, vector<48x128xbf16>
      %c0_85 = arith.constant 0 : index
      %c0_86 = arith.constant 0 : index
      %143 = vector.load %arg9[%c0_85, %c0_86] : memref<128x128xbf16, #tpu.memory_space<vmem>>, vector<128x128xbf16>
      %cst_87 = arith.constant dense<0.000000e+00> : vector<48x128xf32>
      %144 = tpu.matmul %142, %143, %cst_87 {dimension_numbers = #tpu.dot_dimension_numbers<[1], [0], [0], [1], [0, 0, 1, 1], [], []>} : vector<48x128xbf16>, vector<128x128xbf16>, vector<48x128xf32> -> vector<48x128xf32>
      %c0_88 = arith.constant 0 : index
      %c0_89 = arith.constant 0 : index
      %145 = vector.load %arg11[%c0_88, %c0_89] : memref<1x128xf32, #tpu.memory_space<vmem>>, vector<1x128xf32>
      %146 = vector.broadcast %145 : vector<1x128xf32> to vector<48x128xf32>
      %147 = arith.addf %144, %146 : vector<48x128xf32>
      %148 = vector.shape_cast %147 : vector<48x128xf32> to vector<6x8x128xf32>
      %c0_90 = arith.constant 0 : index
      %c0_91 = arith.constant 0 : index
      %c0_92 = arith.constant 0 : index
      %149 = vector.load %arg17[%c0_90, %c0_91, %c0_92] : memref<6x8x128xf32, #tpu.memory_space<vmem>>, vector<6x8x128xf32>
      tpu.vector_store %arg17[%c0_90, %c0_91, %c0_92], %148 {strides = array<i32>} : memref<6x8x128xf32, #tpu.memory_space<vmem>>, vector<6x8x128xf32>,
      %c0_93 = arith.constant 0 : index
      %c0_94 = arith.constant 0 : index
      %150 = vector.load %arg10[%c0_93, %c0_94] : memref<128x128xbf16, #tpu.memory_space<vmem>>, vector<128x128xbf16>
      %cst_95 = arith.constant 0.000000e+00 : f32
      %151 = vector.broadcast %cst_95 : f32 to vector<8x128xf32>
      %c0_i32_96 = arith.constant 0 : i32
      %152 = arith.index_cast %c0_i32_96 : i32 to index
      %c0_97 = arith.constant 0 : index
      %c0_98 = arith.constant 0 : index
      %153 = vector.load %arg17[%152, %c0_97, %c0_98] : memref<6x8x128xf32, #tpu.memory_space<vmem>>, vector<1x8x128xf32>
      %154 = vector.shape_cast %153 : vector<1x8x128xf32> to vector<8x128xf32>
      %155 = arith.truncf %151 : vector<8x128xf32> to vector<8x128xbf16>
      %cst_99 = arith.constant dense<0.000000e+00> : vector<8x128xf32>
      %156 = tpu.matmul %155, %150, %cst_99 {dimension_numbers = #tpu.dot_dimension_numbers<[1], [0], [0], [1], [0, 0, 1, 1], [], []>} : vector<8x128xbf16>, vector<128x128xbf16>, vector<8x128xf32> -> vector<8x128xf32>
      %157 = arith.addf %154, %156 : vector<8x128xf32>
      %158 = math.tanh %157 : vector<8x128xf32>
      %159 = arith.index_cast %c0_i32_96 : i32 to index
      %c0_100 = arith.constant 0 : index
      %c0_101 = arith.constant 0 : index
      %160 = vector.load %arg18[%159, %c0_100, %c0_101] : memref<6x8x128xf32, #tpu.memory_space<vmem>>, vector<1x8x128xf32>
      %161 = vector.shape_cast %160 : vector<1x8x128xf32> to vector<8x128xf32>
      %162 = vector.shape_cast %158 : vector<8x128xf32> to vector<1x8x128xf32>
      tpu.vector_store %arg18[%159, %c0_100, %c0_101], %162 {strides = array<i32>} : memref<6x8x128xf32, #tpu.memory_space<vmem>>, vector<1x8x128xf32>,
      %c1_i32_102 = arith.constant 1 : i32
      %163 = arith.index_cast %c1_i32_102 : i32 to index
      %c0_103 = arith.constant 0 : index
      %c0_104 = arith.constant 0 : index
      %164 = vector.load %arg17[%163, %c0_103, %c0_104] : memref<6x8x128xf32, #tpu.memory_space<vmem>>, vector<1x8x128xf32>
      %165 = vector.shape_cast %164 : vector<1x8x128xf32> to vector<8x128xf32>
      %166 = arith.truncf %158 : vector<8x128xf32> to vector<8x128xbf16>
      %cst_105 = arith.constant dense<0.000000e+00> : vector<8x128xf32>
      %167 = tpu.matmul %166, %150, %cst_105 {dimension_numbers = #tpu.dot_dimension_numbers<[1], [0], [0], [1], [0, 0, 1, 1], [], []>} : vector<8x128xbf16>, vector<128x128xbf16>, vector<8x128xf32> -> vector<8x128xf32>
      %168 = arith.addf %165, %167 : vector<8x128xf32>
      %169 = math.tanh %168 : vector<8x128xf32>
      %170 = arith.index_cast %c1_i32_102 : i32 to index
      %c0_106 = arith.constant 0 : index
      %c0_107 = arith.constant 0 : index
      %171 = vector.load %arg18[%170, %c0_106, %c0_107] : memref<6x8x128xf32, #tpu.memory_space<vmem>>, vector<1x8x128xf32>
      %172 = vector.shape_cast %171 : vector<1x8x128xf32> to vector<8x128xf32>
      %173 = vector.shape_cast %169 : vector<8x128xf32> to vector<1x8x128xf32>
      tpu.vector_store %arg18[%170, %c0_106, %c0_107], %173 {strides = array<i32>} : memref<6x8x128xf32, #tpu.memory_space<vmem>>, vector<1x8x128xf32>,
      %c2_i32_108 = arith.constant 2 : i32
      %174 = arith.index_cast %c2_i32_108 : i32 to index
      %c0_109 = arith.constant 0 : index
      %c0_110 = arith.constant 0 : index
      %175 = vector.load %arg17[%174, %c0_109, %c0_110] : memref<6x8x128xf32, #tpu.memory_space<vmem>>, vector<1x8x128xf32>
      %176 = vector.shape_cast %175 : vector<1x8x128xf32> to vector<8x128xf32>
      %177 = arith.truncf %169 : vector<8x128xf32> to vector<8x128xbf16>
      %cst_111 = arith.constant dense<0.000000e+00> : vector<8x128xf32>
      %178 = tpu.matmul %177, %150, %cst_111 {dimension_numbers = #tpu.dot_dimension_numbers<[1], [0], [0], [1], [0, 0, 1, 1], [], []>} : vector<8x128xbf16>, vector<128x128xbf16>, vector<8x128xf32> -> vector<8x128xf32>
      %179 = arith.addf %176, %178 : vector<8x128xf32>
      %180 = math.tanh %179 : vector<8x128xf32>
      %181 = arith.index_cast %c2_i32_108 : i32 to index
      %c0_112 = arith.constant 0 : index
      %c0_113 = arith.constant 0 : index
      %182 = vector.load %arg18[%181, %c0_112, %c0_113] : memref<6x8x128xf32, #tpu.memory_space<vmem>>, vector<1x8x128xf32>
      %183 = vector.shape_cast %182 : vector<1x8x128xf32> to vector<8x128xf32>
      %184 = vector.shape_cast %180 : vector<8x128xf32> to vector<1x8x128xf32>
      tpu.vector_store %arg18[%181, %c0_112, %c0_113], %184 {strides = array<i32>} : memref<6x8x128xf32, #tpu.memory_space<vmem>>, vector<1x8x128xf32>,
      %c3_i32_114 = arith.constant 3 : i32
      %185 = arith.index_cast %c3_i32_114 : i32 to index
      %c0_115 = arith.constant 0 : index
      %c0_116 = arith.constant 0 : index
      %186 = vector.load %arg17[%185, %c0_115, %c0_116] : memref<6x8x128xf32, #tpu.memory_space<vmem>>, vector<1x8x128xf32>
      %187 = vector.shape_cast %186 : vector<1x8x128xf32> to vector<8x128xf32>
      %188 = arith.truncf %180 : vector<8x128xf32> to vector<8x128xbf16>
      %cst_117 = arith.constant dense<0.000000e+00> : vector<8x128xf32>
      %189 = tpu.matmul %188, %150, %cst_117 {dimension_numbers = #tpu.dot_dimension_numbers<[1], [0], [0], [1], [0, 0, 1, 1], [], []>} : vector<8x128xbf16>, vector<128x128xbf16>, vector<8x128xf32> -> vector<8x128xf32>
      %190 = arith.addf %187, %189 : vector<8x128xf32>
      %191 = math.tanh %190 : vector<8x128xf32>
      %192 = arith.index_cast %c3_i32_114 : i32 to index
      %c0_118 = arith.constant 0 : index
      %c0_119 = arith.constant 0 : index
      %193 = vector.load %arg18[%192, %c0_118, %c0_119] : memref<6x8x128xf32, #tpu.memory_space<vmem>>, vector<1x8x128xf32>
      %194 = vector.shape_cast %193 : vector<1x8x128xf32> to vector<8x128xf32>
      %195 = vector.shape_cast %191 : vector<8x128xf32> to vector<1x8x128xf32>
      tpu.vector_store %arg18[%192, %c0_118, %c0_119], %195 {strides = array<i32>} : memref<6x8x128xf32, #tpu.memory_space<vmem>>, vector<1x8x128xf32>,
      %c4_i32_120 = arith.constant 4 : i32
      %196 = arith.index_cast %c4_i32_120 : i32 to index
      %c0_121 = arith.constant 0 : index
      %c0_122 = arith.constant 0 : index
      %197 = vector.load %arg17[%196, %c0_121, %c0_122] : memref<6x8x128xf32, #tpu.memory_space<vmem>>, vector<1x8x128xf32>
      %198 = vector.shape_cast %197 : vector<1x8x128xf32> to vector<8x128xf32>
      %199 = arith.truncf %191 : vector<8x128xf32> to vector<8x128xbf16>
      %cst_123 = arith.constant dense<0.000000e+00> : vector<8x128xf32>
      %200 = tpu.matmul %199, %150, %cst_123 {dimension_numbers = #tpu.dot_dimension_numbers<[1], [0], [0], [1], [0, 0, 1, 1], [], []>} : vector<8x128xbf16>, vector<128x128xbf16>, vector<8x128xf32> -> vector<8x128xf32>
      %201 = arith.addf %198, %200 : vector<8x128xf32>
      %202 = math.tanh %201 : vector<8x128xf32>
      %203 = arith.index_cast %c4_i32_120 : i32 to index
      %c0_124 = arith.constant 0 : index
      %c0_125 = arith.constant 0 : index
      %204 = vector.load %arg18[%203, %c0_124, %c0_125] : memref<6x8x128xf32, #tpu.memory_space<vmem>>, vector<1x8x128xf32>
      %205 = vector.shape_cast %204 : vector<1x8x128xf32> to vector<8x128xf32>
      %206 = vector.shape_cast %202 : vector<8x128xf32> to vector<1x8x128xf32>
      tpu.vector_store %arg18[%203, %c0_124, %c0_125], %206 {strides = array<i32>} : memref<6x8x128xf32, #tpu.memory_space<vmem>>, vector<1x8x128xf32>,
      %c5_i32_126 = arith.constant 5 : i32
      %207 = arith.index_cast %c5_i32_126 : i32 to index
      %c0_127 = arith.constant 0 : index
      %c0_128 = arith.constant 0 : index
      %208 = vector.load %arg17[%207, %c0_127, %c0_128] : memref<6x8x128xf32, #tpu.memory_space<vmem>>, vector<1x8x128xf32>
      %209 = vector.shape_cast %208 : vector<1x8x128xf32> to vector<8x128xf32>
      %210 = arith.truncf %202 : vector<8x128xf32> to vector<8x128xbf16>
      %cst_129 = arith.constant dense<0.000000e+00> : vector<8x128xf32>
      %211 = tpu.matmul %210, %150, %cst_129 {dimension_numbers = #tpu.dot_dimension_numbers<[1], [0], [0], [1], [0, 0, 1, 1], [], []>} : vector<8x128xbf16>, vector<128x128xbf16>, vector<8x128xf32> -> vector<8x128xf32>
      %212 = arith.addf %209, %211 : vector<8x128xf32>
      %213 = math.tanh %212 : vector<8x128xf32>
      %214 = arith.index_cast %c5_i32_126 : i32 to index
      %c0_130 = arith.constant 0 : index
      %c0_131 = arith.constant 0 : index
      %215 = vector.load %arg18[%214, %c0_130, %c0_131] : memref<6x8x128xf32, #tpu.memory_space<vmem>>, vector<1x8x128xf32>
      %216 = vector.shape_cast %215 : vector<1x8x128xf32> to vector<8x128xf32>
      %217 = vector.shape_cast %213 : vector<8x128xf32> to vector<1x8x128xf32>
      tpu.vector_store %arg18[%214, %c0_130, %c0_131], %217 {strides = array<i32>} : memref<6x8x128xf32, #tpu.memory_space<vmem>>, vector<1x8x128xf32>,
      %c6_i32_132 = arith.constant 6 : i32
      %c0_133 = arith.constant 0 : index
      %c0_134 = arith.constant 0 : index
      %c0_135 = arith.constant 0 : index
      %218 = vector.load %arg18[%c0_133, %c0_134, %c0_135] : memref<6x8x128xf32, #tpu.memory_space<vmem>>, vector<6x8x128xf32>
      %219 = vector.shape_cast %218 : vector<6x8x128xf32> to vector<48x128xf32>
      %220 = arith.truncf %219 : vector<48x128xf32> to vector<48x128xbf16>
      %c0_136 = arith.constant 0 : index
      %c0_137 = arith.constant 0 : index
      %c0_138 = arith.constant 0 : index
      %221 = vector.load %arg16[%c0_136, %c0_137, %c0_138] : memref<8x8x128xf32, #tpu.memory_space<vmem>>, vector<8x8x128xf32>
      %222 = vector.shape_cast %221 : vector<8x8x128xf32> to vector<64x128xf32>
      %223 = arith.truncf %222 : vector<64x128xf32> to vector<64x128xbf16>
      %cst_139 = arith.constant dense<0.000000e+00> : vector<48x64xf32>
      %224 = tpu.matmul %220, %223, %cst_139 {dimension_numbers = #tpu.dot_dimension_numbers<[1], [1], [0], [0], [0, 0, 1, 0], [], []>} : vector<48x128xbf16>, vector<64x128xbf16>, vector<48x64xf32> -> vector<48x64xf32>
      %c0_140 = arith.constant 0 : index
      %c0_141 = arith.constant 0 : index
      %225 = vector.load %arg3[%c0_140, %c0_141] : memref<48x64xf32, #tpu.memory_space<vmem>>, vector<48x64xf32>
      %226 = arith.addf %224, %225 : vector<48x64xf32>
      %cst_142 = arith.constant dense<0xFF800000> : vector<48xf32>
      %227 = vector.multi_reduction <maximumf>, %226, %cst_142 [1] : vector<48x64xf32> to vector<48xf32>
      %228 = vector.shape_cast %227 : vector<48xf32> to vector<48x1xf32>
      %229 = vector.broadcast %228 : vector<48x1xf32> to vector<48x64xf32>
      %230 = arith.subf %226, %229 : vector<48x64xf32>
      %231 = math.exp %230 : vector<48x64xf32>
      %cst_143 = arith.constant dense<0.000000e+00> : vector<48xf32>
      %232 = vector.multi_reduction <add>, %231, %cst_143 [1] : vector<48x64xf32> to vector<48xf32>
      %233 = vector.shape_cast %232 : vector<48xf32> to vector<48x1xf32>
      %234 = tpu.reciprocal %233 {approx = true} : vector<48x1xf32> -> vector<48x1xf32>
      %235 = vector.broadcast %234 : vector<48x1xf32> to vector<48x64xf32>
      %236 = arith.mulf %231, %235 : vector<48x64xf32>
      %237 = arith.truncf %236 : vector<48x64xf32> to vector<48x64xbf16>
      %cst_144 = arith.constant dense<0.000000e+00> : vector<48x128xf32>
      %238 = tpu.matmul %237, %223, %cst_144 {dimension_numbers = #tpu.dot_dimension_numbers<[1], [0], [0], [1], [0, 0, 1, 1], [], []>} : vector<48x64xbf16>, vector<64x128xbf16>, vector<48x128xf32> -> vector<48x128xf32>
      %c0_145 = arith.constant 0 : index
      %c0_146 = arith.constant 0 : index
      %239 = vector.load %arg19[%c0_145, %c0_146] : memref<48x256xbf16, #tpu.memory_space<vmem>>, vector<48x128xbf16>
      tpu.vector_store %arg19[%c0_145, %c0_146], %220 {strides = array<i32>} : memref<48x256xbf16, #tpu.memory_space<vmem>>, vector<48x128xbf16>,
      %240 = arith.truncf %238 : vector<48x128xf32> to vector<48x128xbf16>
      %c0_147 = arith.constant 0 : index
      %c128 = arith.constant 128 : index
      %241 = vector.load %arg19[%c0_147, %c128] : memref<48x256xbf16, #tpu.memory_space<vmem>>, vector<48x128xbf16>
      tpu.vector_store %arg19[%c0_147, %c128], %240 {strides = array<i32>} : memref<48x256xbf16, #tpu.memory_space<vmem>>, vector<48x128xbf16>,
      %cst_148 = arith.constant -1.000000e+30 : f32
      %242 = vector.broadcast %cst_148 : f32 to vector<48x1xf32>
      %c0_149 = arith.constant 0 : index
      %c0_150 = arith.constant 0 : index
      %243 = vector.load %arg20[%c0_149, %c0_150] : memref<48x1xf32, #tpu.memory_space<vmem>>, vector<48x1xf32>
      tpu.vector_store %arg20[%c0_149, %c0_150], %242 {strides = array<i32>} : memref<48x1xf32, #tpu.memory_space<vmem>>, vector<48x1xf32>,
      %cst_151 = arith.constant 0.000000e+00 : f32
      %244 = vector.broadcast %cst_151 : f32 to vector<48x1xf32>
      %c0_152 = arith.constant 0 : index
      %c0_153 = arith.constant 0 : index
      %245 = vector.load %arg21[%c0_152, %c0_153] : memref<48x1xf32, #tpu.memory_space<vmem>>, vector<48x1xf32>
      tpu.vector_store %arg21[%c0_152, %c0_153], %244 {strides = array<i32>} : memref<48x1xf32, #tpu.memory_space<vmem>>, vector<48x1xf32>,
      %cst_154 = arith.constant 0.000000e+00 : f32
      %246 = vector.broadcast %cst_154 : f32 to vector<48x1xf32>
      %c0_155 = arith.constant 0 : index
      %c0_156 = arith.constant 0 : index
      %247 = vector.load %arg22[%c0_155, %c0_156] : memref<48x1xf32, #tpu.memory_space<vmem>>, vector<48x1xf32>
      tpu.vector_store %arg22[%c0_155, %c0_156], %246 {strides = array<i32>} : memref<48x1xf32, #tpu.memory_space<vmem>>, vector<48x1xf32>,
    } else {
    }
    %c0 = arith.constant 0 : index
    %c0_1 = arith.constant 0 : index
    %3 = vector.load %arg19[%c0, %c0_1] : memref<48x256xbf16, #tpu.memory_space<vmem>>, vector<48x256xbf16>
    %c0_2 = arith.constant 0 : index
    %c0_3 = arith.constant 0 : index
    %4 = vector.load %arg12[%c0_2, %c0_3] : memref<256x128xbf16, #tpu.memory_space<vmem>>, vector<256x128xbf16>
    %cst = arith.constant dense<0.000000e+00> : vector<48x128xf32>
    %5 = tpu.matmul %3, %4, %cst {dimension_numbers = #tpu.dot_dimension_numbers<[1], [0], [0], [1], [0, 0, 1, 1], [], []>} : vector<48x256xbf16>, vector<256x128xbf16>, vector<48x128xf32> -> vector<48x128xf32>
    %c0_4 = arith.constant 0 : index
    %c0_5 = arith.constant 0 : index
    %6 = vector.load %arg13[%c0_4, %c0_5] : memref<1x128xf32, #tpu.memory_space<vmem>>, vector<1x128xf32>
    %7 = vector.broadcast %6 : vector<1x128xf32> to vector<48x128xf32>
    %8 = arith.addf %5, %7 : vector<48x128xf32>
    %cst_6 = arith.constant dense<0xFF800000> : vector<48xf32>
    %9 = vector.multi_reduction <maximumf>, %8, %cst_6 [1] : vector<48x128xf32> to vector<48xf32>
    %10 = vector.shape_cast %9 : vector<48xf32> to vector<48x1xf32>
    %c0_7 = arith.constant 0 : index
    %c0_8 = arith.constant 0 : index
    %11 = vector.load %arg20[%c0_7, %c0_8] : memref<48x1xf32, #tpu.memory_space<vmem>>, vector<48x1xf32>
    %12 = arith.maximumf %11, %10 : vector<48x1xf32>
    %c0_9 = arith.constant 0 : index
    %c0_10 = arith.constant 0 : index
    %13 = vector.load %arg21[%c0_9, %c0_10] : memref<48x1xf32, #tpu.memory_space<vmem>>, vector<48x1xf32>
    %14 = arith.subf %11, %12 : vector<48x1xf32>
    %15 = math.exp %14 : vector<48x1xf32>
    %16 = arith.mulf %13, %15 : vector<48x1xf32>
    %17 = vector.broadcast %12 : vector<48x1xf32> to vector<48x128xf32>
    %18 = arith.subf %8, %17 : vector<48x128xf32>
    %19 = math.exp %18 : vector<48x128xf32>
    %cst_11 = arith.constant dense<0.000000e+00> : vector<48xf32>
    %20 = vector.multi_reduction <add>, %19, %cst_11 [1] : vector<48x128xf32> to vector<48xf32>
    %21 = vector.shape_cast %20 : vector<48xf32> to vector<48x1xf32>
    %22 = arith.addf %16, %21 : vector<48x1xf32>
    %c0_12 = arith.constant 0 : index
    %c0_13 = arith.constant 0 : index
    %23 = vector.load %arg21[%c0_12, %c0_13] : memref<48x1xf32, #tpu.memory_space<vmem>>, vector<48x1xf32>
    tpu.vector_store %arg21[%c0_12, %c0_13], %22 {strides = array<i32>} : memref<48x1xf32, #tpu.memory_space<vmem>>, vector<48x1xf32>,
    %c0_14 = arith.constant 0 : index
    %c0_15 = arith.constant 0 : index
    %24 = vector.load %arg20[%c0_14, %c0_15] : memref<48x1xf32, #tpu.memory_space<vmem>>, vector<48x1xf32>
    tpu.vector_store %arg20[%c0_14, %c0_15], %12 {strides = array<i32>} : memref<48x1xf32, #tpu.memory_space<vmem>>, vector<48x1xf32>,
    %c128_i32 = arith.constant 128 : i32
    %25 = arith.muli %arg0, %c128_i32 : i32
    %26 = tpu.iota {dimensions = array<i32: 1>} : vector<48x128xi32>
    %27 = vector.broadcast %25 : i32 to vector<48x128xi32>
    %28 = arith.addi %27, %26 : vector<48x128xi32>
    %c0_16 = arith.constant 0 : index
    %c0_17 = arith.constant 0 : index
    %29 = vector.load %arg22[%c0_16, %c0_17] : memref<48x1xf32, #tpu.memory_space<vmem>>, vector<48x1xf32>
    %c0_18 = arith.constant 0 : index
    %c0_19 = arith.constant 0 : index
    %30 = vector.load %arg4[%c0_18, %c0_19] : memref<48x1xi32, #tpu.memory_space<vmem>>, vector<48x1xi32>
    %31 = vector.broadcast %30 : vector<48x1xi32> to vector<48x128xi32>
    %32 = arith.cmpi eq, %28, %31 : vector<48x128xi32>
    %cst_20 = arith.constant 0.000000e+00 : f32
    %33 = vector.broadcast %cst_20 : f32 to vector<48x128xf32>
    %34 = arith.select %32, %8, %33 : vector<48x128xi1>, vector<48x128xf32>
    %cst_21 = arith.constant dense<0.000000e+00> : vector<48xf32>
    %35 = vector.multi_reduction <add>, %34, %cst_21 [1] : vector<48x128xf32> to vector<48xf32>
    %36 = vector.shape_cast %35 : vector<48xf32> to vector<48x1xf32>
    %37 = arith.addf %29, %36 : vector<48x1xf32>
    %c0_22 = arith.constant 0 : index
    %c0_23 = arith.constant 0 : index
    %38 = vector.load %arg22[%c0_22, %c0_23] : memref<48x1xf32, #tpu.memory_space<vmem>>, vector<48x1xf32>
    tpu.vector_store %arg22[%c0_22, %c0_23], %37 {strides = array<i32>} : memref<48x1xf32, #tpu.memory_space<vmem>>, vector<48x1xf32>,
    %c1_i32 = arith.constant 1 : i32
    %39 = arith.cmpi eq, %arg0, %c1_i32 : i32
    %40 = arith.extui %39 : i1 to i32
    %c0_i32_24 = arith.constant 0 : i32
    %41 = arith.cmpi ne, %40, %c0_i32_24 : i32
    scf.if %41 {
      %c0_25 = arith.constant 0 : index
      %c0_26 = arith.constant 0 : index
      %42 = vector.load %arg20[%c0_25, %c0_26] : memref<48x1xf32, #tpu.memory_space<vmem>>, vector<48x1xf32>
      %c0_27 = arith.constant 0 : index
      %c0_28 = arith.constant 0 : index
      %43 = vector.load %arg21[%c0_27, %c0_28] : memref<48x1xf32, #tpu.memory_space<vmem>>, vector<48x1xf32>
      %cst_29 = arith.constant 1.000000e-30 : f32
      %44 = vector.broadcast %cst_29 : f32 to vector<48x1xf32>
      %45 = arith.maximumf %43, %44 : vector<48x1xf32>
      %46 = math.log %45 : vector<48x1xf32>
      %47 = arith.addf %42, %46 : vector<48x1xf32>
      %c0_30 = arith.constant 0 : index
      %c0_31 = arith.constant 0 : index
      %48 = vector.load %arg22[%c0_30, %c0_31] : memref<48x1xf32, #tpu.memory_space<vmem>>, vector<48x1xf32>
      %49 = arith.subf %47, %48 : vector<48x1xf32>
      %c0_32 = arith.constant 0 : index
      %c0_33 = arith.constant 0 : index
      %50 = vector.load %arg5[%c0_32, %c0_33] : memref<48x1xf32, #tpu.memory_space<vmem>>, vector<48x1xf32>
      %51 = arith.mulf %49, %50 : vector<48x1xf32>
      %cst_34 = arith.constant dense<0.000000e+00> : vector<1xf32>
      %52 = vector.multi_reduction <add>, %51, %cst_34 [0] : vector<48x1xf32> to vector<1xf32>
      %53 = vector.shape_cast %52 : vector<1xf32> to vector<1x1xf32>
      %c0_35 = arith.constant 0 : index
      %c0_36 = arith.constant 0 : index
      %54 = vector.load %arg5[%c0_35, %c0_36] : memref<48x1xf32, #tpu.memory_space<vmem>>, vector<48x1xf32>
      %cst_37 = arith.constant dense<0.000000e+00> : vector<1xf32>
      %55 = vector.multi_reduction <add>, %54, %cst_37 [0] : vector<48x1xf32> to vector<1xf32>
      %56 = vector.shape_cast %55 : vector<1xf32> to vector<1x1xf32>
      %cst_38 = arith.constant 1.000000e+00 : f32
      %57 = vector.broadcast %cst_38 : f32 to vector<1x1xf32>
      %58 = arith.maximumf %56, %57 : vector<1x1xf32>
      %59 = arith.divf %53, %58 : vector<1x1xf32>
      %c0_39 = arith.constant 0 : index
      %c0_40 = arith.constant 0 : index
      %60 = vector.load %arg14[%c0_39, %c0_40] : memref<1x1xf32, #tpu.memory_space<vmem>>, vector<1x1xf32>
      tpu.vector_store %arg14[%c0_39, %c0_40], %59 {strides = array<i32>} : memref<1x1xf32, #tpu.memory_space<vmem>>, vector<1x1xf32>,
    } else {
    }
    return
  }
  func.func @transform_0(%arg0: i32) -> (i32, i32) {
    %c0_i32 = arith.constant 0 : i32
    %c0_i32_0 = arith.constant 0 : i32
    %c0_i32_1 = arith.constant 0 : i32
    return %c0_i32, %c0_i32_0 : i32, i32
  }
  func.func @transform_1(%arg0: i32) -> (i32, i32) {
    %c0_i32 = arith.constant 0 : i32
    %c0_i32_0 = arith.constant 0 : i32
    %c0_i32_1 = arith.constant 0 : i32
    return %c0_i32, %c0_i32_0 : i32, i32
  }
  func.func @transform_2(%arg0: i32) -> (i32, i32) {
    %c0_i32 = arith.constant 0 : i32
    %c0_i32_0 = arith.constant 0 : i32
    %c0_i32_1 = arith.constant 0 : i32
    return %c0_i32, %c0_i32_0 : i32, i32
  }
  func.func @transform_3(%arg0: i32) -> (i32, i32) {
    %c0_i32 = arith.constant 0 : i32
    %c0_i32_0 = arith.constant 0 : i32
    %c0_i32_1 = arith.constant 0 : i32
    return %c0_i32, %c0_i32_0 : i32, i32
  }
  func.func @transform_4(%arg0: i32) -> (i32, i32) {
    %c0_i32 = arith.constant 0 : i32
    %c0_i32_0 = arith.constant 0 : i32
    %c0_i32_1 = arith.constant 0 : i32
    return %c0_i32, %c0_i32_0 : i32, i32
  }
  func.func @transform_5(%arg0: i32) -> (i32, i32) {
    %c0_i32 = arith.constant 0 : i32
    %c0_i32_0 = arith.constant 0 : i32
    %c0_i32_1 = arith.constant 0 : i32
    return %c0_i32, %c0_i32_0 : i32, i32
  }
  func.func @transform_6(%arg0: i32) -> (i32, i32) {
    %c0_i32 = arith.constant 0 : i32
    %c0_i32_0 = arith.constant 0 : i32
    %c0_i32_1 = arith.constant 0 : i32
    return %c0_i32, %c0_i32_0 : i32, i32
  }
  func.func @transform_7(%arg0: i32) -> (i32, i32) {
    %c0_i32 = arith.constant 0 : i32
    %c0_i32_0 = arith.constant 0 : i32
    %c0_i32_1 = arith.constant 0 : i32
    return %c0_i32, %c0_i32_0 : i32, i32
  }
  func.func @transform_8(%arg0: i32) -> (i32, i32) {
    %c0_i32 = arith.constant 0 : i32
    %c0_i32_0 = arith.constant 0 : i32
    %c0_i32_1 = arith.constant 0 : i32
    return %c0_i32, %c0_i32_0 : i32, i32
  }
  func.func @transform_9(%arg0: i32) -> (i32, i32) {
    %c0_i32 = arith.constant 0 : i32
    %c0_i32_0 = arith.constant 0 : i32
    %c0_i32_1 = arith.constant 0 : i32
    return %c0_i32, %c0_i32_0 : i32, i32
  }
  func.func @transform_10(%arg0: i32) -> (i32, i32) {
    %c0_i32 = arith.constant 0 : i32
    %c0_i32_0 = arith.constant 0 : i32
    %c0_i32_1 = arith.constant 0 : i32
    return %c0_i32, %c0_i32_0 : i32, i32
  }
  func.func @transform_11(%arg0: i32) -> (i32, i32) {
    %c0_i32 = arith.constant 0 : i32
    %c0_i32_0 = arith.constant 0 : i32
    return %c0_i32, %arg0 : i32, i32
  }
  func.func @transform_12(%arg0: i32) -> (i32, i32) {
    %c0_i32 = arith.constant 0 : i32
    %c0_i32_0 = arith.constant 0 : i32
    return %c0_i32, %arg0 : i32, i32
  }
  func.func @transform_13(%arg0: i32) -> (i32, i32) {
    %c0_i32 = arith.constant 0 : i32
    %c0_i32_0 = arith.constant 0 : i32
    %c0_i32_1 = arith.constant 0 : i32
    return %c0_i32, %c0_i32_0 : i32, i32
  }
}

</mosaic_0001>

<llo_original>
// kernel: seq2seq_forward.1
$region0: #{seq2seq_forward.1}
  #allocation0 [shape = 'u32[]', space=smem, size = 0x4, offset = 0x4, fixed_abs, tag = 'smem constant byte address 0x4 - core index']
  #allocation1 [shape = 'u32[144,128]{1,0:T(1,128)}', space=vmem, size = 0x12000, scoped, tag = 'internal scratch']
  #allocation2 [shape = 'f32[8,8,128]{2,1,0:T(8,128)}', space=vmem, size = 0x8000, scoped, tag = 'scratch operand']
  #allocation3 [shape = 'f32[8,8,128]{2,1,0:T(8,128)}', space=vmem, size = 0x8000, scoped, tag = 'scratch operand']
  #allocation4 [shape = 'f32[6,8,128]{2,1,0:T(8,128)}', space=vmem, size = 0x6000, scoped, tag = 'scratch operand']
  #allocation5 [shape = 'f32[6,8,128]{2,1,0:T(8,128)}', space=vmem, size = 0x6000, scoped, tag = 'scratch operand']
  #allocation6 [shape = 'bf16[48,256]{1,0:T(16,128)(2,1)}', space=vmem, size = 0x6000, scoped, tag = 'scratch operand']
  #allocation7 [shape = 'f32[48,1]{1,0:T(8,128)}', space=vmem, size = 0x6000, scoped, tag = 'scratch operand']
  #allocation8 [shape = 'f32[48,1]{1,0:T(8,128)}', space=vmem, size = 0x6000, scoped, tag = 'scratch operand']
  #allocation9 [shape = 'f32[48,1]{1,0:T(8,128)}', space=vmem, size = 0x6000, scoped, tag = 'scratch operand']
  %s0 = inlined_call_operand.vmem [shape: bf16[64,128], index: 0, kind: input, shape index: {}]
  %s1 = inlined_call_operand.vmem [shape: bf16[48,128], index: 1, kind: input, shape index: {}]
  %s2 = inlined_call_operand.vmem [shape: f32[48,64], index: 2, kind: input, shape index: {}]
  %s3 = inlined_call_operand.vmem [shape: s32[48,1], index: 3, kind: input, shape index: {}]
  %s4 = inlined_call_operand.vmem [shape: f32[48,1], index: 4, kind: input, shape index: {}]
  %s5 = inlined_call_operand.vmem [shape: bf16[128,128], index: 5, kind: input, shape index: {}]
  %s6 = inlined_call_operand.vmem [shape: bf16[128,128], index: 6, kind: input, shape index: {}]
  %s7 = inlined_call_operand.vmem [shape: f32[1,128], index: 7, kind: input, shape index: {}]
  %s8 = inlined_call_operand.vmem [shape: bf16[128,128], index: 8, kind: input, shape index: {}]
  %s9 = inlined_call_operand.vmem [shape: bf16[128,128], index: 9, kind: input, shape index: {}]
  %s10 = inlined_call_operand.vmem [shape: f32[1,128], index: 10, kind: input, shape index: {}]
  %s11 = inlined_call_operand.vmem [shape: bf16[256,256], index: 11, kind: input, shape index: {}]
  %s12 = inlined_call_operand.vmem [shape: f32[1,256], index: 12, kind: input, shape index: {}]
  %s13 = inlined_call_operand.hbm [shape: f32[1,1], index: 13, kind: output, shape index: {}]
  %s14 = sld [smem:[#allocation0]]
  $region134: #{seq2seq_forward.1} parent=0
    _
  %s16 = ssub.s32 1, %s14
  %s17 = scalar_select 0, %s16, %s14
  $region1: #{seq2seq_forward.1} parent=0
    #allocation10 [shape = 'u8[131072]{0}', space=vmem, size = 0x20000, scoped, tag = 'input window, operand 11']
    #allocation11 [shape = 'u8[512]{0}', space=vmem, size = 0x400, scoped, tag = 'output window, operand 0, single buffered']
    #allocation12 [shape = 's32[2]{0}', space=sflag, size = 0x8, scoped, tag = 'scoped memory for seq2seq_forward.1']
    %18 = vsyncpa [#allocation12], 0
    loop: start=0, step=1, limit=4
    $region2: #{seq2seq_forward.1} parent=1 // loop_pre_header
      _
    $region3: #{seq2seq_forward.1} parent=1 // loop_header
      %s20 = sphi 0, %s24
      %p21 = scmp.ge.s32.totalorder %s20, 4
      %s28 = sphi 0, %s28
      %s30 = sphi 0, %s28
      %s31 = sphi 0, %s30
      %s45 = sphi 0, %s31
      %s49 = sphi 0, %s49
      %s51 = sphi 0, %s49
      %s52 = sphi 0, %s51
      %s66 = sphi 0, %s52
      %s70 = sphi 0, %s70
      %s72 = sphi 0, %s70
      %s73 = sphi 0, %s72
      %s87 = sphi 0, %s73
      %s91 = sphi 0, %s91
      %s93 = sphi 0, %s91
      %s94 = sphi 0, %s93
      %s108 = sphi 0, %s94
      %s112 = sphi 0, %s112
      %s114 = sphi 0, %s112
      %s115 = sphi 0, %s114
      %s129 = sphi 0, %s115
      %s133 = sphi 0, %s133
      %s135 = sphi 0, %s133
      %s136 = sphi 0, %s135
      %s150 = sphi 0, %s136
      %s154 = sphi 0, %s154
      %s156 = sphi 0, %s154
      %s157 = sphi 0, %s156
      %s171 = sphi 0, %s157
      %s175 = sphi 0, %s175
      %s177 = sphi 0, %s175
      %s178 = sphi 0, %s177
      %s192 = sphi 0, %s178
      %s196 = sphi 0, %s196
      %s198 = sphi 0, %s196
      %s199 = sphi 0, %s198
      %s213 = sphi 0, %s199
      %s217 = sphi 0, %s217
      %s219 = sphi 0, %s217
      %s220 = sphi 0, %s219
      %s234 = sphi 0, %s220
      %s238 = sphi 0, %s238
      %s240 = sphi 0, %s238
      %s241 = sphi 0, %s240
      %s255 = sphi 0, %s241
      %s261 = sphi 0, %s263
      %s264 = sphi 0, %s261
      %s265 = sphi 0, %s264
      %s281 = sphi 0, %s265
      %s287 = sphi 0, %s289
      %s290 = sphi 0, %s287
      %s291 = sphi 0, %s290
      %s307 = sphi 0, %s291
      %s311 = sphi 0, %s311
      %s313 = sphi 0, %s311
      %s314 = sphi 0, %s313
      %s328 = sphi 0, %s314
    $region4: #{seq2seq_forward.1} parent=1 // loop_header_branch
      %23 = sbr.rel (%p21) target = $region8
    $region5: #{seq2seq_forward.1} parent=1 // loop_body
      %s25 = ssub.s32 %s20, 1
      %s26 = ssub.s32 %s20, 2
      %s27 = sadd.s32 %s20, 1
      %s29 = sadd.s32 %s28, 1
      %p32 = scmp.eq.s32.totalorder %s20, 1
      %p33 = scmp.ne.s32.totalorder %s28, %s30
      %p34 = scmp.eq.s32.totalorder %s20, 0
      %p35 = por %p33, %p34
      %p36 = scmp.ne.s32.totalorder %s28, %s30
      %p37 = scmp.eq.s32.totalorder %s25, 1
      %p38 = por %p36, %p37
      %p39 = scmp.ne.s32.totalorder %s30, %s31
      %p40 = scmp.eq.s32.totalorder %s25, 0
      %p41 = por %p39, %p40
      %p42 = scmp.ne.s32.totalorder %s30, %s31
      %p43 = scmp.eq.s32.totalorder %s26, 1
      %p44 = por %p42, %p43
      %p46 = scmp.ne.s32.totalorder %s31, %s45
      %p47 = scmp.eq.s32.totalorder %s26, 0
      %p48 = por %p46, %p47
      %s50 = sadd.s32 %s49, 1
      %p53 = scmp.eq.s32.totalorder %s20, 1
      %p54 = scmp.ne.s32.totalorder %s49, %s51
      %p55 = scmp.eq.s32.totalorder %s20, 0
      %p56 = por %p54, %p55
      %p57 = scmp.ne.s32.totalorder %s49, %s51
      %p58 = scmp.eq.s32.totalorder %s25, 1
      %p59 = por %p57, %p58
      %p60 = scmp.ne.s32.totalorder %s51, %s52
      %p61 = scmp.eq.s32.totalorder %s25, 0
      %p62 = por %p60, %p61
      %p63 = scmp.ne.s32.totalorder %s51, %s52
      %p64 = scmp.eq.s32.totalorder %s26, 1
      %p65 = por %p63, %p64
      %p67 = scmp.ne.s32.totalorder %s52, %s66
      %p68 = scmp.eq.s32.totalorder %s26, 0
      %p69 = por %p67, %p68
      %s71 = sadd.s32 %s70, 1
      %p74 = scmp.eq.s32.totalorder %s20, 1
      %p75 = scmp.ne.s32.totalorder %s70, %s72
      %p76 = scmp.eq.s32.totalorder %s20, 0
      %p77 = por %p75, %p76
      %p78 = scmp.ne.s32.totalorder %s70, %s72
      %p79 = scmp.eq.s32.totalorder %s25, 1
      %p80 = por %p78, %p79
      %p81 = scmp.ne.s32.totalorder %s72, %s73
      %p82 = scmp.eq.s32.totalorder %s25, 0
      %p83 = por %p81, %p82
      %p84 = scmp.ne.s32.totalorder %s72, %s73
      %p85 = scmp.eq.s32.totalorder %s26, 1
      %p86 = por %p84, %p85
      %p88 = scmp.ne.s32.totalorder %s73, %s87
      %p89 = scmp.eq.s32.totalorder %s26, 0
      %p90 = por %p88, %p89
      %s92 = sadd.s32 %s91, 1
      %p95 = scmp.eq.s32.totalorder %s20, 1
      %p96 = scmp.ne.s32.totalorder %s91, %s93
      %p97 = scmp.eq.s32.totalorder %s20, 0
      %p98 = por %p96, %p97
      %p99 = scmp.ne.s32.totalorder %s91, %s93
      %p100 = scmp.eq.s32.totalorder %s25, 1
      %p101 = por %p99, %p100
      %p102 = scmp.ne.s32.totalorder %s93, %s94
      %p103 = scmp.eq.s32.totalorder %s25, 0
      %p104 = por %p102, %p103
      %p105 = scmp.ne.s32.totalorder %s93, %s94
      %p106 = scmp.eq.s32.totalorder %s26, 1
      %p107 = por %p105, %p106
      %p109 = scmp.ne.s32.totalorder %s94, %s108
      %p110 = scmp.eq.s32.totalorder %s26, 0
      %p111 = por %p109, %p110
      %s113 = sadd.s32 %s112, 1
      %p116 = scmp.eq.s32.totalorder %s20, 1
      %p117 = scmp.ne.s32.totalorder %s112, %s114
      %p118 = scmp.eq.s32.totalorder %s20, 0
      %p119 = por %p117, %p118
      %p120 = scmp.ne.s32.totalorder %s112, %s114
      %p121 = scmp.eq.s32.totalorder %s25, 1
      %p122 = por %p120, %p121
      %p123 = scmp.ne.s32.totalorder %s114, %s115
      %p124 = scmp.eq.s32.totalorder %s25, 0
      %p125 = por %p123, %p124
      %p126 = scmp.ne.s32.totalorder %s114, %s115
      %p127 = scmp.eq.s32.totalorder %s26, 1
      %p128 = por %p126, %p127
      %p130 = scmp.ne.s32.totalorder %s115, %s129
      %p131 = scmp.eq.s32.totalorder %s26, 0
      %p132 = por %p130, %p131
      %s134 = sadd.s32 %s133, 1
      %p137 = scmp.eq.s32.totalorder %s20, 1
      %p138 = scmp.ne.s32.totalorder %s133, %s135
      %p139 = scmp.eq.s32.totalorder %s20, 0
      %p140 = por %p138, %p139
      %p141 = scmp.ne.s32.totalorder %s133, %s135
      %p142 = scmp.eq.s32.totalorder %s25, 1
      %p143 = por %p141, %p142
      %p144 = scmp.ne.s32.totalorder %s135, %s136
      %p145 = scmp.eq.s32.totalorder %s25, 0
      %p146 = por %p144, %p145
      %p147 = scmp.ne.s32.totalorder %s135, %s136
      %p148 = scmp.eq.s32.totalorder %s26, 1
      %p149 = por %p147, %p148
      %p151 = scmp.ne.s32.totalorder %s136, %s150
      %p152 = scmp.eq.s32.totalorder %s26, 0
      %p153 = por %p151, %p152
      %s155 = sadd.s32 %s154, 1
      %p158 = scmp.eq.s32.totalorder %s20, 1
      %p159 = scmp.ne.s32.totalorder %s154, %s156
      %p160 = scmp.eq.s32.totalorder %s20, 0
      %p161 = por %p159, %p160
      %p162 = scmp.ne.s32.totalorder %s154, %s156
      %p163 = scmp.eq.s32.totalorder %s25, 1
      %p164 = por %p162, %p163
      %p165 = scmp.ne.s32.totalorder %s156, %s157
      %p166 = scmp.eq.s32.totalorder %s25, 0
      %p167 = por %p165, %p166
      %p168 = scmp.ne.s32.totalorder %s156, %s157
      %p169 = scmp.eq.s32.totalorder %s26, 1
      %p170 = por %p168, %p169
      %p172 = scmp.ne.s32.totalorder %s157, %s171
      %p173 = scmp.eq.s32.totalorder %s26, 0
      %p174 = por %p172, %p173
      %s176 = sadd.s32 %s175, 1
      %p179 = scmp.eq.s32.totalorder %s20, 1
      %p180 = scmp.ne.s32.totalorder %s175, %s177
      %p181 = scmp.eq.s32.totalorder %s20, 0
      %p182 = por %p180, %p181
      %p183 = scmp.ne.s32.totalorder %s175, %s177
      %p184 = scmp.eq.s32.totalorder %s25, 1
      %p185 = por %p183, %p184
      %p186 = scmp.ne.s32.totalorder %s177, %s178
      %p187 = scmp.eq.s32.totalorder %s25, 0
      %p188 = por %p186, %p187
      %p189 = scmp.ne.s32.totalorder %s177, %s178
      %p190 = scmp.eq.s32.totalorder %s26, 1
      %p191 = por %p189, %p190
      %p193 = scmp.ne.s32.totalorder %s178, %s192
      %p194 = scmp.eq.s32.totalorder %s26, 0
      %p195 = por %p193, %p194
      %s197 = sadd.s32 %s196, 1
      %p200 = scmp.eq.s32.totalorder %s20, 1
      %p201 = scmp.ne.s32.totalorder %s196, %s198
      %p202 = scmp.eq.s32.totalorder %s20, 0
      %p203 = por %p201, %p202
      %p204 = scmp.ne.s32.totalorder %s196, %s198
      %p205 = scmp.eq.s32.totalorder %s25, 1
      %p206 = por %p204, %p205
      %p207 = scmp.ne.s32.totalorder %s198, %s199
      %p208 = scmp.eq.s32.totalorder %s25, 0
      %p209 = por %p207, %p208
      %p210 = scmp.ne.s32.totalorder %s198, %s199
      %p211 = scmp.eq.s32.totalorder %s26, 1
      %p212 = por %p210, %p211
      %p214 = scmp.ne.s32.totalorder %s199, %s213
      %p215 = scmp.eq.s32.totalorder %s26, 0
      %p216 = por %p214, %p215
      %s218 = sadd.s32 %s217, 1
      %p221 = scmp.eq.s32.totalorder %s20, 1
      %p222 = scmp.ne.s32.totalorder %s217, %s219
      %p223 = scmp.eq.s32.totalorder %s20, 0
      %p224 = por %p222, %p223
      %p225 = scmp.ne.s32.totalorder %s217, %s219
      %p226 = scmp.eq.s32.totalorder %s25, 1
      %p227 = por %p225, %p226
      %p228 = scmp.ne.s32.totalorder %s219, %s220
      %p229 = scmp.eq.s32.totalorder %s25, 0
      %p230 = por %p228, %p229
      %p231 = scmp.ne.s32.totalorder %s219, %s220
      %p232 = scmp.eq.s32.totalorder %s26, 1
      %p233 = por %p231, %p232
      %p235 = scmp.ne.s32.totalorder %s220, %s234
      %p236 = scmp.eq.s32.totalorder %s26, 0
      %p237 = por %p235, %p236
      %s239 = sadd.s32 %s238, 1
      %p242 = scmp.eq.s32.totalorder %s20, 1
      %p243 = scmp.ne.s32.totalorder %s238, %s240
      %p244 = scmp.eq.s32.totalorder %s20, 0
      %p245 = por %p243, %p244
      %p246 = scmp.ne.s32.totalorder %s238, %s240
      %p247 = scmp.eq.s32.totalorder %s25, 1
      %p248 = por %p246, %p247
      %p249 = scmp.ne.s32.totalorder %s240, %s241
      %p250 = scmp.eq.s32.totalorder %s25, 0
      %p251 = por %p249, %p250
      %p252 = scmp.ne.s32.totalorder %s240, %s241
      %p253 = scmp.eq.s32.totalorder %s26, 1
      %p254 = por %p252, %p253
      %p256 = scmp.ne.s32.totalorder %s241, %s255
      %p257 = scmp.eq.s32.totalorder %s26, 0
      %p258 = por %p256, %p257
      %s259 = ssub.s32 %s20, %s27
      %p260 = scmp.eq.s32.totalorder %s259, 0
      %s262 = sadd.s32 %s261, 1
      %s263 = scalar_select %p260, %s261, %s262
      %p266 = pneg %p260
      %p267 = scmp.eq.s32.totalorder %s20, 1
      %p268 = por %p266, %p267
      %p269 = scmp.ne.s32.totalorder %s261, %s264
      %p270 = scmp.eq.s32.totalorder %s20, 0
      %p271 = por %p269, %p270
      %p272 = scmp.ne.s32.totalorder %s261, %s264
      %p273 = scmp.eq.s32.totalorder %s25, 1
      %p274 = por %p272, %p273
      %p275 = scmp.ne.s32.totalorder %s264, %s265
      %p276 = scmp.eq.s32.totalorder %s25, 0
      %p277 = por %p275, %p276
      %p278 = scmp.ne.s32.totalorder %s264, %s265
      %p279 = scmp.eq.s32.totalorder %s26, 1
      %p280 = por %p278, %p279
      %p282 = scmp.ne.s32.totalorder %s265, %s281
      %p283 = scmp.eq.s32.totalorder %s26, 0
      %p284 = por %p282, %p283
      %s285 = ssub.s32 %s20, %s27
      %p286 = scmp.eq.s32.totalorder %s285, 0
      %s288 = sadd.s32 %s287, 1
      %s289 = scalar_select %p286, %s287, %s288
      %p292 = pneg %p286
      %p293 = scmp.eq.s32.totalorder %s20, 1
      %p294 = por %p292, %p293
      %p295 = scmp.ne.s32.totalorder %s287, %s290
      %p296 = scmp.eq.s32.totalorder %s20, 0
      %p297 = por %p295, %p296
      %p298 = scmp.ne.s32.totalorder %s287, %s290
      %p299 = scmp.eq.s32.totalorder %s25, 1
      %p300 = por %p298, %p299
      %p301 = scmp.ne.s32.totalorder %s290, %s291
      %p302 = scmp.eq.s32.totalorder %s25, 0
      %p303 = por %p301, %p302
      %p304 = scmp.ne.s32.totalorder %s290, %s291
      %p305 = scmp.eq.s32.totalorder %s26, 1
      %p306 = por %p304, %p305
      %p308 = scmp.ne.s32.totalorder %s291, %s307
      %p309 = scmp.eq.s32.totalorder %s26, 0
      %p310 = por %p308, %p309
      %s312 = sadd.s32 %s311, 1
      %p315 = scmp.eq.s32.totalorder %s20, 1
      %p316 = scmp.ne.s32.totalorder %s311, %s313
      %p317 = scmp.eq.s32.totalorder %s20, 0
      %p318 = por %p316, %p317
      %p319 = scmp.ne.s32.totalorder %s311, %s313
      %p320 = scmp.eq.s32.totalorder %s25, 1
      %p321 = por %p319, %p320
      %p322 = scmp.ne.s32.totalorder %s313, %s314
      %p323 = scmp.eq.s32.totalorder %s25, 0
      %p324 = por %p322, %p323
      %p325 = scmp.ne.s32.totalorder %s313, %s314
      %p326 = scmp.eq.s32.totalorder %s26, 1
      %p327 = por %p325, %p326
      %p329 = scmp.ne.s32.totalorder %s314, %s328
      %p330 = scmp.eq.s32.totalorder %s26, 0
      %p331 = por %p329, %p330
      %p332 = scmp.le.s32.totalorder 1, %s20
      %p333 = scmp.lt.s32.totalorder %s20, 3
      %p334 = pnand %p332, %p333
      %p335 = pneg %p334
      // Predicated region
      $region9: #{seq2seq_forward.1} parent=5 // pred_check
        _
      $region10: #{seq2seq_forward.1} parent=5 // pred_check_branch
        %337 = sbr.rel (%p334) target = $region12
      $region11: #{seq2seq_forward.1} parent=5 // pred_region
        %s338 = ssub.s32 %s20, 1
        // Predicated region
        $region13: #{seq2seq_forward.1} parent=11 // pred_check
          %p339 = pneg %p41
        $region14: #{seq2seq_forward.1} parent=11 // pred_check_branch
          %341 = sbr.rel (%p339) target = $region16
        $region15: #{seq2seq_forward.1} parent=11 // pred_region
          _
        $region16: #{seq2seq_forward.1} parent=11 // pred_fallthru
          _
        // Predicated region
        $region17: #{seq2seq_forward.1} parent=11 // pred_check
          %p342 = pneg %p62
        $region18: #{seq2seq_forward.1} parent=11 // pred_check_branch
          %344 = sbr.rel (%p342) target = $region20
        $region19: #{seq2seq_forward.1} parent=11 // pred_region
          _
        $region20: #{seq2seq_forward.1} parent=11 // pred_fallthru
          _
        // Predicated region
        $region21: #{seq2seq_forward.1} parent=11 // pred_check
          %p345 = pneg %p83
        $region22: #{seq2seq_forward.1} parent=11 // pred_check_branch
          %347 = sbr.rel (%p345) target = $region24
        $region23: #{seq2seq_forward.1} parent=11 // pred_region
          _
        $region24: #{seq2seq_forward.1} parent=11 // pred_fallthru
          _
        // Predicated region
        $region25: #{seq2seq_forward.1} parent=11 // pred_check
          %p348 = pneg %p104
        $region26: #{seq2seq_forward.1} parent=11 // pred_check_branch
          %350 = sbr.rel (%p348) target = $region28
        $region27: #{seq2seq_forward.1} parent=11 // pred_region
          _
        $region28: #{seq2seq_forward.1} parent=11 // pred_fallthru
          _
        // Predicated region
        $region29: #{seq2seq_forward.1} parent=11 // pred_check
          %p351 = pneg %p125
        $region30: #{seq2seq_forward.1} parent=11 // pred_check_branch
          %353 = sbr.rel (%p351) target = $region32
        $region31: #{seq2seq_forward.1} parent=11 // pred_region
          _
        $region32: #{seq2seq_forward.1} parent=11 // pred_fallthru
          _
        // Predicated region
        $region33: #{seq2seq_forward.1} parent=11 // pred_check
          %p354 = pneg %p146
        $region34: #{seq2seq_forward.1} parent=11 // pred_check_branch
          %356 = sbr.rel (%p354) target = $region36
        $region35: #{seq2seq_forward.1} parent=11 // pred_region
          _
        $region36: #{seq2seq_forward.1} parent=11 // pred_fallthru
          _
        // Predicated region
        $region37: #{seq2seq_forward.1} parent=11 // pred_check
          %p357 = pneg %p167
        $region38: #{seq2seq_forward.1} parent=11 // pred_check_branch
          %359 = sbr.rel (%p357) target = $region40
        $region39: #{seq2seq_forward.1} parent=11 // pred_region
          _
        $region40: #{seq2seq_forward.1} parent=11 // pred_fallthru
          _
        // Predicated region
        $region41: #{seq2seq_forward.1} parent=11 // pred_check
          %p360 = pneg %p188
        $region42: #{seq2seq_forward.1} parent=11 // pred_check_branch
          %362 = sbr.rel (%p360) target = $region44
        $region43: #{seq2seq_forward.1} parent=11 // pred_region
          _
        $region44: #{seq2seq_forward.1} parent=11 // pred_fallthru
          _
        // Predicated region
        $region45: #{seq2seq_forward.1} parent=11 // pred_check
          %p363 = pneg %p209
        $region46: #{seq2seq_forward.1} parent=11 // pred_check_branch
          %365 = sbr.rel (%p363) target = $region48
        $region47: #{seq2seq_forward.1} parent=11 // pred_region
          _
        $region48: #{seq2seq_forward.1} parent=11 // pred_fallthru
          _
        // Predicated region
        $region49: #{seq2seq_forward.1} parent=11 // pred_check
          %p366 = pneg %p230
        $region50: #{seq2seq_forward.1} parent=11 // pred_check_branch
          %368 = sbr.rel (%p366) target = $region52
        $region51: #{seq2seq_forward.1} parent=11 // pred_region
          _
        $region52: #{seq2seq_forward.1} parent=11 // pred_fallthru
          _
        // Predicated region
        $region53: #{seq2seq_forward.1} parent=11 // pred_check
          %p369 = pneg %p251
        $region54: #{seq2seq_forward.1} parent=11 // pred_check_branch
          %371 = sbr.rel (%p369) target = $region56
        $region55: #{seq2seq_forward.1} parent=11 // pred_region
          _
        $region56: #{seq2seq_forward.1} parent=11 // pred_fallthru
          _
      $region12: #{seq2seq_forward.1} parent=5 // pred_fallthru
        _
      %p372 = scmp.lt.s32.totalorder %s20, 2
      // Predicated region
      $region57: #{seq2seq_forward.1} parent=5 // pred_check
        %p373 = pneg %p372
      $region58: #{seq2seq_forward.1} parent=5 // pred_check_branch
        %375 = sbr.rel (%p373) target = $region60
      $region59: #{seq2seq_forward.1} parent=5 // pred_region
        // Predicated region
        $region61: #{seq2seq_forward.1} parent=59 // pred_check
          %p376 = pneg %p271
        $region62: #{seq2seq_forward.1} parent=59 // pred_check_branch
          %378 = sbr.rel (%p376) target = $region64
        $region63: #{seq2seq_forward.1} parent=59 // pred_region
          %s379 = sand.u32 %s261, 1
          %s380 = sand.u32 %s261, 1
          %s381 = smul.addr %s380, 128
          %s382 = scalar_lea.vmem [#allocation10], %s381
          %s383 = smul.addr %s20, 4
          %s384 = scalar_lea.vmem %s11, %s383
          // Predicated region
          $region65: #{seq2seq_forward.1} parent=63 // pred_check
            _
          $region66: #{seq2seq_forward.1} parent=63 // pred_check_branch
            %386 = sbr.rel (0) target = $region68
          $region67: #{seq2seq_forward.1} parent=63 // pred_region
            // Predicated region
            $region69: #{seq2seq_forward.1} parent=67 // pred_check
              _
            $region70: #{seq2seq_forward.1} parent=67 // pred_check_branch
              %388 = sbr.rel target = $region72
            $region71: #{seq2seq_forward.1} parent=67 // pred_region
              // Predicated region
              $region84: #{seq2seq_forward.1} parent=71 // pred_check
                _
              $region85: #{seq2seq_forward.1} parent=71 // pred_check_branch
                %465 = sbr.rel (0) target = $region87
              $region86: #{seq2seq_forward.1} parent=71 // pred_region
                loop: start=0, step=1, limit=1
                $region88: #{seq2seq_forward.1} parent=86 // loop_pre_header
                  _
                $region89: #{seq2seq_forward.1} parent=86 // loop_header
                  %s467 = sphi 0, %s471
                  %p468 = scmp.ge.s32.totalorder %s467, 1
                  %s472 = sphi %s384, %s384
                  %s473 = sphi %s382, %s382
                $region90: #{seq2seq_forward.1} parent=86 // loop_header_branch
                  %470 = sbr.rel (%p468) target = $region94
                $region91: #{seq2seq_forward.1} parent=86 // loop_body
                  _
                $region92: #{seq2seq_forward.1} parent=86 // loop_footer
                  %s471 = sadd.s32 1, %s467
                $region93: #{seq2seq_forward.1} parent=86 // loop_footer_branch
                  %466 = sbr.rel target = $region89
                $region94: #{seq2seq_forward.1} parent=86 // loop_exit
                  _
                loop: start=0, step=1, limit=1
                $region95: #{seq2seq_forward.1} parent=86 // loop_pre_header
                  _
                $region96: #{seq2seq_forward.1} parent=86 // loop_header
                  %s476 = sphi 0, %s480
                  %p477 = scmp.ge.s32.totalorder %s476, 1
                  %s481 = sphi %s384, %s384
                  %s482 = sphi %s382, %s382
                $region97: #{seq2seq_forward.1} parent=86 // loop_header_branch
                  %479 = sbr.rel (%p477) target = $region101
                $region98: #{seq2seq_forward.1} parent=86 // loop_body
                  %v483 = vld [vmem:[%s481] sm:$0xf]
                  %484 = vst [vmem:[%s482] sm:$0xf] %v483
                  %v485 = vld [vmem:[%s481 + $0x8] sm:$0xf]
                  %486 = vst [vmem:[%s482 + $0x4] sm:$0xf] %v485
                  %v487 = vld [vmem:[%s481 + $0x10] sm:$0xf]
                  %488 = vst [vmem:[%s482 + $0x8] sm:$0xf] %v487
                  %v489 = vld [vmem:[%s481 + $0x18] sm:$0xf]
                  %490 = vst [vmem:[%s482 + $0xc] sm:$0xf] %v489
                  %v491 = vld [vmem:[%s481 + $0x20] sm:$0xf]
                  %492 = vst [vmem:[%s482 + $0x10] sm:$0xf] %v491
                  %v493 = vld [vmem:[%s481 + $0x28] sm:$0xf]
                  %494 = vst [vmem:[%s482 + $0x14] sm:$0xf] %v493
                  %v495 = vld [vmem:[%s481 + $0x30] sm:$0xf]
                  %496 = vst [vmem:[%s482 + $0x18] sm:$0xf] %v495
                  %v497 = vld [vmem:[%s481 + $0x38] sm:$0xf]
                  %498 = vst [vmem:[%s482 + $0x1c] sm:$0xf] %v497
                  %v499 = vld [vmem:[%s481 + $0x40] sm:$0xf]
                  %500 = vst [vmem:[%s482 + $0x20] sm:$0xf] %v499
                  %v501 = vld [vmem:[%s481 + $0x48] sm:$0xf]
                  %502 = vst [vmem:[%s482 + $0x24] sm:$0xf] %v501
                  %v503 = vld [vmem:[%s481 + $0x50] sm:$0xf]
                  %504 = vst [vmem:[%s482 + $0x28] sm:$0xf] %v503
                  %v505 = vld [vmem:[%s481 + $0x58] sm:$0xf]
                  %506 = vst [vmem:[%s482 + $0x2c] sm:$0xf] %v505
                  %v507 = vld [vmem:[%s481 + $0x60] sm:$0xf]
                  %508 = vst [vmem:[%s482 + $0x30] sm:$0xf] %v507
                  %v509 = vld [vmem:[%s481 + $0x68] sm:$0xf]
                  %510 = vst [vmem:[%s482 + $0x34] sm:$0xf] %v509
                  %v511 = vld [vmem:[%s481 + $0x70] sm:$0xf]
                  %512 = vst [vmem:[%s482 + $0x38] sm:$0xf] %v511
                  %v513 = vld [vmem:[%s481 + $0x78] sm:$0xf]
                  %514 = vst [vmem:[%s482 + $0x3c] sm:$0xf] %v513
                  %v515 = vld [vmem:[%s481 + $0x80] sm:$0xf]
                  %516 = vst [vmem:[%s482 + $0x40] sm:$0xf] %v515
                  %v517 = vld [vmem:[%s481 + $0x88] sm:$0xf]
                  %518 = vst [vmem:[%s482 + $0x44] sm:$0xf] %v517
                  %v519 = vld [vmem:[%s481 + $0x90] sm:$0xf]
                  %520 = vst [vmem:[%s482 + $0x48] sm:$0xf] %v519
                  %v521 = vld [vmem:[%s481 + $0x98] sm:$0xf]
                  %522 = vst [vmem:[%s482 + $0x4c] sm:$0xf] %v521
                  %v523 = vld [vmem:[%s481 + $0xa0] sm:$0xf]
                  %524 = vst [vmem:[%s482 + $0x50] sm:$0xf] %v523
                  %v525 = vld [vmem:[%s481 + $0xa8] sm:$0xf]
                  %526 = vst [vmem:[%s482 + $0x54] sm:$0xf] %v525
                  %v527 = vld [vmem:[%s481 + $0xb0] sm:$0xf]
                  %528 = vst [vmem:[%s482 + $0x58] sm:$0xf] %v527
                  %v529 = vld [vmem:[%s481 + $0xb8] sm:$0xf]
                  %530 = vst [vmem:[%s482 + $0x5c] sm:$0xf] %v529
                  %v531 = vld [vmem:[%s481 + $0xc0] sm:$0xf]
                  %532 = vst [vmem:[%s482 + $0x60] sm:$0xf] %v531
                  %v533 = vld [vmem:[%s481 + $0xc8] sm:$0xf]
                  %534 = vst [vmem:[%s482 + $0x64] sm:$0xf] %v533
                  %v535 = vld [vmem:[%s481 + $0xd0] sm:$0xf]
                  %536 = vst [vmem:[%s482 + $0x68] sm:$0xf] %v535
                  %v537 = vld [vmem:[%s481 + $0xd8] sm:$0xf]
                  %538 = vst [vmem:[%s482 + $0x6c] sm:$0xf] %v537
                  %v539 = vld [vmem:[%s481 + $0xe0] sm:$0xf]
                  %540 = vst [vmem:[%s482 + $0x70] sm:$0xf] %v539
                  %v541 = vld [vmem:[%s481 + $0xe8] sm:$0xf]
                  %542 = vst [vmem:[%s482 + $0x74] sm:$0xf] %v541
                  %v543 = vld [vmem:[%s481 + $0xf0] sm:$0xf]
                  %544 = vst [vmem:[%s482 + $0x78] sm:$0xf] %v543
                  %v545 = vld [vmem:[%s481 + $0xf8] sm:$0xf]
                  %546 = vst [vmem:[%s482 + $0x7c] sm:$0xf] %v545
                $region99: #{seq2seq_forward.1} parent=86 // loop_footer
                  %s480 = sadd.s32 1, %s476
                $region100: #{seq2seq_forward.1} parent=86 // loop_footer_branch
                  %475 = sbr.rel target = $region96
                $region101: #{seq2seq_forward.1} parent=86 // loop_exit
                  _
              $region87: #{seq2seq_forward.1} parent=71 // pred_fallthru
                _
            $region72: #{seq2seq_forward.1} parent=67 // pred_fallthru
              _
            // Predicated region
            $region73: #{seq2seq_forward.1} parent=67 // pred_check
              _
            $region74: #{seq2seq_forward.1} parent=67 // pred_check_branch
              %390 = sbr.rel (0) target = $region76
            $region75: #{seq2seq_forward.1} parent=67 // pred_region
              loop: start=0, step=1, limit=1
              $region77: #{seq2seq_forward.1} parent=75 // loop_pre_header
                _
              $region78: #{seq2seq_forward.1} parent=75 // loop_header
                %s393 = sphi 0, %s397
                %p394 = scmp.ge.s32.totalorder %s393, 1
                %s398 = sphi %s384, %s384
                %s399 = sphi %s382, %s382
              $region79: #{seq2seq_forward.1} parent=75 // loop_header_branch
                %396 = sbr.rel (%p394) target = $region83
              $region80: #{seq2seq_forward.1} parent=75 // loop_body
                %v400 = vld [vmem:[%s398] sm:$0xf]
                %401 = vst [vmem:[%s399] sm:$0xf] %v400
                %v402 = vld [vmem:[%s398 + $0x8] sm:$0xf]
                %403 = vst [vmem:[%s399 + $0x4] sm:$0xf] %v402
                %v404 = vld [vmem:[%s398 + $0x10] sm:$0xf]
                %405 = vst [vmem:[%s399 + $0x8] sm:$0xf] %v404
                %v406 = vld [vmem:[%s398 + $0x18] sm:$0xf]
                %407 = vst [vmem:[%s399 + $0xc] sm:$0xf] %v406
                %v408 = vld [vmem:[%s398 + $0x20] sm:$0xf]
                %409 = vst [vmem:[%s399 + $0x10] sm:$0xf] %v408
                %v410 = vld [vmem:[%s398 + $0x28] sm:$0xf]
                %411 = vst [vmem:[%s399 + $0x14] sm:$0xf] %v410
                %v412 = vld [vmem:[%s398 + $0x30] sm:$0xf]
                %413 = vst [vmem:[%s399 + $0x18] sm:$0xf] %v412
                %v414 = vld [vmem:[%s398 + $0x38] sm:$0xf]
                %415 = vst [vmem:[%s399 + $0x1c] sm:$0xf] %v414
                %v416 = vld [vmem:[%s398 + $0x40] sm:$0xf]
                %417 = vst [vmem:[%s399 + $0x20] sm:$0xf] %v416
                %v418 = vld [vmem:[%s398 + $0x48] sm:$0xf]
                %419 = vst [vmem:[%s399 + $0x24] sm:$0xf] %v418
                %v420 = vld [vmem:[%s398 + $0x50] sm:$0xf]
                %421 = vst [vmem:[%s399 + $0x28] sm:$0xf] %v420
                %v422 = vld [vmem:[%s398 + $0x58] sm:$0xf]
                %423 = vst [vmem:[%s399 + $0x2c] sm:$0xf] %v422
                %v424 = vld [vmem:[%s398 + $0x60] sm:$0xf]
                %425 = vst [vmem:[%s399 + $0x30] sm:$0xf] %v424
                %v426 = vld [vmem:[%s398 + $0x68] sm:$0xf]
                %427 = vst [vmem:[%s399 + $0x34] sm:$0xf] %v426
                %v428 = vld [vmem:[%s398 + $0x70] sm:$0xf]
                %429 = vst [vmem:[%s399 + $0x38] sm:$0xf] %v428
                %v430 = vld [vmem:[%s398 + $0x78] sm:$0xf]
                %431 = vst [vmem:[%s399 + $0x3c] sm:$0xf] %v430
                %v432 = vld [vmem:[%s398 + $0x80] sm:$0xf]
                %433 = vst [vmem:[%s399 + $0x40] sm:$0xf] %v432
                %v434 = vld [vmem:[%s398 + $0x88] sm:$0xf]
                %435 = vst [vmem:[%s399 + $0x44] sm:$0xf] %v434
                %v436 = vld [vmem:[%s398 + $0x90] sm:$0xf]
                %437 = vst [vmem:[%s399 + $0x48] sm:$0xf] %v436
                %v438 = vld [vmem:[%s398 + $0x98] sm:$0xf]
                %439 = vst [vmem:[%s399 + $0x4c] sm:$0xf] %v438
                %v440 = vld [vmem:[%s398 + $0xa0] sm:$0xf]
                %441 = vst [vmem:[%s399 + $0x50] sm:$0xf] %v440
                %v442 = vld [vmem:[%s398 + $0xa8] sm:$0xf]
                %443 = vst [vmem:[%s399 + $0x54] sm:$0xf] %v442
                %v444 = vld [vmem:[%s398 + $0xb0] sm:$0xf]
                %445 = vst [vmem:[%s399 + $0x58] sm:$0xf] %v444
                %v446 = vld [vmem:[%s398 + $0xb8] sm:$0xf]
                %447 = vst [vmem:[%s399 + $0x5c] sm:$0xf] %v446
                %v448 = vld [vmem:[%s398 + $0xc0] sm:$0xf]
                %449 = vst [vmem:[%s399 + $0x60] sm:$0xf] %v448
                %v450 = vld [vmem:[%s398 + $0xc8] sm:$0xf]
                %451 = vst [vmem:[%s399 + $0x64] sm:$0xf] %v450
                %v452 = vld [vmem:[%s398 + $0xd0] sm:$0xf]
                %453 = vst [vmem:[%s399 + $0x68] sm:$0xf] %v452
                %v454 = vld [vmem:[%s398 + $0xd8] sm:$0xf]
                %455 = vst [vmem:[%s399 + $0x6c] sm:$0xf] %v454
                %v456 = vld [vmem:[%s398 + $0xe0] sm:$0xf]
                %457 = vst [vmem:[%s399 + $0x70] sm:$0xf] %v456
                %v458 = vld [vmem:[%s398 + $0xe8] sm:$0xf]
                %459 = vst [vmem:[%s399 + $0x74] sm:$0xf] %v458
                %v460 = vld [vmem:[%s398 + $0xf0] sm:$0xf]
                %461 = vst [vmem:[%s399 + $0x78] sm:$0xf] %v460
                %v462 = vld [vmem:[%s398 + $0xf8] sm:$0xf]
                %463 = vst [vmem:[%s399 + $0x7c] sm:$0xf] %v462
              $region81: #{seq2seq_forward.1} parent=75 // loop_footer
                %s397 = sadd.s32 1, %s393
              $region82: #{seq2seq_forward.1} parent=75 // loop_footer_branch
                %392 = sbr.rel target = $region78
              $region83: #{seq2seq_forward.1} parent=75 // loop_exit
                _
            $region76: #{seq2seq_forward.1} parent=67 // pred_fallthru
              _
          $region68: #{seq2seq_forward.1} parent=63 // pred_fallthru
            _
          %547 = vnop
        $region64: #{seq2seq_forward.1} parent=59 // pred_fallthru
          _
        // Predicated region
        $region102: #{seq2seq_forward.1} parent=59 // pred_check
          %p548 = pneg %p297
        $region103: #{seq2seq_forward.1} parent=59 // pred_check_branch
          %550 = sbr.rel (%p548) target = $region105
        $region104: #{seq2seq_forward.1} parent=59 // pred_region
          %p551 = scmp.lt.s32.totalorder %s20, 1
          %s552 = scalar_select %p551, %s20, 1
          %s553 = scalar_lea.vmem %s12, %s552
        $region105: #{seq2seq_forward.1} parent=59 // pred_fallthru
          _
      $region60: #{seq2seq_forward.1} parent=5 // pred_fallthru
        _
      %p554 = scmp.le.s32.totalorder 1, %s20
      %p555 = scmp.lt.s32.totalorder %s20, 3
      %p556 = pnand %p554, %p555
      %p557 = pneg %p556
      // Predicated region
      $region106: #{seq2seq_forward.1} parent=5 // pred_check
        _
      $region107: #{seq2seq_forward.1} parent=5 // pred_check_branch
        %559 = sbr.rel (%p556) target = $region109
      $region108: #{seq2seq_forward.1} parent=5 // pred_region
        %s560 = ssub.s32 %s20, 1
        %s561 = sand.u32 %s264, 1
        %s562 = sand.u32 %s264, 1
        %s563 = smul.addr %s562, 128
        %s564 = scalar_lea.vmem [#allocation10], %s563
        // Predicated region
        $region110: #{seq2seq_forward.1} parent=108 // pred_check
          %p565 = pneg %p277
        $region111: #{seq2seq_forward.1} parent=108 // pred_check_branch
          %567 = sbr.rel (%p565) target = $region113
        $region112: #{seq2seq_forward.1} parent=108 // pred_region
          _
        $region113: #{seq2seq_forward.1} parent=108 // pred_fallthru
          _
        %p568 = pneg %p41
        %p569 = pneg %p38
        %p570 = pneg %p62
        %p571 = pneg %p59
        %p572 = pneg %p83
        %p573 = pneg %p80
        %p574 = pneg %p104
        %p575 = pneg %p101
        %p576 = pneg %p125
        %p577 = pneg %p122
        %p578 = pneg %p146
        %p579 = pneg %p143
        %p580 = pneg %p167
        %p581 = pneg %p164
        %p582 = pneg %p188
        %p583 = pneg %p185
        %p584 = pneg %p209
        %p585 = pneg %p206
        %p586 = pneg %p230
        %p587 = pneg %p227
        %p588 = pneg %p251
        %p589 = pneg %p248
        %s590 = sand.u32 %s264, 1
        %s591 = sand.u32 %s264, 1
        %s592 = smul.addr %s591, 128
        %s593 = scalar_lea.vmem [#allocation10], %s592
        %p594 = pneg %p277
        %p595 = pneg %p274
        %p596 = scmp.lt.s32.totalorder %s25, 1
        %s597 = scalar_select %p596, %s25, 1
        %s598 = scalar_lea.vmem %s12, %s597
        %p599 = pneg %p303
        %p600 = pneg %p300
        %p601 = pneg %p324
        %p602 = pneg %p321
        %p603 = scmp.lt.s32.totalorder %s25, 1
        %s604 = scalar_select %p603, %s25, 1
        %s605 = scalar_lea.vmem %s12, %s604
        %p607 = scmp.eq.s32.totalorder %s25, 0
        // Predicated region
        $region114: #{seq2seq_forward.1} parent=108 // pred_check
          %p608 = pneg %p607
        $region115: #{seq2seq_forward.1} parent=108 // pred_check_branch
          %610 = sbr.rel (%p608) target = $region117
        $region116: #{seq2seq_forward.1} parent=108 // pred_region
          %vm611 = vcmask 0
          %612 = vst.msk [vmem:[#allocation11] sm:$0x1] %vm611, 0.0
          %v613 = vld [vmem:[%s0] sm:$0xf]
          %v614 = vld [vmem:[%s0 + $0x4] sm:$0xf]
          %v615 = vld [vmem:[%s0 + $0x8] sm:$0xf]
          %v616 = vld [vmem:[%s0 + $0xc] sm:$0xf]
          %v617 = vld [vmem:[%s0 + $0x10] sm:$0xf]
          %v618 = vld [vmem:[%s0 + $0x14] sm:$0xf]
          %v619 = vld [vmem:[%s0 + $0x18] sm:$0xf]
          %v620 = vld [vmem:[%s0 + $0x1c] sm:$0xf]
          %v621 = vld [vmem:[%s5] sm:$0xf]
          %v622 = vld [vmem:[%s5 + $0x4] sm:$0xf]
          %v623 = vld [vmem:[%s5 + $0x8] sm:$0xf]
          %v624 = vld [vmem:[%s5 + $0xc] sm:$0xf]
          %v625 = vld [vmem:[%s5 + $0x10] sm:$0xf]
          %v626 = vld [vmem:[%s5 + $0x14] sm:$0xf]
          %v627 = vld [vmem:[%s5 + $0x18] sm:$0xf]
          %v628 = vld [vmem:[%s5 + $0x1c] sm:$0xf]
          %v629 = vld [vmem:[%s5 + $0x20] sm:$0xf]
          %v630 = vld [vmem:[%s5 + $0x24] sm:$0xf]
          %v631 = vld [vmem:[%s5 + $0x28] sm:$0xf]
          %v632 = vld [vmem:[%s5 + $0x2c] sm:$0xf]
          %v633 = vld [vmem:[%s5 + $0x30] sm:$0xf]
          %v634 = vld [vmem:[%s5 + $0x34] sm:$0xf]
          %v635 = vld [vmem:[%s5 + $0x38] sm:$0xf]
          %v636 = vld [vmem:[%s5 + $0x3c] sm:$0xf]
          %v637 = vld [vmem:[%s7] sm:$0x1]
          %v639 = vlaneseq
          %v640 = vshrl.u32 %v639, 7
          %v641 = vsub.s32 0, %v640
          %v642 = vrot.slane %v637, %v641
          %v652 = vunpack.c.l.b16 %v613
          %v653 = vunpack.c.l.b16 %v614
          %v654 = vunpack.c.l.b16 %v615
          %v655 = vunpack.c.l.b16 %v616
          %v656 = vunpack.c.l.b16 %v617
          %v657 = vunpack.c.l.b16 %v618
          %v658 = vunpack.c.l.b16 %v619
          %v659 = vunpack.c.l.b16 %v620
          %v660 = vpack.c.b16 %v653, %v652
          %v661 = vpack.c.b16 %v655, %v654
          %v662 = vpack.c.b16 %v657, %v656
          %v663 = vpack.c.b16 %v659, %v658
          %v684 = vunpack.c.l.b16 %v621
          %v685 = vunpack.c.l.b16 %v622
          %v686 = vunpack.c.l.b16 %v623
          %v687 = vunpack.c.l.b16 %v624
          %v688 = vunpack.c.l.b16 %v625
          %v689 = vunpack.c.l.b16 %v626
          %v690 = vunpack.c.l.b16 %v627
          %v691 = vunpack.c.l.b16 %v628
          %v692 = vunpack.c.l.b16 %v629
          %v693 = vunpack.c.l.b16 %v630
          %v694 = vunpack.c.l.b16 %v631
          %v695 = vunpack.c.l.b16 %v632
          %v696 = vunpack.c.l.b16 %v633
          %v697 = vunpack.c.l.b16 %v634
          %v698 = vunpack.c.l.b16 %v635
          %v699 = vunpack.c.l.b16 %v636
          %v700 = vpack.c.b16 %v685, %v684
          %v701 = vpack.c.b16 %v687, %v686
          %v702 = vpack.c.b16 %v689, %v688
          %v703 = vpack.c.b16 %v691, %v690
          %v704 = vpack.c.b16 %v693, %v692
          %v705 = vpack.c.b16 %v695, %v694
          %v706 = vpack.c.b16 %v697, %v696
          %v707 = vpack.c.b16 %v699, %v698
          %716 = vmatprep.subr.bf16.mxu0 0
          %717 = vmatpush1.bf16.msra.mxu0 %v700
          %718 = vmatprep.subr.bf16.mxu0 0
          %719 = vmatpush1.bf16.msra.mxu0 %v701
          %720 = vmatprep.subr.bf16.mxu0 0
          %721 = vmatpush1.bf16.msra.mxu0 %v702
          %722 = vmatprep.subr.bf16.mxu0 0
          %723 = vmatpush1.bf16.msra.mxu0 %v703
          %724 = vmatprep.subr.bf16.mxu0 0
          %725 = vmatpush1.bf16.msra.mxu0 %v704
          %726 = vmatprep.subr.bf16.mxu0 0
          %727 = vmatpush1.bf16.msra.mxu0 %v705
          %728 = vmatprep.subr.bf16.mxu0 0
          %729 = vmatpush1.bf16.msra.mxu0 %v706
          %730 = vmatprep.subr.bf16.mxu0 0
          %731 = vmatpush1.bf16.msra.mxu0 %v707
          %732 = vmatprep.subr.bf16.mxu0 0
          %733 = vmatpush1.bf16.msra.mxu0 0
          %734 = vmatprep.subr.bf16.mxu0 0
          %735 = vmatpush1.bf16.msra.mxu0 0
          %736 = vmatprep.subr.bf16.mxu0 0
          %737 = vmatpush1.bf16.msra.mxu0 0
          %738 = vmatprep.subr.bf16.mxu0 0
          %739 = vmatpush1.bf16.msra.mxu0 0
          %740 = vmatprep.subr.bf16.mxu0 0
          %741 = vmatpush1.bf16.msra.mxu0 0
          %742 = vmatprep.subr.bf16.mxu0 0
          %743 = vmatpush1.bf16.msra.mxu0 0
          %744 = vmatprep.subr.bf16.mxu0 0
          %745 = vmatpush1.bf16.msra.mxu0 0
          %746 = vmatprep.subr.bf16.mxu0 0
          %747 = vmatpush1.bf16.msra.mxu0 0
          %748 = vmatprep.mubr.bf16.mxu0 0
          %749 = vmatmul.mubr.bf16.gmra.mrb[0].mxu0 %v660
          %v750 = vpop.f32.mrb[0].mxu0
          %v751 = vadd.f32 %v642, %v750
          %v752 = vpop.f32.mrb[0].mxu0
          %v753 = vpop.f32.mrb[0].mxu0
          %v754 = vadd.f32 %v642, %v753
          %v755 = vpop.f32.mrb[0].mxu0
          %756 = vmatprep.mubr.bf16.mxu0 0
          %757 = vmatmul.mubr.bf16.gmra.mrb[0].mxu0 %v661
          %v758 = vpop.f32.mrb[0].mxu0
          %v759 = vadd.f32 %v642, %v758
          %v760 = vpop.f32.mrb[0].mxu0
          %v761 = vpop.f32.mrb[0].mxu0
          %v762 = vadd.f32 %v642, %v761
          %v763 = vpop.f32.mrb[0].mxu0
          %764 = vmatprep.mubr.bf16.mxu0 0
          %765 = vmatmul.mubr.bf16.gmra.mrb[0].mxu0 %v662
          %v766 = vpop.f32.mrb[0].mxu0
          %v767 = vadd.f32 %v642, %v766
          %v768 = vpop.f32.mrb[0].mxu0
          %v769 = vpop.f32.mrb[0].mxu0
          %v770 = vadd.f32 %v642, %v769
          %v771 = vpop.f32.mrb[0].mxu0
          %772 = vmatprep.mubr.bf16.mxu0 0
          %773 = vmatmul.mubr.bf16.gmra.mrb[0].mxu0 %v663
          %v774 = vpop.f32.mrb[0].mxu0
          %v775 = vadd.f32 %v642, %v774
          %v776 = vpop.f32.mrb[0].mxu0
          %v777 = vpop.f32.mrb[0].mxu0
          %v778 = vadd.f32 %v642, %v777
          %v779 = vpop.f32.mrb[0].mxu0
          %780 = vdwg.mxu0
          %781 = vst [vmem:[#allocation2] sm:$0xff] %v751
          %782 = vst [vmem:[#allocation2 + $0x8] sm:$0xff] %v754
          %783 = vst [vmem:[#allocation2 + $0x10] sm:$0xff] %v759
          %784 = vst [vmem:[#allocation2 + $0x18] sm:$0xff] %v762
          %785 = vst [vmem:[#allocation2 + $0x20] sm:$0xff] %v767
          %786 = vst [vmem:[#allocation2 + $0x28] sm:$0xff] %v770
          %787 = vst [vmem:[#allocation2 + $0x30] sm:$0xff] %v775
          %788 = vst [vmem:[#allocation2 + $0x38] sm:$0xff] %v778
          %v789 = vld [vmem:[%s6] sm:$0xf]
          %v790 = vld [vmem:[%s6 + $0x4] sm:$0xf]
          %v791 = vld [vmem:[%s6 + $0x8] sm:$0xf]
          %v792 = vld [vmem:[%s6 + $0xc] sm:$0xf]
          %v793 = vld [vmem:[%s6 + $0x10] sm:$0xf]
          %v794 = vld [vmem:[%s6 + $0x14] sm:$0xf]
          %v795 = vld [vmem:[%s6 + $0x18] sm:$0xf]
          %v796 = vld [vmem:[%s6 + $0x1c] sm:$0xf]
          %v797 = vld [vmem:[%s6 + $0x20] sm:$0xf]
          %v798 = vld [vmem:[%s6 + $0x24] sm:$0xf]
          %v799 = vld [vmem:[%s6 + $0x28] sm:$0xf]
          %v800 = vld [vmem:[%s6 + $0x2c] sm:$0xf]
          %v801 = vld [vmem:[%s6 + $0x30] sm:$0xf]
          %v802 = vld [vmem:[%s6 + $0x34] sm:$0xf]
          %v803 = vld [vmem:[%s6 + $0x38] sm:$0xf]
          %v804 = vld [vmem:[%s6 + $0x3c] sm:$0xf]
          %v805 = vld [vmem:[#allocation2] sm:$0xff]
          %v822 = vunpack.c.l.b16 %v789
          %v823 = vunpack.c.l.b16 %v790
          %v824 = vunpack.c.l.b16 %v791
          %v825 = vunpack.c.l.b16 %v792
          %v826 = vunpack.c.l.b16 %v793
          %v827 = vunpack.c.l.b16 %v794
          %v828 = vunpack.c.l.b16 %v795
          %v829 = vunpack.c.l.b16 %v796
          %v830 = vunpack.c.l.b16 %v797
          %v831 = vunpack.c.l.b16 %v798
          %v832 = vunpack.c.l.b16 %v799
          %v833 = vunpack.c.l.b16 %v800
          %v834 = vunpack.c.l.b16 %v801
          %v835 = vunpack.c.l.b16 %v802
          %v836 = vunpack.c.l.b16 %v803
          %v837 = vunpack.c.l.b16 %v804
          %v838 = vpack.c.b16 %v823, %v822
          %v839 = vpack.c.b16 %v825, %v824
          %v840 = vpack.c.b16 %v827, %v826
          %v841 = vpack.c.b16 %v829, %v828
          %v842 = vpack.c.b16 %v831, %v830
          %v843 = vpack.c.b16 %v833, %v832
          %v844 = vpack.c.b16 %v835, %v834
          %v845 = vpack.c.b16 %v837, %v836
          %854 = vmatprep.subr.bf16.mxu0 0
          %855 = vmatpush1.bf16.msra.mxu0 %v838
          %856 = vmatprep.subr.bf16.mxu0 0
          %857 = vmatpush1.bf16.msra.mxu0 %v839
          %858 = vmatprep.subr.bf16.mxu0 0
          %859 = vmatpush1.bf16.msra.mxu0 %v840
          %860 = vmatprep.subr.bf16.mxu0 0
          %861 = vmatpush1.bf16.msra.mxu0 %v841
          %862 = vmatprep.subr.bf16.mxu0 0
          %863 = vmatpush1.bf16.msra.mxu0 %v842
          %864 = vmatprep.subr.bf16.mxu0 0
          %865 = vmatpush1.bf16.msra.mxu0 %v843
          %866 = vmatprep.subr.bf16.mxu0 0
          %867 = vmatpush1.bf16.msra.mxu0 %v844
          %868 = vmatprep.subr.bf16.mxu0 0
          %869 = vmatpush1.bf16.msra.mxu0 %v845
          %870 = vmatprep.subr.bf16.mxu0 0
          %871 = vmatpush1.bf16.msra.mxu0 0
          %872 = vmatprep.subr.bf16.mxu0 0
          %873 = vmatpush1.bf16.msra.mxu0 0
          %874 = vmatprep.subr.bf16.mxu0 0
          %875 = vmatpush1.bf16.msra.mxu0 0
          %876 = vmatprep.subr.bf16.mxu0 0
          %877 = vmatpush1.bf16.msra.mxu0 0
          %878 = vmatprep.subr.bf16.mxu0 0
          %879 = vmatpush1.bf16.msra.mxu0 0
          %880 = vmatprep.subr.bf16.mxu0 0
          %881 = vmatpush1.bf16.msra.mxu0 0
          %882 = vmatprep.subr.bf16.mxu0 0
          %883 = vmatpush1.bf16.msra.mxu0 0
          %884 = vmatprep.subr.bf16.mxu0 0
          %885 = vmatpush1.bf16.msra.mxu0 0
          %886 = vmatprep.mubr.bf16.mxu0 0
          %887 = vmatmul.mubr.bf16.gmra.mrb[0].mxu0 0
          %v888 = vpop.f32.mrb[0].mxu0
          %v889 = vadd.f32 0.0, %v888
          %v890 = vpop.f32.mrb[0].mxu0
          %v891 = vpop.f32.mrb[0].mxu0
          %v892 = vpop.f32.mrb[0].mxu0
          %893 = vdwg.mxu0
          %v894 = vadd.f32 %v805, %v889
          %v895 = vtanh.pop %v894
          %896 = vst [vmem:[#allocation3] sm:$0xff] %v895
          %s897 = scalar_lea.vmem [#allocation2], 8
          %v898 = vld [vmem:[%s897] sm:$0xff]
          %v899 = vpack.c.bf16 %v895, %v895
          %900 = vmatprep.subr.bf16.mxu0 0
          %901 = vmatpush1.bf16.msra.mxu0 %v838
          %902 = vmatprep.subr.bf16.mxu0 0
          %903 = vmatpush1.bf16.msra.mxu0 %v839
          %904 = vmatprep.subr.bf16.mxu0 0
          %905 = vmatpush1.bf16.msra.mxu0 %v840
          %906 = vmatprep.subr.bf16.mxu0 0
          %907 = vmatpush1.bf16.msra.mxu0 %v841
          %908 = vmatprep.subr.bf16.mxu0 0
          %909 = vmatpush1.bf16.msra.mxu0 %v842
          %910 = vmatprep.subr.bf16.mxu0 0
          %911 = vmatpush1.bf16.msra.mxu0 %v843
          %912 = vmatprep.subr.bf16.mxu0 0
          %913 = vmatpush1.bf16.msra.mxu0 %v844
          %914 = vmatprep.subr.bf16.mxu0 0
          %915 = vmatpush1.bf16.msra.mxu0 %v845
          %916 = vmatprep.subr.bf16.mxu0 0
          %917 = vmatpush1.bf16.msra.mxu0 0
          %918 = vmatprep.subr.bf16.mxu0 0
          %919 = vmatpush1.bf16.msra.mxu0 0
          %920 = vmatprep.subr.bf16.mxu0 0
          %921 = vmatpush1.bf16.msra.mxu0 0
          %922 = vmatprep.subr.bf16.mxu0 0
          %923 = vmatpush1.bf16.msra.mxu0 0
          %924 = vmatprep.subr.bf16.mxu0 0
          %925 = vmatpush1.bf16.msra.mxu0 0
          %926 = vmatprep.subr.bf16.mxu0 0
          %927 = vmatpush1.bf16.msra.mxu0 0
          %928 = vmatprep.subr.bf16.mxu0 0
          %929 = vmatpush1.bf16.msra.mxu0 0
          %930 = vmatprep.subr.bf16.mxu0 0
          %931 = vmatpush1.bf16.msra.mxu0 0
          %932 = vmatprep.mubr.bf16.mxu0 0
          %933 = vmatmul.mubr.bf16.gmra.mrb[0].mxu0 %v899
          %v934 = vpop.f32.mrb[0].mxu0
          %v935 = vadd.f32 0.0, %v934
          %v936 = vpop.f32.mrb[0].mxu0
          %v937 = vpop.f32.mrb[0].mxu0
          %v938 = vpop.f32.mrb[0].mxu0
          %939 = vdwg.mxu0
          %v940 = vadd.f32 %v898, %v935
          %v941 = vtanh.pop %v940
          %s942 = scalar_lea.vmem [#allocation3], 8
          %943 = vst [vmem:[%s942] sm:$0xff] %v941
          %s944 = scalar_lea.vmem [#allocation2], 16
          %v945 = vld [vmem:[%s944] sm:$0xff]
          %v946 = vpack.c.bf16 %v941, %v941
          %947 = vmatprep.subr.bf16.mxu0 0
          %948 = vmatpush1.bf16.msra.mxu0 %v838
          %949 = vmatprep.subr.bf16.mxu0 0
          %950 = vmatpush1.bf16.msra.mxu0 %v839
          %951 = vmatprep.subr.bf16.mxu0 0
          %952 = vmatpush1.bf16.msra.mxu0 %v840
          %953 = vmatprep.subr.bf16.mxu0 0
          %954 = vmatpush1.bf16.msra.mxu0 %v841
          %955 = vmatprep.subr.bf16.mxu0 0
          %956 = vmatpush1.bf16.msra.mxu0 %v842
          %957 = vmatprep.subr.bf16.mxu0 0
          %958 = vmatpush1.bf16.msra.mxu0 %v843
          %959 = vmatprep.subr.bf16.mxu0 0
          %960 = vmatpush1.bf16.msra.mxu0 %v844
          %961 = vmatprep.subr.bf16.mxu0 0
          %962 = vmatpush1.bf16.msra.mxu0 %v845
          %963 = vmatprep.subr.bf16.mxu0 0
          %964 = vmatpush1.bf16.msra.mxu0 0
          %965 = vmatprep.subr.bf16.mxu0 0
          %966 = vmatpush1.bf16.msra.mxu0 0
          %967 = vmatprep.subr.bf16.mxu0 0
          %968 = vmatpush1.bf16.msra.mxu0 0
          %969 = vmatprep.subr.bf16.mxu0 0
          %970 = vmatpush1.bf16.msra.mxu0 0
          %971 = vmatprep.subr.bf16.mxu0 0
          %972 = vmatpush1.bf16.msra.mxu0 0
          %973 = vmatprep.subr.bf16.mxu0 0
          %974 = vmatpush1.bf16.msra.mxu0 0
          %975 = vmatprep.subr.bf16.mxu0 0
          %976 = vmatpush1.bf16.msra.mxu0 0
          %977 = vmatprep.subr.bf16.mxu0 0
          %978 = vmatpush1.bf16.msra.mxu0 0
          %979 = vmatprep.mubr.bf16.mxu0 0
          %980 = vmatmul.mubr.bf16.gmra.mrb[0].mxu0 %v946
          %v981 = vpop.f32.mrb[0].mxu0
          %v982 = vadd.f32 0.0, %v981
          %v983 = vpop.f32.mrb[0].mxu0
          %v984 = vpop.f32.mrb[0].mxu0
          %v985 = vpop.f32.mrb[0].mxu0
          %986 = vdwg.mxu0
          %v987 = vadd.f32 %v945, %v982
          %v988 = vtanh.pop %v987
          %s989 = scalar_lea.vmem [#allocation3], 16
          %990 = vst [vmem:[%s989] sm:$0xff] %v988
          %s991 = scalar_lea.vmem [#allocation2], 24
          %v992 = vld [vmem:[%s991] sm:$0xff]
          %v993 = vpack.c.bf16 %v988, %v988
          %994 = vmatprep.subr.bf16.mxu0 0
          %995 = vmatpush1.bf16.msra.mxu0 %v838
          %996 = vmatprep.subr.bf16.mxu0 0
          %997 = vmatpush1.bf16.msra.mxu0 %v839
          %998 = vmatprep.subr.bf16.mxu0 0
          %999 = vmatpush1.bf16.msra.mxu0 %v840
          %1000 = vmatprep.subr.bf16.mxu0 0
          %1001 = vmatpush1.bf16.msra.mxu0 %v841
          %1002 = vmatprep.subr.bf16.mxu0 0
          %1003 = vmatpush1.bf16.msra.mxu0 %v842
          %1004 = vmatprep.subr.bf16.mxu0 0
          %1005 = vmatpush1.bf16.msra.mxu0 %v843
          %1006 = vmatprep.subr.bf16.mxu0 0
          %1007 = vmatpush1.bf16.msra.mxu0 %v844
          %1008 = vmatprep.subr.bf16.mxu0 0
          %1009 = vmatpush1.bf16.msra.mxu0 %v845
          %1010 = vmatprep.subr.bf16.mxu0 0
          %1011 = vmatpush1.bf16.msra.mxu0 0
          %1012 = vmatprep.subr.bf16.mxu0 0
          %1013 = vmatpush1.bf16.msra.mxu0 0
          %1014 = vmatprep.subr.bf16.mxu0 0
          %1015 = vmatpush1.bf16.msra.mxu0 0
          %1016 = vmatprep.subr.bf16.mxu0 0
          %1017 = vmatpush1.bf16.msra.mxu0 0
          %1018 = vmatprep.subr.bf16.mxu0 0
          %1019 = vmatpush1.bf16.msra.mxu0 0
          %1020 = vmatprep.subr.bf16.mxu0 0
          %1021 = vmatpush1.bf16.msra.mxu0 0
          %1022 = vmatprep.subr.bf16.mxu0 0
          %1023 = vmatpush1.bf16.msra.mxu0 0
          %1024 = vmatprep.subr.bf16.mxu0 0
          %1025 = vmatpush1.bf16.msra.mxu0 0
          %1026 = vmatprep.mubr.bf16.mxu0 0
          %1027 = vmatmul.mubr.bf16.gmra.mrb[0].mxu0 %v993
          %v1028 = vpop.f32.mrb[0].mxu0
          %v1029 = vadd.f32 0.0, %v1028
          %v1030 = vpop.f32.mrb[0].mxu0
          %v1031 = vpop.f32.mrb[0].mxu0
          %v1032 = vpop.f32.mrb[0].mxu0
          %1033 = vdwg.mxu0
          %v1034 = vadd.f32 %v992, %v1029
          %v1035 = vtanh.pop %v1034
          %s1036 = scalar_lea.vmem [#allocation3], 24
          %1037 = vst [vmem:[%s1036] sm:$0xff] %v1035
          %s1038 = scalar_lea.vmem [#allocation2], 32
          %v1039 = vld [vmem:[%s1038] sm:$0xff]
          %v1040 = vpack.c.bf16 %v1035, %v1035
          %1041 = vmatprep.subr.bf16.mxu0 0
          %1042 = vmatpush1.bf16.msra.mxu0 %v838
          %1043 = vmatprep.subr.bf16.mxu0 0
          %1044 = vmatpush1.bf16.msra.mxu0 %v839
          %1045 = vmatprep.subr.bf16.mxu0 0
          %1046 = vmatpush1.bf16.msra.mxu0 %v840
          %1047 = vmatprep.subr.bf16.mxu0 0
          %1048 = vmatpush1.bf16.msra.mxu0 %v841
          %1049 = vmatprep.subr.bf16.mxu0 0
          %1050 = vmatpush1.bf16.msra.mxu0 %v842
          %1051 = vmatprep.subr.bf16.mxu0 0
          %1052 = vmatpush1.bf16.msra.mxu0 %v843
          %1053 = vmatprep.subr.bf16.mxu0 0
          %1054 = vmatpush1.bf16.msra.mxu0 %v844
          %1055 = vmatprep.subr.bf16.mxu0 0
          %1056 = vmatpush1.bf16.msra.mxu0 %v845
          %1057 = vmatprep.subr.bf16.mxu0 0
          %1058 = vmatpush1.bf16.msra.mxu0 0
          %1059 = vmatprep.subr.bf16.mxu0 0
          %1060 = vmatpush1.bf16.msra.mxu0 0
          %1061 = vmatprep.subr.bf16.mxu0 0
          %1062 = vmatpush1.bf16.msra.mxu0 0
          %1063 = vmatprep.subr.bf16.mxu0 0
          %1064 = vmatpush1.bf16.msra.mxu0 0
          %1065 = vmatprep.subr.bf16.mxu0 0
          %1066 = vmatpush1.bf16.msra.mxu0 0
          %1067 = vmatprep.subr.bf16.mxu0 0
          %1068 = vmatpush1.bf16.msra.mxu0 0
          %1069 = vmatprep.subr.bf16.mxu0 0
          %1070 = vmatpush1.bf16.msra.mxu0 0
          %1071 = vmatprep.subr.bf16.mxu0 0
          %1072 = vmatpush1.bf16.msra.mxu0 0
          %1073 = vmatprep.mubr.bf16.mxu0 0
          %1074 = vmatmul.mubr.bf16.gmra.mrb[0].mxu0 %v1040
          %v1075 = vpop.f32.mrb[0].mxu0
          %v1076 = vadd.f32 0.0, %v1075
          %v1077 = vpop.f32.mrb[0].mxu0
          %v1078 = vpop.f32.mrb[0].mxu0
          %v1079 = vpop.f32.mrb[0].mxu0
          %1080 = vdwg.mxu0
          %v1081 = vadd.f32 %v1039, %v1076
          %v1082 = vtanh.pop %v1081
          %s1083 = scalar_lea.vmem [#allocation3], 32
          %1084 = vst [vmem:[%s1083] sm:$0xff] %v1082
          %s1085 = scalar_lea.vmem [#allocation2], 40
          %v1086 = vld [vmem:[%s1085] sm:$0xff]
          %v1087 = vpack.c.bf16 %v1082, %v1082
          %1088 = vmatprep.subr.bf16.mxu0 0
          %1089 = vmatpush1.bf16.msra.mxu0 %v838
          %1090 = vmatprep.subr.bf16.mxu0 0
          %1091 = vmatpush1.bf16.msra.mxu0 %v839
          %1092 = vmatprep.subr.bf16.mxu0 0
          %1093 = vmatpush1.bf16.msra.mxu0 %v840
          %1094 = vmatprep.subr.bf16.mxu0 0
          %1095 = vmatpush1.bf16.msra.mxu0 %v841
          %1096 = vmatprep.subr.bf16.mxu0 0
          %1097 = vmatpush1.bf16.msra.mxu0 %v842
          %1098 = vmatprep.subr.bf16.mxu0 0
          %1099 = vmatpush1.bf16.msra.mxu0 %v843
          %1100 = vmatprep.subr.bf16.mxu0 0
          %1101 = vmatpush1.bf16.msra.mxu0 %v844
          %1102 = vmatprep.subr.bf16.mxu0 0
          %1103 = vmatpush1.bf16.msra.mxu0 %v845
          %1104 = vmatprep.subr.bf16.mxu0 0
          %1105 = vmatpush1.bf16.msra.mxu0 0
          %1106 = vmatprep.subr.bf16.mxu0 0
          %1107 = vmatpush1.bf16.msra.mxu0 0
          %1108 = vmatprep.subr.bf16.mxu0 0
          %1109 = vmatpush1.bf16.msra.mxu0 0
          %1110 = vmatprep.subr.bf16.mxu0 0
          %1111 = vmatpush1.bf16.msra.mxu0 0
          %1112 = vmatprep.subr.bf16.mxu0 0
          %1113 = vmatpush1.bf16.msra.mxu0 0
          %1114 = vmatprep.subr.bf16.mxu0 0
          %1115 = vmatpush1.bf16.msra.mxu0 0
          %1116 = vmatprep.subr.bf16.mxu0 0
          %1117 = vmatpush1.bf16.msra.mxu0 0
          %1118 = vmatprep.subr.bf16.mxu0 0
          %1119 = vmatpush1.bf16.msra.mxu0 0
          %1120 = vmatprep.mubr.bf16.mxu0 0
          %1121 = vmatmul.mubr.bf16.gmra.mrb[0].mxu0 %v1087
          %v1122 = vpop.f32.mrb[0].mxu0
          %v1123 = vadd.f32 0.0, %v1122
          %v1124 = vpop.f32.mrb[0].mxu0
          %v1125 = vpop.f32.mrb[0].mxu0
          %v1126 = vpop.f32.mrb[0].mxu0
          %1127 = vdwg.mxu0
          %v1128 = vadd.f32 %v1086, %v1123
          %v1129 = vtanh.pop %v1128
          %s1130 = scalar_lea.vmem [#allocation3], 40
          %1131 = vst [vmem:[%s1130] sm:$0xff] %v1129
          %s1132 = scalar_lea.vmem [#allocation2], 48
          %v1133 = vld [vmem:[%s1132] sm:$0xff]
          %v1134 = vpack.c.bf16 %v1129, %v1129
          %1135 = vmatprep.subr.bf16.mxu0 0
          %1136 = vmatpush1.bf16.msra.mxu0 %v838
          %1137 = vmatprep.subr.bf16.mxu0 0
          %1138 = vmatpush1.bf16.msra.mxu0 %v839
          %1139 = vmatprep.subr.bf16.mxu0 0
          %1140 = vmatpush1.bf16.msra.mxu0 %v840
          %1141 = vmatprep.subr.bf16.mxu0 0
          %1142 = vmatpush1.bf16.msra.mxu0 %v841
          %1143 = vmatprep.subr.bf16.mxu0 0
          %1144 = vmatpush1.bf16.msra.mxu0 %v842
          %1145 = vmatprep.subr.bf16.mxu0 0
          %1146 = vmatpush1.bf16.msra.mxu0 %v843
          %1147 = vmatprep.subr.bf16.mxu0 0
          %1148 = vmatpush1.bf16.msra.mxu0 %v844
          %1149 = vmatprep.subr.bf16.mxu0 0
          %1150 = vmatpush1.bf16.msra.mxu0 %v845
          %1151 = vmatprep.subr.bf16.mxu0 0
          %1152 = vmatpush1.bf16.msra.mxu0 0
          %1153 = vmatprep.subr.bf16.mxu0 0
          %1154 = vmatpush1.bf16.msra.mxu0 0
          %1155 = vmatprep.subr.bf16.mxu0 0
          %1156 = vmatpush1.bf16.msra.mxu0 0
          %1157 = vmatprep.subr.bf16.mxu0 0
          %1158 = vmatpush1.bf16.msra.mxu0 0
          %1159 = vmatprep.subr.bf16.mxu0 0
          %1160 = vmatpush1.bf16.msra.mxu0 0
          %1161 = vmatprep.subr.bf16.mxu0 0
          %1162 = vmatpush1.bf16.msra.mxu0 0
          %1163 = vmatprep.subr.bf16.mxu0 0
          %1164 = vmatpush1.bf16.msra.mxu0 0
          %1165 = vmatprep.subr.bf16.mxu0 0
          %1166 = vmatpush1.bf16.msra.mxu0 0
          %1167 = vmatprep.mubr.bf16.mxu0 0
          %1168 = vmatmul.mubr.bf16.gmra.mrb[0].mxu0 %v1134
          %v1169 = vpop.f32.mrb[0].mxu0
          %v1170 = vadd.f32 0.0, %v1169
          %v1171 = vpop.f32.mrb[0].mxu0
          %v1172 = vpop.f32.mrb[0].mxu0
          %v1173 = vpop.f32.mrb[0].mxu0
          %1174 = vdwg.mxu0
          %v1175 = vadd.f32 %v1133, %v1170
          %v1176 = vtanh.pop %v1175
          %s1177 = scalar_lea.vmem [#allocation3], 48
          %1178 = vst [vmem:[%s1177] sm:$0xff] %v1176
          %s1179 = scalar_lea.vmem [#allocation2], 56
          %v1180 = vld [vmem:[%s1179] sm:$0xff]
          %v1181 = vpack.c.bf16 %v1176, %v1176
          %1182 = vmatprep.subr.bf16.mxu0 0
          %1183 = vmatpush1.bf16.msra.mxu0 %v838
          %1184 = vmatprep.subr.bf16.mxu0 0
          %1185 = vmatpush1.bf16.msra.mxu0 %v839
          %1186 = vmatprep.subr.bf16.mxu0 0
          %1187 = vmatpush1.bf16.msra.mxu0 %v840
          %1188 = vmatprep.subr.bf16.mxu0 0
          %1189 = vmatpush1.bf16.msra.mxu0 %v841
          %1190 = vmatprep.subr.bf16.mxu0 0
          %1191 = vmatpush1.bf16.msra.mxu0 %v842
          %1192 = vmatprep.subr.bf16.mxu0 0
          %1193 = vmatpush1.bf16.msra.mxu0 %v843
          %1194 = vmatprep.subr.bf16.mxu0 0
          %1195 = vmatpush1.bf16.msra.mxu0 %v844
          %1196 = vmatprep.subr.bf16.mxu0 0
          %1197 = vmatpush1.bf16.msra.mxu0 %v845
          %1198 = vmatprep.subr.bf16.mxu0 0
          %1199 = vmatpush1.bf16.msra.mxu0 0
          %1200 = vmatprep.subr.bf16.mxu0 0
          %1201 = vmatpush1.bf16.msra.mxu0 0
          %1202 = vmatprep.subr.bf16.mxu0 0
          %1203 = vmatpush1.bf16.msra.mxu0 0
          %1204 = vmatprep.subr.bf16.mxu0 0
          %1205 = vmatpush1.bf16.msra.mxu0 0
          %1206 = vmatprep.subr.bf16.mxu0 0
          %1207 = vmatpush1.bf16.msra.mxu0 0
          %1208 = vmatprep.subr.bf16.mxu0 0
          %1209 = vmatpush1.bf16.msra.mxu0 0
          %1210 = vmatprep.subr.bf16.mxu0 0
          %1211 = vmatpush1.bf16.msra.mxu0 0
          %1212 = vmatprep.subr.bf16.mxu0 0
          %1213 = vmatpush1.bf16.msra.mxu0 0
          %1214 = vmatprep.mubr.bf16.mxu0 0
          %1215 = vmatmul.mubr.bf16.gmra.mrb[0].mxu0 %v1181
          %v1216 = vpop.f32.mrb[0].mxu0
          %v1217 = vadd.f32 0.0, %v1216
          %v1218 = vpop.f32.mrb[0].mxu0
          %v1219 = vpop.f32.mrb[0].mxu0
          %v1220 = vpop.f32.mrb[0].mxu0
          %1221 = vdwg.mxu0
          %v1222 = vadd.f32 %v1180, %v1217
          %v1223 = vtanh.pop %v1222
          %s1224 = scalar_lea.vmem [#allocation3], 56
          %1225 = vst [vmem:[%s1224] sm:$0xff] %v1223
          %v1226 = vld [vmem:[%s1] sm:$0xf]
          %v1227 = vld [vmem:[%s1 + $0x4] sm:$0xf]
          %v1228 = vld [vmem:[%s1 + $0x8] sm:$0xf]
          %v1229 = vld [vmem:[%s1 + $0xc] sm:$0xf]
          %v1230 = vld [vmem:[%s1 + $0x10] sm:$0xf]
          %v1231 = vld [vmem:[%s1 + $0x14] sm:$0xf]
          %v1232 = vld [vmem:[%s8] sm:$0xf]
          %v1233 = vld [vmem:[%s8 + $0x4] sm:$0xf]
          %v1234 = vld [vmem:[%s8 + $0x8] sm:$0xf]
          %v1235 = vld [vmem:[%s8 + $0xc] sm:$0xf]
          %v1236 = vld [vmem:[%s8 + $0x10] sm:$0xf]
          %v1237 = vld [vmem:[%s8 + $0x14] sm:$0xf]
          %v1238 = vld [vmem:[%s8 + $0x18] sm:$0xf]
          %v1239 = vld [vmem:[%s8 + $0x1c] sm:$0xf]
          %v1240 = vld [vmem:[%s8 + $0x20] sm:$0xf]
          %v1241 = vld [vmem:[%s8 + $0x24] sm:$0xf]
          %v1242 = vld [vmem:[%s8 + $0x28] sm:$0xf]
          %v1243 = vld [vmem:[%s8 + $0x2c] sm:$0xf]
          %v1244 = vld [vmem:[%s8 + $0x30] sm:$0xf]
          %v1245 = vld [vmem:[%s8 + $0x34] sm:$0xf]
          %v1246 = vld [vmem:[%s8 + $0x38] sm:$0xf]
          %v1247 = vld [vmem:[%s8 + $0x3c] sm:$0xf]
          %v1248 = vld [vmem:[%s10] sm:$0x1]
          %v1250 = vlaneseq
          %v1251 = vshrl.u32 %v1250, 7
          %v1252 = vsub.s32 0, %v1251
          %v1253 = vrot.slane %v1248, %v1252
          %v1261 = vunpack.c.l.b16 %v1226
          %v1262 = vunpack.c.l.b16 %v1227
          %v1263 = vunpack.c.l.b16 %v1228
          %v1264 = vunpack.c.l.b16 %v1229
          %v1265 = vunpack.c.l.b16 %v1230
          %v1266 = vunpack.c.l.b16 %v1231
          %v1267 = vpack.c.b16 %v1262, %v1261
          %v1268 = vpack.c.b16 %v1264, %v1263
          %v1269 = vpack.c.b16 %v1266, %v1265
          %v1289 = vunpack.c.l.b16 %v1232
          %v1290 = vunpack.c.l.b16 %v1233
          %v1291 = vunpack.c.l.b16 %v1234
          %v1292 = vunpack.c.l.b16 %v1235
          %v1293 = vunpack.c.l.b16 %v1236
          %v1294 = vunpack.c.l.b16 %v1237
          %v1295 = vunpack.c.l.b16 %v1238
          %v1296 = vunpack.c.l.b16 %v1239
          %v1297 = vunpack.c.l.b16 %v1240
          %v1298 = vunpack.c.l.b16 %v1241
          %v1299 = vunpack.c.l.b16 %v1242
          %v1300 = vunpack.c.l.b16 %v1243
          %v1301 = vunpack.c.l.b16 %v1244
          %v1302 = vunpack.c.l.b16 %v1245
          %v1303 = vunpack.c.l.b16 %v1246
          %v1304 = vunpack.c.l.b16 %v1247
          %v1305 = vpack.c.b16 %v1290, %v1289
          %v1306 = vpack.c.b16 %v1292, %v1291
          %v1307 = vpack.c.b16 %v1294, %v1293
          %v1308 = vpack.c.b16 %v1296, %v1295
          %v1309 = vpack.c.b16 %v1298, %v1297
          %v1310 = vpack.c.b16 %v1300, %v1299
          %v1311 = vpack.c.b16 %v1302, %v1301
          %v1312 = vpack.c.b16 %v1304, %v1303
          %1321 = vmatprep.subr.bf16.mxu0 0
          %1322 = vmatpush1.bf16.msra.mxu0 %v1305
          %1323 = vmatprep.subr.bf16.mxu0 0
          %1324 = vmatpush1.bf16.msra.mxu0 %v1306
          %1325 = vmatprep.subr.bf16.mxu0 0
          %1326 = vmatpush1.bf16.msra.mxu0 %v1307
          %1327 = vmatprep.subr.bf16.mxu0 0
          %1328 = vmatpush1.bf16.msra.mxu0 %v1308
          %1329 = vmatprep.subr.bf16.mxu0 0
          %1330 = vmatpush1.bf16.msra.mxu0 %v1309
          %1331 = vmatprep.subr.bf16.mxu0 0
          %1332 = vmatpush1.bf16.msra.mxu0 %v1310
          %1333 = vmatprep.subr.bf16.mxu0 0
          %1334 = vmatpush1.bf16.msra.mxu0 %v1311
          %1335 = vmatprep.subr.bf16.mxu0 0
          %1336 = vmatpush1.bf16.msra.mxu0 %v1312
          %1337 = vmatprep.subr.bf16.mxu0 0
          %1338 = vmatpush1.bf16.msra.mxu0 0
          %1339 = vmatprep.subr.bf16.mxu0 0
          %1340 = vmatpush1.bf16.msra.mxu0 0
          %1341 = vmatprep.subr.bf16.mxu0 0
          %1342 = vmatpush1.bf16.msra.mxu0 0
          %1343 = vmatprep.subr.bf16.mxu0 0
          %1344 = vmatpush1.bf16.msra.mxu0 0
          %1345 = vmatprep.subr.bf16.mxu0 0
          %1346 = vmatpush1.bf16.msra.mxu0 0
          %1347 = vmatprep.subr.bf16.mxu0 0
          %1348 = vmatpush1.bf16.msra.mxu0 0
          %1349 = vmatprep.subr.bf16.mxu0 0
          %1350 = vmatpush1.bf16.msra.mxu0 0
          %1351 = vmatprep.subr.bf16.mxu0 0
          %1352 = vmatpush1.bf16.msra.mxu0 0
          %1353 = vmatprep.mubr.bf16.mxu0 0
          %1354 = vmatmul.mubr.bf16.gmra.mrb[0].mxu0 %v1267
          %v1355 = vpop.f32.mrb[0].mxu0
          %v1356 = vadd.f32 %v1253, %v1355
          %v1357 = vpop.f32.mrb[0].mxu0
          %v1358 = vpop.f32.mrb[0].mxu0
          %v1359 = vadd.f32 %v1253, %v1358
          %v1360 = vpop.f32.mrb[0].mxu0
          %1361 = vmatprep.mubr.bf16.mxu0 0
          %1362 = vmatmul.mubr.bf16.gmra.mrb[0].mxu0 %v1268
          %v1363 = vpop.f32.mrb[0].mxu0
          %v1364 = vadd.f32 %v1253, %v1363
          %v1365 = vpop.f32.mrb[0].mxu0
          %v1366 = vpop.f32.mrb[0].mxu0
          %v1367 = vadd.f32 %v1253, %v1366
          %v1368 = vpop.f32.mrb[0].mxu0
          %1369 = vmatprep.mubr.bf16.mxu0 0
          %1370 = vmatmul.mubr.bf16.gmra.mrb[0].mxu0 %v1269
          %v1371 = vpop.f32.mrb[0].mxu0
          %v1372 = vadd.f32 %v1253, %v1371
          %v1373 = vpop.f32.mrb[0].mxu0
          %v1374 = vpop.f32.mrb[0].mxu0
          %v1375 = vadd.f32 %v1253, %v1374
          %v1376 = vpop.f32.mrb[0].mxu0
          %1377 = vdwg.mxu0
          %1378 = vst [vmem:[#allocation4] sm:$0xff] %v1356
          %1379 = vst [vmem:[#allocation4 + $0x8] sm:$0xff] %v1359
          %1380 = vst [vmem:[#allocation4 + $0x10] sm:$0xff] %v1364
          %1381 = vst [vmem:[#allocation4 + $0x18] sm:$0xff] %v1367
          %1382 = vst [vmem:[#allocation4 + $0x20] sm:$0xff] %v1372
          %1383 = vst [vmem:[#allocation4 + $0x28] sm:$0xff] %v1375
          %v1384 = vld [vmem:[%s9] sm:$0xf]
          %v1385 = vld [vmem:[%s9 + $0x4] sm:$0xf]
          %v1386 = vld [vmem:[%s9 + $0x8] sm:$0xf]
          %v1387 = vld [vmem:[%s9 + $0xc] sm:$0xf]
          %v1388 = vld [vmem:[%s9 + $0x10] sm:$0xf]
          %v1389 = vld [vmem:[%s9 + $0x14] sm:$0xf]
          %v1390 = vld [vmem:[%s9 + $0x18] sm:$0xf]
          %v1391 = vld [vmem:[%s9 + $0x1c] sm:$0xf]
          %v1392 = vld [vmem:[%s9 + $0x20] sm:$0xf]
          %v1393 = vld [vmem:[%s9 + $0x24] sm:$0xf]
          %v1394 = vld [vmem:[%s9 + $0x28] sm:$0xf]
          %v1395 = vld [vmem:[%s9 + $0x2c] sm:$0xf]
          %v1396 = vld [vmem:[%s9 + $0x30] sm:$0xf]
          %v1397 = vld [vmem:[%s9 + $0x34] sm:$0xf]
          %v1398 = vld [vmem:[%s9 + $0x38] sm:$0xf]
          %v1399 = vld [vmem:[%s9 + $0x3c] sm:$0xf]
          %v1400 = vld [vmem:[#allocation4] sm:$0xff]
          %v1417 = vunpack.c.l.b16 %v1384
          %v1418 = vunpack.c.l.b16 %v1385
          %v1419 = vunpack.c.l.b16 %v1386
          %v1420 = vunpack.c.l.b16 %v1387
          %v1421 = vunpack.c.l.b16 %v1388
          %v1422 = vunpack.c.l.b16 %v1389
          %v1423 = vunpack.c.l.b16 %v1390
          %v1424 = vunpack.c.l.b16 %v1391
          %v1425 = vunpack.c.l.b16 %v1392
          %v1426 = vunpack.c.l.b16 %v1393
          %v1427 = vunpack.c.l.b16 %v1394
          %v1428 = vunpack.c.l.b16 %v1395
          %v1429 = vunpack.c.l.b16 %v1396
          %v1430 = vunpack.c.l.b16 %v1397
          %v1431 = vunpack.c.l.b16 %v1398
          %v1432 = vunpack.c.l.b16 %v1399
          %v1433 = vpack.c.b16 %v1418, %v1417
          %v1434 = vpack.c.b16 %v1420, %v1419
          %v1435 = vpack.c.b16 %v1422, %v1421
          %v1436 = vpack.c.b16 %v1424, %v1423
          %v1437 = vpack.c.b16 %v1426, %v1425
          %v1438 = vpack.c.b16 %v1428, %v1427
          %v1439 = vpack.c.b16 %v1430, %v1429
          %v1440 = vpack.c.b16 %v1432, %v1431
          %1449 = vmatprep.subr.bf16.mxu0 0
          %1450 = vmatpush1.bf16.msra.mxu0 %v1433
          %1451 = vmatprep.subr.bf16.mxu0 0
          %1452 = vmatpush1.bf16.msra.mxu0 %v1434
          %1453 = vmatprep.subr.bf16.mxu0 0
          %1454 = vmatpush1.bf16.msra.mxu0 %v1435
          %1455 = vmatprep.subr.bf16.mxu0 0
          %1456 = vmatpush1.bf16.msra.mxu0 %v1436
          %1457 = vmatprep.subr.bf16.mxu0 0
          %1458 = vmatpush1.bf16.msra.mxu0 %v1437
          %1459 = vmatprep.subr.bf16.mxu0 0
          %1460 = vmatpush1.bf16.msra.mxu0 %v1438
          %1461 = vmatprep.subr.bf16.mxu0 0
          %1462 = vmatpush1.bf16.msra.mxu0 %v1439
          %1463 = vmatprep.subr.bf16.mxu0 0
          %1464 = vmatpush1.bf16.msra.mxu0 %v1440
          %1465 = vmatprep.subr.bf16.mxu0 0
          %1466 = vmatpush1.bf16.msra.mxu0 0
          %1467 = vmatprep.subr.bf16.mxu0 0
          %1468 = vmatpush1.bf16.msra.mxu0 0
          %1469 = vmatprep.subr.bf16.mxu0 0
          %1470 = vmatpush1.bf16.msra.mxu0 0
          %1471 = vmatprep.subr.bf16.mxu0 0
          %1472 = vmatpush1.bf16.msra.mxu0 0
          %1473 = vmatprep.subr.bf16.mxu0 0
          %1474 = vmatpush1.bf16.msra.mxu0 0
          %1475 = vmatprep.subr.bf16.mxu0 0
          %1476 = vmatpush1.bf16.msra.mxu0 0
          %1477 = vmatprep.subr.bf16.mxu0 0
          %1478 = vmatpush1.bf16.msra.mxu0 0
          %1479 = vmatprep.subr.bf16.mxu0 0
          %1480 = vmatpush1.bf16.msra.mxu0 0
          %1481 = vmatprep.mubr.bf16.mxu0 0
          %1482 = vmatmul.mubr.bf16.gmra.mrb[0].mxu0 0
          %v1483 = vpop.f32.mrb[0].mxu0
          %v1484 = vadd.f32 0.0, %v1483
          %v1485 = vpop.f32.mrb[0].mxu0
          %v1486 = vpop.f32.mrb[0].mxu0
          %v1487 = vpop.f32.mrb[0].mxu0
          %1488 = vdwg.mxu0
          %v1489 = vadd.f32 %v1400, %v1484
          %v1490 = vtanh.pop %v1489
          %1491 = vst [vmem:[#allocation5] sm:$0xff] %v1490
          %s1492 = scalar_lea.vmem [#allocation4], 8
          %v1493 = vld [vmem:[%s1492] sm:$0xff]
          %v1494 = vpack.c.bf16 %v1490, %v1490
          %1495 = vmatprep.subr.bf16.mxu0 0
          %1496 = vmatpush1.bf16.msra.mxu0 %v1433
          %1497 = vmatprep.subr.bf16.mxu0 0
          %1498 = vmatpush1.bf16.msra.mxu0 %v1434
          %1499 = vmatprep.subr.bf16.mxu0 0
          %1500 = vmatpush1.bf16.msra.mxu0 %v1435
          %1501 = vmatprep.subr.bf16.mxu0 0
          %1502 = vmatpush1.bf16.msra.mxu0 %v1436
          %1503 = vmatprep.subr.bf16.mxu0 0
          %1504 = vmatpush1.bf16.msra.mxu0 %v1437
          %1505 = vmatprep.subr.bf16.mxu0 0
          %1506 = vmatpush1.bf16.msra.mxu0 %v1438
          %1507 = vmatprep.subr.bf16.mxu0 0
          %1508 = vmatpush1.bf16.msra.mxu0 %v1439
          %1509 = vmatprep.subr.bf16.mxu0 0
          %1510 = vmatpush1.bf16.msra.mxu0 %v1440
          %1511 = vmatprep.subr.bf16.mxu0 0
          %1512 = vmatpush1.bf16.msra.mxu0 0
          %1513 = vmatprep.subr.bf16.mxu0 0
          %1514 = vmatpush1.bf16.msra.mxu0 0
          %1515 = vmatprep.subr.bf16.mxu0 0
          %1516 = vmatpush1.bf16.msra.mxu0 0
          %1517 = vmatprep.subr.bf16.mxu0 0
          %1518 = vmatpush1.bf16.msra.mxu0 0
          %1519 = vmatprep.subr.bf16.mxu0 0
          %1520 = vmatpush1.bf16.msra.mxu0 0
          %1521 = vmatprep.subr.bf16.mxu0 0
          %1522 = vmatpush1.bf16.msra.mxu0 0
          %1523 = vmatprep.subr.bf16.mxu0 0
          %1524 = vmatpush1.bf16.msra.mxu0 0
          %1525 = vmatprep.subr.bf16.mxu0 0
          %1526 = vmatpush1.bf16.msra.mxu0 0
          %1527 = vmatprep.mubr.bf16.mxu0 0
          %1528 = vmatmul.mubr.bf16.gmra.mrb[0].mxu0 %v1494
          %v1529 = vpop.f32.mrb[0].mxu0
          %v1530 = vadd.f32 0.0, %v1529
          %v1531 = vpop.f32.mrb[0].mxu0
          %v1532 = vpop.f32.mrb[0].mxu0
          %v1533 = vpop.f32.mrb[0].mxu0
          %1534 = vdwg.mxu0
          %v1535 = vadd.f32 %v1493, %v1530
          %v1536 = vtanh.pop %v1535
          %s1537 = scalar_lea.vmem [#allocation5], 8
          %1538 = vst [vmem:[%s1537] sm:$0xff] %v1536
          %s1539 = scalar_lea.vmem [#allocation4], 16
          %v1540 = vld [vmem:[%s1539] sm:$0xff]
          %v1541 = vpack.c.bf16 %v1536, %v1536
          %1542 = vmatprep.subr.bf16.mxu0 0
          %1543 = vmatpush1.bf16.msra.mxu0 %v1433
          %1544 = vmatprep.subr.bf16.mxu0 0
          %1545 = vmatpush1.bf16.msra.mxu0 %v1434
          %1546 = vmatprep.subr.bf16.mxu0 0
          %1547 = vmatpush1.bf16.msra.mxu0 %v1435
          %1548 = vmatprep.subr.bf16.mxu0 0
          %1549 = vmatpush1.bf16.msra.mxu0 %v1436
          %1550 = vmatprep.subr.bf16.mxu0 0
          %1551 = vmatpush1.bf16.msra.mxu0 %v1437
          %1552 = vmatprep.subr.bf16.mxu0 0
          %1553 = vmatpush1.bf16.msra.mxu0 %v1438
          %1554 = vmatprep.subr.bf16.mxu0 0
          %1555 = vmatpush1.bf16.msra.mxu0 %v1439
          %1556 = vmatprep.subr.bf16.mxu0 0
          %1557 = vmatpush1.bf16.msra.mxu0 %v1440
          %1558 = vmatprep.subr.bf16.mxu0 0
          %1559 = vmatpush1.bf16.msra.mxu0 0
          %1560 = vmatprep.subr.bf16.mxu0 0
          %1561 = vmatpush1.bf16.msra.mxu0 0
          %1562 = vmatprep.subr.bf16.mxu0 0
          %1563 = vmatpush1.bf16.msra.mxu0 0
          %1564 = vmatprep.subr.bf16.mxu0 0
          %1565 = vmatpush1.bf16.msra.mxu0 0
          %1566 = vmatprep.subr.bf16.mxu0 0
          %1567 = vmatpush1.bf16.msra.mxu0 0
          %1568 = vmatprep.subr.bf16.mxu0 0
          %1569 = vmatpush1.bf16.msra.mxu0 0
          %1570 = vmatprep.subr.bf16.mxu0 0
          %1571 = vmatpush1.bf16.msra.mxu0 0
          %1572 = vmatprep.subr.bf16.mxu0 0
          %1573 = vmatpush1.bf16.msra.mxu0 0
          %1574 = vmatprep.mubr.bf16.mxu0 0
          %1575 = vmatmul.mubr.bf16.gmra.mrb[0].mxu0 %v1541
          %v1576 = vpop.f32.mrb[0].mxu0
          %v1577 = vadd.f32 0.0, %v1576
          %v1578 = vpop.f32.mrb[0].mxu0
          %v1579 = vpop.f32.mrb[0].mxu0
          %v1580 = vpop.f32.mrb[0].mxu0
          %1581 = vdwg.mxu0
          %v1582 = vadd.f32 %v1540, %v1577
          %v1583 = vtanh.pop %v1582
          %s1584 = scalar_lea.vmem [#allocation5], 16
          %1585 = vst [vmem:[%s1584] sm:$0xff] %v1583
          %s1586 = scalar_lea.vmem [#allocation4], 24
          %v1587 = vld [vmem:[%s1586] sm:$0xff]
          %v1588 = vpack.c.bf16 %v1583, %v1583
          %1589 = vmatprep.subr.bf16.mxu0 0
          %1590 = vmatpush1.bf16.msra.mxu0 %v1433
          %1591 = vmatprep.subr.bf16.mxu0 0
          %1592 = vmatpush1.bf16.msra.mxu0 %v1434
          %1593 = vmatprep.subr.bf16.mxu0 0
          %1594 = vmatpush1.bf16.msra.mxu0 %v1435
          %1595 = vmatprep.subr.bf16.mxu0 0
          %1596 = vmatpush1.bf16.msra.mxu0 %v1436
          %1597 = vmatprep.subr.bf16.mxu0 0
          %1598 = vmatpush1.bf16.msra.mxu0 %v1437
          %1599 = vmatprep.subr.bf16.mxu0 0
          %1600 = vmatpush1.bf16.msra.mxu0 %v1438
          %1601 = vmatprep.subr.bf16.mxu0 0
          %1602 = vmatpush1.bf16.msra.mxu0 %v1439
          %1603 = vmatprep.subr.bf16.mxu0 0
          %1604 = vmatpush1.bf16.msra.mxu0 %v1440
          %1605 = vmatprep.subr.bf16.mxu0 0
          %1606 = vmatpush1.bf16.msra.mxu0 0
          %1607 = vmatprep.subr.bf16.mxu0 0
          %1608 = vmatpush1.bf16.msra.mxu0 0
          %1609 = vmatprep.subr.bf16.mxu0 0
          %1610 = vmatpush1.bf16.msra.mxu0 0
          %1611 = vmatprep.subr.bf16.mxu0 0
          %1612 = vmatpush1.bf16.msra.mxu0 0
          %1613 = vmatprep.subr.bf16.mxu0 0
          %1614 = vmatpush1.bf16.msra.mxu0 0
          %1615 = vmatprep.subr.bf16.mxu0 0
          %1616 = vmatpush1.bf16.msra.mxu0 0
          %1617 = vmatprep.subr.bf16.mxu0 0
          %1618 = vmatpush1.bf16.msra.mxu0 0
          %1619 = vmatprep.subr.bf16.mxu0 0
          %1620 = vmatpush1.bf16.msra.mxu0 0
          %1621 = vmatprep.mubr.bf16.mxu0 0
          %1622 = vmatmul.mubr.bf16.gmra.mrb[0].mxu0 %v1588
          %v1623 = vpop.f32.mrb[0].mxu0
          %v1624 = vadd.f32 0.0, %v1623
          %v1625 = vpop.f32.mrb[0].mxu0
          %v1626 = vpop.f32.mrb[0].mxu0
          %v1627 = vpop.f32.mrb[0].mxu0
          %1628 = vdwg.mxu0
          %v1629 = vadd.f32 %v1587, %v1624
          %v1630 = vtanh.pop %v1629
          %s1631 = scalar_lea.vmem [#allocation5], 24
          %1632 = vst [vmem:[%s1631] sm:$0xff] %v1630
          %s1633 = scalar_lea.vmem [#allocation4], 32
          %v1634 = vld [vmem:[%s1633] sm:$0xff]
          %v1635 = vpack.c.bf16 %v1630, %v1630
          %1636 = vmatprep.subr.bf16.mxu0 0
          %1637 = vmatpush1.bf16.msra.mxu0 %v1433
          %1638 = vmatprep.subr.bf16.mxu0 0
          %1639 = vmatpush1.bf16.msra.mxu0 %v1434
          %1640 = vmatprep.subr.bf16.mxu0 0
          %1641 = vmatpush1.bf16.msra.mxu0 %v1435
          %1642 = vmatprep.subr.bf16.mxu0 0
          %1643 = vmatpush1.bf16.msra.mxu0 %v1436
          %1644 = vmatprep.subr.bf16.mxu0 0
          %1645 = vmatpush1.bf16.msra.mxu0 %v1437
          %1646 = vmatprep.subr.bf16.mxu0 0
          %1647 = vmatpush1.bf16.msra.mxu0 %v1438
          %1648 = vmatprep.subr.bf16.mxu0 0
          %1649 = vmatpush1.bf16.msra.mxu0 %v1439
          %1650 = vmatprep.subr.bf16.mxu0 0
          %1651 = vmatpush1.bf16.msra.mxu0 %v1440
          %1652 = vmatprep.subr.bf16.mxu0 0
          %1653 = vmatpush1.bf16.msra.mxu0 0
          %1654 = vmatprep.subr.bf16.mxu0 0
          %1655 = vmatpush1.bf16.msra.mxu0 0
          %1656 = vmatprep.subr.bf16.mxu0 0
          %1657 = vmatpush1.bf16.msra.mxu0 0
          %1658 = vmatprep.subr.bf16.mxu0 0
          %1659 = vmatpush1.bf16.msra.mxu0 0
          %1660 = vmatprep.subr.bf16.mxu0 0
          %1661 = vmatpush1.bf16.msra.mxu0 0
          %1662 = vmatprep.subr.bf16.mxu0 0
          %1663 = vmatpush1.bf16.msra.mxu0 0
          %1664 = vmatprep.subr.bf16.mxu0 0
          %1665 = vmatpush1.bf16.msra.mxu0 0
          %1666 = vmatprep.subr.bf16.mxu0 0
          %1667 = vmatpush1.bf16.msra.mxu0 0
          %1668 = vmatprep.mubr.bf16.mxu0 0
          %1669 = vmatmul.mubr.bf16.gmra.mrb[0].mxu0 %v1635
          %v1670 = vpop.f32.mrb[0].mxu0
          %v1671 = vadd.f32 0.0, %v1670
          %v1672 = vpop.f32.mrb[0].mxu0
          %v1673 = vpop.f32.mrb[0].mxu0
          %v1674 = vpop.f32.mrb[0].mxu0
          %1675 = vdwg.mxu0
          %v1676 = vadd.f32 %v1634, %v1671
          %v1677 = vtanh.pop %v1676
          %s1678 = scalar_lea.vmem [#allocation5], 32
          %1679 = vst [vmem:[%s1678] sm:$0xff] %v1677
          %s1680 = scalar_lea.vmem [#allocation4], 40
          %v1681 = vld [vmem:[%s1680] sm:$0xff]
          %v1682 = vpack.c.bf16 %v1677, %v1677
          %1683 = vmatprep.subr.bf16.mxu0 0
          %1684 = vmatpush1.bf16.msra.mxu0 %v1433
          %1685 = vmatprep.subr.bf16.mxu0 0
          %1686 = vmatpush1.bf16.msra.mxu0 %v1434
          %1687 = vmatprep.subr.bf16.mxu0 0
          %1688 = vmatpush1.bf16.msra.mxu0 %v1435
          %1689 = vmatprep.subr.bf16.mxu0 0
          %1690 = vmatpush1.bf16.msra.mxu0 %v1436
          %1691 = vmatprep.subr.bf16.mxu0 0
          %1692 = vmatpush1.bf16.msra.mxu0 %v1437
          %1693 = vmatprep.subr.bf16.mxu0 0
          %1694 = vmatpush1.bf16.msra.mxu0 %v1438
          %1695 = vmatprep.subr.bf16.mxu0 0
          %1696 = vmatpush1.bf16.msra.mxu0 %v1439
          %1697 = vmatprep.subr.bf16.mxu0 0
          %1698 = vmatpush1.bf16.msra.mxu0 %v1440
          %1699 = vmatprep.subr.bf16.mxu0 0
          %1700 = vmatpush1.bf16.msra.mxu0 0
          %1701 = vmatprep.subr.bf16.mxu0 0
          %1702 = vmatpush1.bf16.msra.mxu0 0
          %1703 = vmatprep.subr.bf16.mxu0 0
          %1704 = vmatpush1.bf16.msra.mxu0 0
          %1705 = vmatprep.subr.bf16.mxu0 0
          %1706 = vmatpush1.bf16.msra.mxu0 0
          %1707 = vmatprep.subr.bf16.mxu0 0
          %1708 = vmatpush1.bf16.msra.mxu0 0
          %1709 = vmatprep.subr.bf16.mxu0 0
          %1710 = vmatpush1.bf16.msra.mxu0 0
          %1711 = vmatprep.subr.bf16.mxu0 0
          %1712 = vmatpush1.bf16.msra.mxu0 0
          %1713 = vmatprep.subr.bf16.mxu0 0
          %1714 = vmatpush1.bf16.msra.mxu0 0
          %1715 = vmatprep.mubr.bf16.mxu0 0
          %1716 = vmatmul.mubr.bf16.gmra.mrb[0].mxu0 %v1682
          %v1717 = vpop.f32.mrb[0].mxu0
          %v1718 = vadd.f32 0.0, %v1717
          %v1719 = vpop.f32.mrb[0].mxu0
          %v1720 = vpop.f32.mrb[0].mxu0
          %v1721 = vpop.f32.mrb[0].mxu0
          %1722 = vdwg.mxu0
          %v1723 = vadd.f32 %v1681, %v1718
          %v1724 = vtanh.pop %v1723
          %s1725 = scalar_lea.vmem [#allocation5], 40
          %1726 = vst [vmem:[%s1725] sm:$0xff] %v1724
          %v1727 = vld [vmem:[#allocation5] sm:$0xff]
          %v1728 = vld [vmem:[#allocation5 + $0x8] sm:$0xff]
          %v1729 = vld [vmem:[#allocation5 + $0x10] sm:$0xff]
          %v1730 = vld [vmem:[#allocation5 + $0x18] sm:$0xff]
          %v1731 = vld [vmem:[#allocation5 + $0x20] sm:$0xff]
          %v1732 = vld [vmem:[#allocation5 + $0x28] sm:$0xff]
          %v1733 = vpack.c.bf16 %v1728, %v1727
          %v1734 = vpack.c.bf16 %v1730, %v1729
          %v1735 = vpack.c.bf16 %v1732, %v1731
          %v1736 = vld [vmem:[#allocation3] sm:$0xff]
          %v1737 = vld [vmem:[#allocation3 + $0x8] sm:$0xff]
          %v1738 = vld [vmem:[#allocation3 + $0x10] sm:$0xff]
          %v1739 = vld [vmem:[#allocation3 + $0x18] sm:$0xff]
          %v1740 = vld [vmem:[#allocation3 + $0x20] sm:$0xff]
          %v1741 = vld [vmem:[#allocation3 + $0x28] sm:$0xff]
          %v1742 = vld [vmem:[#allocation3 + $0x30] sm:$0xff]
          %v1743 = vld [vmem:[#allocation3 + $0x38] sm:$0xff]
          %v1744 = vpack.c.bf16 %v1737, %v1736
          %v1745 = vpack.c.bf16 %v1739, %v1738
          %v1746 = vpack.c.bf16 %v1741, %v1740
          %v1747 = vpack.c.bf16 %v1743, %v1742
          %v1748 = vld [vmem:[%s2] sm:$0xff]
          %v1749 = vld [vmem:[%s2 + $0x8] sm:$0xff]
          %v1750 = vld [vmem:[%s2 + $0x10] sm:$0xff]
          %v1751 = vld [vmem:[%s2 + $0x18] sm:$0xff]
          %v1752 = vld [vmem:[%s2 + $0x20] sm:$0xff]
          %v1753 = vld [vmem:[%s2 + $0x28] sm:$0xff]
          %1754 = vmatprep.subr.bf16.mxu0 0
          %1755 = vmatpush1.bf16.xpose.msra.mxu0 %v1744
          %1756 = vmatprep.subr.bf16.mxu0 0
          %1757 = vmatpush1.bf16.xpose.msra.mxu0 %v1745
          %1758 = vmatprep.subr.bf16.mxu0 0
          %1759 = vmatpush1.bf16.xpose.msra.mxu0 %v1746
          %1760 = vmatprep.subr.bf16.mxu0 0
          %1761 = vmatpush1.bf16.xpose.msra.mxu0 %v1747
          %1762 = vmatprep.subr.bf16.mxu0 0
          %1763 = vmatpush1.bf16.xpose.msra.mxu0 0
          %1764 = vmatprep.subr.bf16.mxu0 0
          %1765 = vmatpush1.bf16.xpose.msra.mxu0 0
          %1766 = vmatprep.subr.bf16.mxu0 0
          %1767 = vmatpush1.bf16.xpose.msra.mxu0 0
          %1768 = vmatprep.subr.bf16.mxu0 0
          %1769 = vmatpush1.bf16.xpose.msra.mxu0 0
          %1770 = vmatprep.subr.bf16.mxu0 0
          %1771 = vmatpush1.bf16.xpose.msra.mxu0 0
          %1772 = vmatprep.subr.bf16.mxu0 0
          %1773 = vmatpush1.bf16.xpose.msra.mxu0 0
          %1774 = vmatprep.subr.bf16.mxu0 0
          %1775 = vmatpush1.bf16.xpose.msra.mxu0 0
          %1776 = vmatprep.subr.bf16.mxu0 0
          %1777 = vmatpush1.bf16.xpose.msra.mxu0 0
          %1778 = vmatprep.subr.bf16.mxu0 0
          %1779 = vmatpush1.bf16.xpose.msra.mxu0 0
          %1780 = vmatprep.subr.bf16.mxu0 0
          %1781 = vmatpush1.bf16.xpose.msra.mxu0 0
          %1782 = vmatprep.subr.bf16.mxu0 0
          %1783 = vmatpush1.bf16.xpose.msra.mxu0 0
          %1784 = vmatprep.subr.bf16.mxu0 0
          %1785 = vmatpush1.bf16.xpose.msra.mxu0 0
          %1786 = vmatprep.mubr.bf16.mxu0 0
          %1787 = vmatmul.mubr.bf16.gmra.mrb[0].mxu0 %v1733
          %v1788 = vpop.f32.mrb[0].mxu0
          %v1789 = vadd.f32 %v1748, %v1788
          %v1790 = vpop.f32.mrb[0].mxu0
          %v1791 = vpop.f32.mrb[0].mxu0
          %v1792 = vadd.f32 %v1749, %v1791
          %v1793 = vpop.f32.mrb[0].mxu0
          %1794 = vmatprep.mubr.bf16.mxu0 0
          %1795 = vmatmul.mubr.bf16.gmra.mrb[0].mxu0 %v1734
          %v1796 = vpop.f32.mrb[0].mxu0
          %v1797 = vadd.f32 %v1750, %v1796
          %v1798 = vpop.f32.mrb[0].mxu0
          %v1799 = vpop.f32.mrb[0].mxu0
          %v1800 = vadd.f32 %v1751, %v1799
          %v1801 = vpop.f32.mrb[0].mxu0
          %1802 = vmatprep.mubr.bf16.mxu0 0
          %1803 = vmatmul.mubr.bf16.gmra.mrb[0].mxu0 %v1735
          %v1804 = vpop.f32.mrb[0].mxu0
          %v1805 = vadd.f32 %v1752, %v1804
          %v1806 = vpop.f32.mrb[0].mxu0
          %v1807 = vpop.f32.mrb[0].mxu0
          %v1808 = vadd.f32 %v1753, %v1807
          %v1809 = vpop.f32.mrb[0].mxu0
          %1810 = vdwg.mxu0
          %vm1811 = vcmask 523264
          %v1812 = vsel %vm1811, %v1789, -inf
          %1813 = vmax.xlane.f32.xlu0 %v1812
          %v1814 = vpop.xlane.xlu0 %1813
          %v1815 = vsel %vm1811, %v1792, -inf
          %1816 = vmax.xlane.f32.xlu0 %v1815
          %v1817 = vpop.xlane.xlu0 %1816
          %v1818 = vsel %vm1811, %v1797, -inf
          %1819 = vmax.xlane.f32.xlu0 %v1818
          %v1820 = vpop.xlane.xlu0 %1819
          %v1821 = vsel %vm1811, %v1800, -inf
          %1822 = vmax.xlane.f32.xlu0 %v1821
          %v1823 = vpop.xlane.xlu0 %1822
          %v1824 = vsel %vm1811, %v1805, -inf
          %1825 = vmax.xlane.f32.xlu0 %v1824
          %v1826 = vpop.xlane.xlu0 %1825
          %v1827 = vsel %vm1811, %v1808, -inf
          %1828 = vmax.xlane.f32.xlu0 %v1827
          %v1829 = vpop.xlane.xlu0 %1828
          %v1830 = vsub.f32 %v1789, %v1814
          %v1831 = vsub.f32 %v1792, %v1817
          %v1832 = vsub.f32 %v1797, %v1820
          %v1833 = vsub.f32 %v1800, %v1823
          %v1834 = vsub.f32 %v1805, %v1826
          %v1835 = vsub.f32 %v1808, %v1829
          %v1836 = vmul.f32 %v1830, 1.442695
          %v1837 = vpow.pop %v1836
          %v1838 = vmul.f32 %v1831, 1.442695
          %v1839 = vpow.pop %v1838
          %v1840 = vmul.f32 %v1832, 1.442695
          %v1841 = vpow.pop %v1840
          %v1842 = vmul.f32 %v1833, 1.442695
          %v1843 = vpow.pop %v1842
          %v1844 = vmul.f32 %v1834, 1.442695
          %v1845 = vpow.pop %v1844
          %v1846 = vmul.f32 %v1835, 1.442695
          %v1847 = vpow.pop %v1846
          %v1848 = vsel %vm1811, %v1837, 0.0
          %1849 = vadd.xlane.f32.xlu0 %v1848
          %v1850 = vpop.xlane.xlu0 %1849
          %v1851 = vsel %vm1811, %v1839, 0.0
          %1852 = vadd.xlane.f32.xlu0 %v1851
          %v1853 = vpop.xlane.xlu0 %1852
          %v1854 = vsel %vm1811, %v1841, 0.0
          %1855 = vadd.xlane.f32.xlu0 %v1854
          %v1856 = vpop.xlane.xlu0 %1855
          %v1857 = vsel %vm1811, %v1843, 0.0
          %1858 = vadd.xlane.f32.xlu0 %v1857
          %v1859 = vpop.xlane.xlu0 %1858
          %v1860 = vsel %vm1811, %v1845, 0.0
          %1861 = vadd.xlane.f32.xlu0 %v1860
          %v1862 = vpop.xlane.xlu0 %1861
          %v1863 = vsel %vm1811, %v1847, 0.0
          %1864 = vadd.xlane.f32.xlu0 %v1863
          %v1865 = vpop.xlane.xlu0 %1864
          %v1866 = vrcp.pop %v1850
          %v1867 = vrcp.pop %v1853
          %v1868 = vrcp.pop %v1856
          %v1869 = vrcp.pop %v1859
          %v1870 = vrcp.pop %v1862
          %v1871 = vrcp.pop %v1865
          %v1872 = vmul.f32 %v1837, %v1866
          %v1873 = vmul.f32 %v1839, %v1867
          %v1874 = vmul.f32 %v1841, %v1868
          %v1875 = vmul.f32 %v1843, %v1869
          %v1876 = vmul.f32 %v1845, %v1870
          %v1877 = vmul.f32 %v1847, %v1871
          %v1878 = vpack.c.bf16 %v1873, %v1872
          %v1879 = vpack.c.bf16 %v1875, %v1874
          %v1880 = vpack.c.bf16 %v1877, %v1876
          %v1882 = vsel %vm1811, %v1878, 0
          %v1885 = vsel %vm1811, %v1879, 0
          %v1888 = vsel %vm1811, %v1880, 0
          %1890 = vmatprep.subr.bf16.mxu0 0
          %1891 = vmatpush1.bf16.msra.mxu0 %v1744
          %1892 = vmatprep.subr.bf16.mxu0 0
          %1893 = vmatpush1.bf16.msra.mxu0 %v1745
          %1894 = vmatprep.subr.bf16.mxu0 0
          %1895 = vmatpush1.bf16.msra.mxu0 %v1746
          %1896 = vmatprep.subr.bf16.mxu0 0
          %1897 = vmatpush1.bf16.msra.mxu0 %v1747
          %1898 = vmatprep.subr.bf16.mxu0 0
          %1899 = vmatpush1.bf16.msra.mxu0 0
          %1900 = vmatprep.subr.bf16.mxu0 0
          %1901 = vmatpush1.bf16.msra.mxu0 0
          %1902 = vmatprep.subr.bf16.mxu0 0
          %1903 = vmatpush1.bf16.msra.mxu0 0
          %1904 = vmatprep.subr.bf16.mxu0 0
          %1905 = vmatpush1.bf16.msra.mxu0 0
          %1906 = vmatprep.subr.bf16.mxu0 0
          %1907 = vmatpush1.bf16.msra.mxu0 0
          %1908 = vmatprep.subr.bf16.mxu0 0
          %1909 = vmatpush1.bf16.msra.mxu0 0
          %1910 = vmatprep.subr.bf16.mxu0 0
          %1911 = vmatpush1.bf16.msra.mxu0 0
          %1912 = vmatprep.subr.bf16.mxu0 0
          %1913 = vmatpush1.bf16.msra.mxu0 0
          %1914 = vmatprep.subr.bf16.mxu0 0
          %1915 = vmatpush1.bf16.msra.mxu0 0
          %1916 = vmatprep.subr.bf16.mxu0 0
          %1917 = vmatpush1.bf16.msra.mxu0 0
          %1918 = vmatprep.subr.bf16.mxu0 0
          %1919 = vmatpush1.bf16.msra.mxu0 0
          %1920 = vmatprep.subr.bf16.mxu0 0
          %1921 = vmatpush1.bf16.msra.mxu0 0
          %1922 = vmatprep.mubr.bf16.mxu0 0
          %1923 = vmatmul.mubr.bf16.gmra.mrb[0].mxu0 %v1882
          %v1924 = vpop.f32.mrb[0].mxu0
          %v1925 = vadd.f32 0.0, %v1924
          %v1926 = vpop.f32.mrb[0].mxu0
          %v1927 = vpop.f32.mrb[0].mxu0
          %v1928 = vadd.f32 0.0, %v1927
          %v1929 = vpop.f32.mrb[0].mxu0
          %1930 = vmatprep.mubr.bf16.mxu0 0
          %1931 = vmatmul.mubr.bf16.gmra.mrb[0].mxu0 %v1885
          %v1932 = vpop.f32.mrb[0].mxu0
          %v1933 = vadd.f32 0.0, %v1932
          %v1934 = vpop.f32.mrb[0].mxu0
          %v1935 = vpop.f32.mrb[0].mxu0
          %v1936 = vadd.f32 0.0, %v1935
          %v1937 = vpop.f32.mrb[0].mxu0
          %1938 = vmatprep.mubr.bf16.mxu0 0
          %1939 = vmatmul.mubr.bf16.gmra.mrb[0].mxu0 %v1888
          %v1940 = vpop.f32.mrb[0].mxu0
          %v1941 = vadd.f32 0.0, %v1940
          %v1942 = vpop.f32.mrb[0].mxu0
          %v1943 = vpop.f32.mrb[0].mxu0
          %v1944 = vadd.f32 0.0, %v1943
          %v1945 = vpop.f32.mrb[0].mxu0
          %1946 = vdwg.mxu0
          %1947 = vst [vmem:[#allocation6] sm:$0xff] %v1733
          %1948 = vst [vmem:[#allocation6 + $0x10] sm:$0xff] %v1734
          %1949 = vst [vmem:[#allocation6 + $0x20] sm:$0xff] %v1735
          %v1950 = vpack.c.bf16 %v1928, %v1925
          %v1951 = vpack.c.bf16 %v1936, %v1933
          %v1952 = vpack.c.bf16 %v1944, %v1941
          %1953 = vst [vmem:[#allocation6 + $0x8] sm:$0xff] %v1950
          %1954 = vst [vmem:[#allocation6 + $0x18] sm:$0xff] %v1951
          %1955 = vst [vmem:[#allocation6 + $0x28] sm:$0xff] %v1952
          %vm1956 = vcmask 7168
          %1957 = vst.msk [vmem:[#allocation7] sm:$0xff] %vm1956, -1e+30
          %1958 = vst.msk [vmem:[#allocation7 + $0x8] sm:$0xff] %vm1956, -1e+30
          %1959 = vst.msk [vmem:[#allocation7 + $0x10] sm:$0xff] %vm1956, -1e+30
          %1960 = vst.msk [vmem:[#allocation7 + $0x18] sm:$0xff] %vm1956, -1e+30
          %1961 = vst.msk [vmem:[#allocation7 + $0x20] sm:$0xff] %vm1956, -1e+30
          %1962 = vst.msk [vmem:[#allocation7 + $0x28] sm:$0xff] %vm1956, -1e+30
          %1963 = vst.msk [vmem:[#allocation8] sm:$0xff] %vm1956, 0.0
          %1964 = vst.msk [vmem:[#allocation8 + $0x8] sm:$0xff] %vm1956, 0.0
          %1965 = vst.msk [vmem:[#allocation8 + $0x10] sm:$0xff] %vm1956, 0.0
          %1966 = vst.msk [vmem:[#allocation8 + $0x18] sm:$0xff] %vm1956, 0.0
          %1967 = vst.msk [vmem:[#allocation8 + $0x20] sm:$0xff] %vm1956, 0.0
          %1968 = vst.msk [vmem:[#allocation8 + $0x28] sm:$0xff] %vm1956, 0.0
          %1969 = vst.msk [vmem:[#allocation9] sm:$0xff] %vm1956, 0.0
          %1970 = vst.msk [vmem:[#allocation9 + $0x8] sm:$0xff] %vm1956, 0.0
          %1971 = vst.msk [vmem:[#allocation9 + $0x10] sm:$0xff] %vm1956, 0.0
          %1972 = vst.msk [vmem:[#allocation9 + $0x18] sm:$0xff] %vm1956, 0.0
          %1973 = vst.msk [vmem:[#allocation9 + $0x20] sm:$0xff] %vm1956, 0.0
          %1974 = vst.msk [vmem:[#allocation9 + $0x28] sm:$0xff] %vm1956, 0.0
        $region117: #{seq2seq_forward.1} parent=108 // pred_fallthru
          _
        %v1975 = vld [vmem:[#allocation6] sm:$0xff]
        %v1976 = vld [vmem:[#allocation6 + $0x8] sm:$0xff]
        %v1977 = vld [vmem:[#allocation6 + $0x10] sm:$0xff]
        %v1978 = vld [vmem:[#allocation6 + $0x18] sm:$0xff]
        %v1979 = vld [vmem:[#allocation6 + $0x20] sm:$0xff]
        %v1980 = vld [vmem:[#allocation6 + $0x28] sm:$0xff]
        %v1981 = vld [vmem:[%s564] sm:$0xf]
        %v1982 = vld [vmem:[%s564 + $0x4] sm:$0xf]
        %v1983 = vld [vmem:[%s564 + $0x8] sm:$0xf]
        %v1984 = vld [vmem:[%s564 + $0xc] sm:$0xf]
        %v1985 = vld [vmem:[%s564 + $0x10] sm:$0xf]
        %v1986 = vld [vmem:[%s564 + $0x14] sm:$0xf]
        %v1987 = vld [vmem:[%s564 + $0x18] sm:$0xf]
        %v1988 = vld [vmem:[%s564 + $0x1c] sm:$0xf]
        %v1989 = vld [vmem:[%s564 + $0x20] sm:$0xf]
        %v1990 = vld [vmem:[%s564 + $0x24] sm:$0xf]
        %v1991 = vld [vmem:[%s564 + $0x28] sm:$0xf]
        %v1992 = vld [vmem:[%s564 + $0x2c] sm:$0xf]
        %v1993 = vld [vmem:[%s564 + $0x30] sm:$0xf]
        %v1994 = vld [vmem:[%s564 + $0x34] sm:$0xf]
        %v1995 = vld [vmem:[%s564 + $0x38] sm:$0xf]
        %v1996 = vld [vmem:[%s564 + $0x3c] sm:$0xf]
        %v1997 = vld [vmem:[%s564 + $0x40] sm:$0xf]
        %v1998 = vld [vmem:[%s564 + $0x44] sm:$0xf]
        %v1999 = vld [vmem:[%s564 + $0x48] sm:$0xf]
        %v2000 = vld [vmem:[%s564 + $0x4c] sm:$0xf]
        %v2001 = vld [vmem:[%s564 + $0x50] sm:$0xf]
        %v2002 = vld [vmem:[%s564 + $0x54] sm:$0xf]
        %v2003 = vld [vmem:[%s564 + $0x58] sm:$0xf]
        %v2004 = vld [vmem:[%s564 + $0x5c] sm:$0xf]
        %v2005 = vld [vmem:[%s564 + $0x60] sm:$0xf]
        %v2006 = vld [vmem:[%s564 + $0x64] sm:$0xf]
        %v2007 = vld [vmem:[%s564 + $0x68] sm:$0xf]
        %v2008 = vld [vmem:[%s564 + $0x6c] sm:$0xf]
        %v2009 = vld [vmem:[%s564 + $0x70] sm:$0xf]
        %v2010 = vld [vmem:[%s564 + $0x74] sm:$0xf]
        %v2011 = vld [vmem:[%s564 + $0x78] sm:$0xf]
        %v2012 = vld [vmem:[%s564 + $0x7c] sm:$0xf]
        %v2013 = vld [vmem:[%s605] sm:$0x1]
        %v2015 = vlaneseq
        %v2016 = vshrl.u32 %v2015, 7
        %v2017 = vsub.s32 0, %v2016
        %v2018 = vrot.slane %v2013, %v2017
        %v2052 = vunpack.c.l.b16 %v1981
        %v2053 = vunpack.c.l.b16 %v1982
        %v2054 = vunpack.c.l.b16 %v1983
        %v2055 = vunpack.c.l.b16 %v1984
        %v2056 = vunpack.c.l.b16 %v1985
        %v2057 = vunpack.c.l.b16 %v1986
        %v2058 = vunpack.c.l.b16 %v1987
        %v2059 = vunpack.c.l.b16 %v1988
        %v2060 = vunpack.c.l.b16 %v1989
        %v2061 = vunpack.c.l.b16 %v1990
        %v2062 = vunpack.c.l.b16 %v1991
        %v2063 = vunpack.c.l.b16 %v1992
        %v2064 = vunpack.c.l.b16 %v1993
        %v2065 = vunpack.c.l.b16 %v1994
        %v2066 = vunpack.c.l.b16 %v1995
        %v2067 = vunpack.c.l.b16 %v1996
        %v2068 = vunpack.c.l.b16 %v1997
        %v2069 = vunpack.c.l.b16 %v1998
        %v2070 = vunpack.c.l.b16 %v1999
        %v2071 = vunpack.c.l.b16 %v2000
        %v2072 = vunpack.c.l.b16 %v2001
        %v2073 = vunpack.c.l.b16 %v2002
        %v2074 = vunpack.c.l.b16 %v2003
        %v2075 = vunpack.c.l.b16 %v2004
        %v2076 = vunpack.c.l.b16 %v2005
        %v2077 = vunpack.c.l.b16 %v2006
        %v2078 = vunpack.c.l.b16 %v2007
        %v2079 = vunpack.c.l.b16 %v2008
        %v2080 = vunpack.c.l.b16 %v2009
        %v2081 = vunpack.c.l.b16 %v2010
        %v2082 = vunpack.c.l.b16 %v2011
        %v2083 = vunpack.c.l.b16 %v2012
        %v2084 = vpack.c.b16 %v2053, %v2052
        %v2085 = vpack.c.b16 %v2055, %v2054
        %v2086 = vpack.c.b16 %v2057, %v2056
        %v2087 = vpack.c.b16 %v2059, %v2058
        %v2088 = vpack.c.b16 %v2061, %v2060
        %v2089 = vpack.c.b16 %v2063, %v2062
        %v2090 = vpack.c.b16 %v2065, %v2064
        %v2091 = vpack.c.b16 %v2067, %v2066
        %v2092 = vpack.c.b16 %v2069, %v2068
        %v2093 = vpack.c.b16 %v2071, %v2070
        %v2094 = vpack.c.b16 %v2073, %v2072
        %v2095 = vpack.c.b16 %v2075, %v2074
        %v2096 = vpack.c.b16 %v2077, %v2076
        %v2097 = vpack.c.b16 %v2079, %v2078
        %v2098 = vpack.c.b16 %v2081, %v2080
        %v2099 = vpack.c.b16 %v2083, %v2082
        %2116 = vmatprep.subr.bf16.mxu0 0
        %2117 = vmatpush1.bf16.msra.mxu0 %v2084
        %2118 = vmatprep.subr.bf16.mxu0 0
        %2119 = vmatpush1.bf16.msra.mxu0 %v2085
        %2120 = vmatprep.subr.bf16.mxu0 0
        %2121 = vmatpush1.bf16.msra.mxu0 %v2086
        %2122 = vmatprep.subr.bf16.mxu0 0
        %2123 = vmatpush1.bf16.msra.mxu0 %v2087
        %2124 = vmatprep.subr.bf16.mxu0 0
        %2125 = vmatpush1.bf16.msra.mxu0 %v2088
        %2126 = vmatprep.subr.bf16.mxu0 0
        %2127 = vmatpush1.bf16.msra.mxu0 %v2089
        %2128 = vmatprep.subr.bf16.mxu0 0
        %2129 = vmatpush1.bf16.msra.mxu0 %v2090
        %2130 = vmatprep.subr.bf16.mxu0 0
        %2131 = vmatpush1.bf16.msra.mxu0 %v2091
        %2132 = vmatprep.subr.bf16.mxu0 0
        %2133 = vmatpush1.bf16.msra.mxu0 %v2092
        %2134 = vmatprep.subr.bf16.mxu0 0
        %2135 = vmatpush1.bf16.msra.mxu0 %v2093
        %2136 = vmatprep.subr.bf16.mxu0 0
        %2137 = vmatpush1.bf16.msra.mxu0 %v2094
        %2138 = vmatprep.subr.bf16.mxu0 0
        %2139 = vmatpush1.bf16.msra.mxu0 %v2095
        %2140 = vmatprep.subr.bf16.mxu0 0
        %2141 = vmatpush1.bf16.msra.mxu0 %v2096
        %2142 = vmatprep.subr.bf16.mxu0 0
        %2143 = vmatpush1.bf16.msra.mxu0 %v2097
        %2144 = vmatprep.subr.bf16.mxu0 0
        %2145 = vmatpush1.bf16.msra.mxu0 %v2098
        %2146 = vmatprep.subr.bf16.mxu0 0
        %2147 = vmatpush1.bf16.msra.mxu0 %v2099
        %2148 = vmatprep.mubr.bf16.mxu0 %v1976
        %2149 = vmatmul.mubr.bf16.gmra.mrb[0].mxu0 %v1975
        %v2150 = vpop.f32.mrb[0].mxu0
        %v2151 = vadd.f32 %v2018, %v2150
        %v2152 = vpop.f32.mrb[0].mxu0
        %v2153 = vpop.f32.mrb[0].mxu0
        %v2154 = vadd.f32 %v2018, %v2153
        %v2155 = vpop.f32.mrb[0].mxu0
        %2156 = vmatprep.mubr.bf16.mxu0 %v1978
        %2157 = vmatmul.mubr.bf16.gmra.mrb[0].mxu0 %v1977
        %v2158 = vpop.f32.mrb[0].mxu0
        %v2159 = vadd.f32 %v2018, %v2158
        %v2160 = vpop.f32.mrb[0].mxu0
        %v2161 = vpop.f32.mrb[0].mxu0
        %v2162 = vadd.f32 %v2018, %v2161
        %v2163 = vpop.f32.mrb[0].mxu0
        %2164 = vmatprep.mubr.bf16.mxu0 %v1980
        %2165 = vmatmul.mubr.bf16.gmra.mrb[0].mxu0 %v1979
        %v2166 = vpop.f32.mrb[0].mxu0
        %v2167 = vadd.f32 %v2018, %v2166
        %v2168 = vpop.f32.mrb[0].mxu0
        %v2169 = vpop.f32.mrb[0].mxu0
        %v2170 = vadd.f32 %v2018, %v2169
        %v2171 = vpop.f32.mrb[0].mxu0
        %2172 = vdwg.mxu0
        %2173 = vmax.xlane.f32.xlu0 %v2151
        %v2174 = vpop.xlane.xlu0 %2173
        %2175 = vmax.xlane.f32.xlu0 %v2154
        %v2176 = vpop.xlane.xlu0 %2175
        %2177 = vmax.xlane.f32.xlu0 %v2159
        %v2178 = vpop.xlane.xlu0 %2177
        %2179 = vmax.xlane.f32.xlu0 %v2162
        %v2180 = vpop.xlane.xlu0 %2179
        %2181 = vmax.xlane.f32.xlu0 %v2167
        %v2182 = vpop.xlane.xlu0 %2181
        %2183 = vmax.xlane.f32.xlu0 %v2170
        %v2184 = vpop.xlane.xlu0 %2183
        %v2185 = vld [vmem:[#allocation7] sm:$0xff]
        %v2186 = vld [vmem:[#allocation7 + $0x8] sm:$0xff]
        %v2187 = vld [vmem:[#allocation7 + $0x10] sm:$0xff]
        %v2188 = vld [vmem:[#allocation7 + $0x18] sm:$0xff]
        %v2189 = vld [vmem:[#allocation7 + $0x20] sm:$0xff]
        %v2190 = vld [vmem:[#allocation7 + $0x28] sm:$0xff]
        %v2191 = vmax.f32 %v2185, %v2174
        %v2192 = vmax.f32 %v2186, %v2176
        %v2193 = vmax.f32 %v2187, %v2178
        %v2194 = vmax.f32 %v2188, %v2180
        %v2195 = vmax.f32 %v2189, %v2182
        %v2196 = vmax.f32 %v2190, %v2184
        %v2197 = vld [vmem:[#allocation8] sm:$0xff]
        %v2198 = vld [vmem:[#allocation8 + $0x8] sm:$0xff]
        %v2199 = vld [vmem:[#allocation8 + $0x10] sm:$0xff]
        %v2200 = vld [vmem:[#allocation8 + $0x18] sm:$0xff]
        %v2201 = vld [vmem:[#allocation8 + $0x20] sm:$0xff]
        %v2202 = vld [vmem:[#allocation8 + $0x28] sm:$0xff]
        %v2203 = vsub.f32 %v2185, %v2191
        %v2204 = vsub.f32 %v2186, %v2192
        %v2205 = vsub.f32 %v2187, %v2193
        %v2206 = vsub.f32 %v2188, %v2194
        %v2207 = vsub.f32 %v2189, %v2195
        %v2208 = vsub.f32 %v2190, %v2196
        %v2209 = vmul.f32 %v2203, 1.442695
        %v2210 = vpow.pop %v2209
        %v2211 = vmul.f32 %v2204, 1.442695
        %v2212 = vpow.pop %v2211
        %v2213 = vmul.f32 %v2205, 1.442695
        %v2214 = vpow.pop %v2213
        %v2215 = vmul.f32 %v2206, 1.442695
        %v2216 = vpow.pop %v2215
        %v2217 = vmul.f32 %v2207, 1.442695
        %v2218 = vpow.pop %v2217
        %v2219 = vmul.f32 %v2208, 1.442695
        %v2220 = vpow.pop %v2219
        %v2221 = vmul.f32 %v2197, %v2210
        %v2222 = vmul.f32 %v2198, %v2212
        %v2223 = vmul.f32 %v2199, %v2214
        %v2224 = vmul.f32 %v2200, %v2216
        %v2225 = vmul.f32 %v2201, %v2218
        %v2226 = vmul.f32 %v2202, %v2220
        %2228 = vset.pattern.permute.xlu0 0
        %2229 = vperm.xlu0 %2228, %v2191
        %v2230 = vpop.permute.xlu0 %2229
        %2233 = vset.pattern.permute.xlu0 0
        %2234 = vperm.xlu0 %2233, %v2192
        %v2235 = vpop.permute.xlu0 %2234
        %2238 = vset.pattern.permute.xlu0 0
        %2239 = vperm.xlu0 %2238, %v2193
        %v2240 = vpop.permute.xlu0 %2239
        %2243 = vset.pattern.permute.xlu0 0
        %2244 = vperm.xlu0 %2243, %v2194
        %v2245 = vpop.permute.xlu0 %2244
        %2248 = vset.pattern.permute.xlu0 0
        %2249 = vperm.xlu0 %2248, %v2195
        %v2250 = vpop.permute.xlu0 %2249
        %2253 = vset.pattern.permute.xlu0 0
        %2254 = vperm.xlu0 %2253, %v2196
        %v2255 = vpop.permute.xlu0 %2254
        %v2257 = vsub.f32 %v2151, %v2230
        %v2258 = vsub.f32 %v2154, %v2235
        %v2259 = vsub.f32 %v2159, %v2240
        %v2260 = vsub.f32 %v2162, %v2245
        %v2261 = vsub.f32 %v2167, %v2250
        %v2262 = vsub.f32 %v2170, %v2255
        %v2263 = vmul.f32 %v2257, 1.442695
        %v2264 = vpow.pop %v2263
        %v2265 = vmul.f32 %v2258, 1.442695
        %v2266 = vpow.pop %v2265
        %v2267 = vmul.f32 %v2259, 1.442695
        %v2268 = vpow.pop %v2267
        %v2269 = vmul.f32 %v2260, 1.442695
        %v2270 = vpow.pop %v2269
        %v2271 = vmul.f32 %v2261, 1.442695
        %v2272 = vpow.pop %v2271
        %v2273 = vmul.f32 %v2262, 1.442695
        %v2274 = vpow.pop %v2273
        %2275 = vadd.xlane.f32.xlu0 %v2264
        %v2276 = vpop.xlane.xlu0 %2275
        %2277 = vadd.xlane.f32.xlu0 %v2266
        %v2278 = vpop.xlane.xlu0 %2277
        %2279 = vadd.xlane.f32.xlu0 %v2268
        %v2280 = vpop.xlane.xlu0 %2279
        %2281 = vadd.xlane.f32.xlu0 %v2270
        %v2282 = vpop.xlane.xlu0 %2281
        %2283 = vadd.xlane.f32.xlu0 %v2272
        %v2284 = vpop.xlane.xlu0 %2283
        %2285 = vadd.xlane.f32.xlu0 %v2274
        %v2286 = vpop.xlane.xlu0 %2285
        %v2287 = vadd.f32 %v2221, %v2276
        %v2288 = vadd.f32 %v2222, %v2278
        %v2289 = vadd.f32 %v2223, %v2280
        %v2290 = vadd.f32 %v2224, %v2282
        %v2291 = vadd.f32 %v2225, %v2284
        %v2292 = vadd.f32 %v2226, %v2286
        %vm2293 = vcmask 7168
        %2294 = vst.msk [vmem:[#allocation8] sm:$0xff] %vm2293, %v2287
        %2295 = vst.msk [vmem:[#allocation8 + $0x8] sm:$0xff] %vm2293, %v2288
        %2296 = vst.msk [vmem:[#allocation8 + $0x10] sm:$0xff] %vm2293, %v2289
        %2297 = vst.msk [vmem:[#allocation8 + $0x18] sm:$0xff] %vm2293, %v2290
        %2298 = vst.msk [vmem:[#allocation8 + $0x20] sm:$0xff] %vm2293, %v2291
        %2299 = vst.msk [vmem:[#allocation8 + $0x28] sm:$0xff] %vm2293, %v2292
        %2300 = vst.msk [vmem:[#allocation7] sm:$0xff] %vm2293, %v2191
        %2301 = vst.msk [vmem:[#allocation7 + $0x8] sm:$0xff] %vm2293, %v2192
        %2302 = vst.msk [vmem:[#allocation7 + $0x10] sm:$0xff] %vm2293, %v2193
        %2303 = vst.msk [vmem:[#allocation7 + $0x18] sm:$0xff] %vm2293, %v2194
        %2304 = vst.msk [vmem:[#allocation7 + $0x20] sm:$0xff] %vm2293, %v2195
        %2305 = vst.msk [vmem:[#allocation7 + $0x28] sm:$0xff] %vm2293, %v2196
        %s2306 = smul.u32 %s25, 128
        %v2307 = vlaneseq
        %v2308 = vand.u32 %v2307, 127
        %v2309 = vstv %s2306
        %v2310 = vadd.s32 %v2309, %v2308
        %v2311 = vld [vmem:[#allocation9] sm:$0xff]
        %v2312 = vld [vmem:[#allocation9 + $0x8] sm:$0xff]
        %v2313 = vld [vmem:[#allocation9 + $0x10] sm:$0xff]
        %v2314 = vld [vmem:[#allocation9 + $0x18] sm:$0xff]
        %v2315 = vld [vmem:[#allocation9 + $0x20] sm:$0xff]
        %v2316 = vld [vmem:[#allocation9 + $0x28] sm:$0xff]
        %v2317 = vld [vmem:[%s3] sm:$0xff]
        %v2318 = vld [vmem:[%s3 + $0x8] sm:$0xff]
        %v2319 = vld [vmem:[%s3 + $0x10] sm:$0xff]
        %v2320 = vld [vmem:[%s3 + $0x18] sm:$0xff]
        %v2321 = vld [vmem:[%s3 + $0x20] sm:$0xff]
        %v2322 = vld [vmem:[%s3 + $0x28] sm:$0xff]
        %2323 = vset.pattern.permute.xlu0 0
        %2324 = vperm.xlu0 %2323, %v2317
        %v2325 = vpop.permute.xlu0 %2324
        %2326 = vset.pattern.permute.xlu0 0
        %2327 = vperm.xlu0 %2326, %v2318
        %v2328 = vpop.permute.xlu0 %2327
        %2329 = vset.pattern.permute.xlu0 0
        %2330 = vperm.xlu0 %2329, %v2319
        %v2331 = vpop.permute.xlu0 %2330
        %2332 = vset.pattern.permute.xlu0 0
        %2333 = vperm.xlu0 %2332, %v2320
        %v2334 = vpop.permute.xlu0 %2333
        %2335 = vset.pattern.permute.xlu0 0
        %2336 = vperm.xlu0 %2335, %v2321
        %v2337 = vpop.permute.xlu0 %2336
        %2338 = vset.pattern.permute.xlu0 0
        %2339 = vperm.xlu0 %2338, %v2322
        %v2340 = vpop.permute.xlu0 %2339
        %vm2341 = vcmp.eq.s32.totalorder %v2310, %v2325
        %vm2342 = vcmp.eq.s32.totalorder %v2310, %v2328
        %vm2343 = vcmp.eq.s32.totalorder %v2310, %v2331
        %vm2344 = vcmp.eq.s32.totalorder %v2310, %v2334
        %vm2345 = vcmp.eq.s32.totalorder %v2310, %v2337
        %vm2346 = vcmp.eq.s32.totalorder %v2310, %v2340
        %v2347 = vsel %vm2341, %v2151, 0.0
        %v2348 = vsel %vm2342, %v2154, 0.0
        %v2349 = vsel %vm2343, %v2159, 0.0
        %v2350 = vsel %vm2344, %v2162, 0.0
        %v2351 = vsel %vm2345, %v2167, 0.0
        %v2352 = vsel %vm2346, %v2170, 0.0
        %2353 = vadd.xlane.f32.xlu0 %v2347
        %v2354 = vpop.xlane.xlu0 %2353
        %2355 = vadd.xlane.f32.xlu0 %v2348
        %v2356 = vpop.xlane.xlu0 %2355
        %2357 = vadd.xlane.f32.xlu0 %v2349
        %v2358 = vpop.xlane.xlu0 %2357
        %2359 = vadd.xlane.f32.xlu0 %v2350
        %v2360 = vpop.xlane.xlu0 %2359
        %2361 = vadd.xlane.f32.xlu0 %v2351
        %v2362 = vpop.xlane.xlu0 %2361
        %2363 = vadd.xlane.f32.xlu0 %v2352
        %v2364 = vpop.xlane.xlu0 %2363
        %v2365 = vadd.f32 %v2311, %v2354
        %v2366 = vadd.f32 %v2312, %v2356
        %v2367 = vadd.f32 %v2313, %v2358
        %v2368 = vadd.f32 %v2314, %v2360
        %v2369 = vadd.f32 %v2315, %v2362
        %v2370 = vadd.f32 %v2316, %v2364
        %2371 = vst.msk [vmem:[#allocation9] sm:$0xff] %vm2293, %v2365
        %2372 = vst.msk [vmem:[#allocation9 + $0x8] sm:$0xff] %vm2293, %v2366
        %2373 = vst.msk [vmem:[#allocation9 + $0x10] sm:$0xff] %vm2293, %v2367
        %2374 = vst.msk [vmem:[#allocation9 + $0x18] sm:$0xff] %vm2293, %v2368
        %2375 = vst.msk [vmem:[#allocation9 + $0x20] sm:$0xff] %vm2293, %v2369
        %2376 = vst.msk [vmem:[#allocation9 + $0x28] sm:$0xff] %vm2293, %v2370
        %p2377 = scmp.eq.s32.totalorder %s25, 1
        // Predicated region
        $region118: #{seq2seq_forward.1} parent=108 // pred_check
          %p2378 = pneg %p2377
        $region119: #{seq2seq_forward.1} parent=108 // pred_check_branch
          %2380 = sbr.rel (%p2378) target = $region121
        $region120: #{seq2seq_forward.1} parent=108 // pred_region
          %v2381 = vld [vmem:[#allocation7] sm:$0xff]
          %v2382 = vld [vmem:[#allocation7 + $0x8] sm:$0xff]
          %v2383 = vld [vmem:[#allocation7 + $0x10] sm:$0xff]
          %v2384 = vld [vmem:[#allocation7 + $0x18] sm:$0xff]
          %v2385 = vld [vmem:[#allocation7 + $0x20] sm:$0xff]
          %v2386 = vld [vmem:[#allocation7 + $0x28] sm:$0xff]
          %v2387 = vld [vmem:[#allocation8] sm:$0xff]
          %v2388 = vld [vmem:[#allocation8 + $0x8] sm:$0xff]
          %v2389 = vld [vmem:[#allocation8 + $0x10] sm:$0xff]
          %v2390 = vld [vmem:[#allocation8 + $0x18] sm:$0xff]
          %v2391 = vld [vmem:[#allocation8 + $0x20] sm:$0xff]
          %v2392 = vld [vmem:[#allocation8 + $0x28] sm:$0xff]
          %v2393 = vmax.f32 %v2387, 1e-30
          %v2394 = vmax.f32 %v2388, 1e-30
          %v2395 = vmax.f32 %v2389, 1e-30
          %v2396 = vmax.f32 %v2390, 1e-30
          %v2397 = vmax.f32 %v2391, 1e-30
          %v2398 = vmax.f32 %v2392, 1e-30
          %v2399 = vlog2.pop %v2393
          %v2400 = vmul.f32 %v2399, 0.6931472
          %v2401 = vlog2.pop %v2394
          %v2402 = vmul.f32 %v2401, 0.6931472
          %v2403 = vlog2.pop %v2395
          %v2404 = vmul.f32 %v2403, 0.6931472
          %v2405 = vlog2.pop %v2396
          %v2406 = vmul.f32 %v2405, 0.6931472
          %v2407 = vlog2.pop %v2397
          %v2408 = vmul.f32 %v2407, 0.6931472
          %v2409 = vlog2.pop %v2398
          %v2410 = vmul.f32 %v2409, 0.6931472
          %v2411 = vadd.f32 %v2381, %v2400
          %v2412 = vadd.f32 %v2382, %v2402
          %v2413 = vadd.f32 %v2383, %v2404
          %v2414 = vadd.f32 %v2384, %v2406
          %v2415 = vadd.f32 %v2385, %v2408
          %v2416 = vadd.f32 %v2386, %v2410
          %v2417 = vld [vmem:[#allocation9] sm:$0xff]
          %v2418 = vld [vmem:[#allocation9 + $0x8] sm:$0xff]
          %v2419 = vld [vmem:[#allocation9 + $0x10] sm:$0xff]
          %v2420 = vld [vmem:[#allocation9 + $0x18] sm:$0xff]
          %v2421 = vld [vmem:[#allocation9 + $0x20] sm:$0xff]
          %v2422 = vld [vmem:[#allocation9 + $0x28] sm:$0xff]
          %v2423 = vsub.f32 %v2411, %v2417
          %v2424 = vsub.f32 %v2412, %v2418
          %v2425 = vsub.f32 %v2413, %v2419
          %v2426 = vsub.f32 %v2414, %v2420
          %v2427 = vsub.f32 %v2415, %v2421
          %v2428 = vsub.f32 %v2416, %v2422
          %v2429 = vld [vmem:[%s4] sm:$0xff]
          %v2430 = vld [vmem:[%s4 + $0x8] sm:$0xff]
          %v2431 = vld [vmem:[%s4 + $0x10] sm:$0xff]
          %v2432 = vld [vmem:[%s4 + $0x18] sm:$0xff]
          %v2433 = vld [vmem:[%s4 + $0x20] sm:$0xff]
          %v2434 = vld [vmem:[%s4 + $0x28] sm:$0xff]
          %v2435 = vmul.f32 %v2423, %v2429
          %v2436 = vmul.f32 %v2424, %v2430
          %v2437 = vmul.f32 %v2425, %v2431
          %v2438 = vmul.f32 %v2426, %v2432
          %v2439 = vmul.f32 %v2427, %v2433
          %v2440 = vmul.f32 %v2428, %v2434
          %v2441 = vsel %vm2293, %v2435, 0.0
          %v2442 = vsel %vm2293, %v2436, 0.0
          %v2443 = vadd.f32 %v2441, %v2442
          %v2444 = vsel %vm2293, %v2437, 0.0
          %v2445 = vadd.f32 %v2443, %v2444
          %v2446 = vsel %vm2293, %v2438, 0.0
          %v2447 = vadd.f32 %v2445, %v2446
          %v2448 = vsel %vm2293, %v2439, 0.0
          %v2449 = vadd.f32 %v2447, %v2448
          %v2450 = vsel %vm2293, %v2440, 0.0
          %v2451 = vadd.f32 %v2449, %v2450
          %v2452 = vrot.slane %v2451, 4
          %v2453 = vadd.f32 %v2451, %v2452
          %v2454 = vrot.slane %v2453, 2
          %v2455 = vadd.f32 %v2453, %v2454
          %v2456 = vrot.slane %v2455, 1
          %v2457 = vadd.f32 %v2455, %v2456
          %v2458 = vsel %vm2293, %v2429, 0.0
          %v2459 = vsel %vm2293, %v2430, 0.0
          %v2460 = vadd.f32 %v2458, %v2459
          %v2461 = vsel %vm2293, %v2431, 0.0
          %v2462 = vadd.f32 %v2460, %v2461
          %v2463 = vsel %vm2293, %v2432, 0.0
          %v2464 = vadd.f32 %v2462, %v2463
          %v2465 = vsel %vm2293, %v2433, 0.0
          %v2466 = vadd.f32 %v2464, %v2465
          %v2467 = vsel %vm2293, %v2434, 0.0
          %v2468 = vadd.f32 %v2466, %v2467
          %v2469 = vrot.slane %v2468, 4
          %v2470 = vadd.f32 %v2468, %v2469
          %v2471 = vrot.slane %v2470, 2
          %v2472 = vadd.f32 %v2470, %v2471
          %v2473 = vrot.slane %v2472, 1
          %v2474 = vadd.f32 %v2472, %v2473
          %v2475 = vmax.f32 %v2474, 1.0
          %v2476 = vrcp.pop %v2475
          %v2477 = vmul.f32 %v2457, %v2476
          %vm2478 = vcmask 0
          %2479 = vst.msk [vmem:[#allocation11] sm:$0x1] %vm2478, %v2477
        $region121: #{seq2seq_forward.1} parent=108 // pred_fallthru
          _
        // Predicated region
        $region122: #{seq2seq_forward.1} parent=108 // pred_check
          %p2480 = pneg %p321
        $region123: #{seq2seq_forward.1} parent=108 // pred_check_branch
          %2482 = sbr.rel (%p2480) target = $region125
        $region124: #{seq2seq_forward.1} parent=108 // pred_region
          %s2484 = ssub.s32 16, 16
          %2485 = vsyncadd [#allocation12], %s2484
          %s2487 = sshll.u32 [#allocation11], 4
          %s2488 = int_to_ptr.vmem [resolvable:$true] %s2487
          %2490 = dma.vmem_to_hbm [thread:$0]  %s2488, 16, %s13, [#allocation12]
        $region125: #{seq2seq_forward.1} parent=108 // pred_fallthru
          _
        // Predicated region
        $region126: #{seq2seq_forward.1} parent=108 // pred_check
          %p2491 = pneg %p321
        $region127: #{seq2seq_forward.1} parent=108 // pred_check_branch
          %2493 = sbr.rel (%p2491) target = $region129
        $region128: #{seq2seq_forward.1} parent=108 // pred_region
          %2494 = dma.done [#allocation12], 16
        $region129: #{seq2seq_forward.1} parent=108 // pred_fallthru
          _
      $region109: #{seq2seq_forward.1} parent=5 // pred_fallthru
        _
      %p2495 = scmp.le.s32.totalorder 2, %s20
      // Predicated region
      $region130: #{seq2seq_forward.1} parent=5 // pred_check
        %p2496 = pneg %p2495
      $region131: #{seq2seq_forward.1} parent=5 // pred_check_branch
        %2498 = sbr.rel (%p2496) target = $region133
      $region132: #{seq2seq_forward.1} parent=5 // pred_region
        %s2499 = ssub.s32 %s20, 2
      $region133: #{seq2seq_forward.1} parent=5 // pred_fallthru
        _
    $region6: #{seq2seq_forward.1} parent=1 // loop_footer
      %s24 = sadd.s32 1, %s20
    $region7: #{seq2seq_forward.1} parent=1 // loop_footer_branch
      %19 = sbr.rel target = $region3
    $region8: #{seq2seq_forward.1} parent=1 // loop_exit
      _
    %2500 = vsyncpa [#allocation12], 1
    %s2501 = scalar_lea.sflag [#allocation12], 1
    %2502 = vsyncpa %s2501, 1

</llo_original>
